<compile_context>
chip_gen: v5e
topology: v5e:2x2
jax: 0.10.0
libtpu: 0.0.40
codegen_flags: <defaults>
</compile_context>

<pallas_src>
import math

import jax
import jax.numpy as jnp
from jax.experimental import pallas as pl
from jax.experimental.pallas import tpu as pltpu


def _make_kernel(Bt, T, Tc, C, n_heads, has_mask):
    HD = C // n_heads
    f32 = jnp.float32

    def _body(x_ref, ctx_ref, mask_ref, vec_ref,
              wq_ref, wk_ref, wv_ref, wp_ref, o_ref):
        cdt = wq_ref.dtype  # matmul operand dtype (bf16); f32 accumulation

        # (Bt, T, C) -> (Bt*T, C): major-dim merge only (layout preserving).
        x2 = x_ref[...].astype(f32).reshape(Bt * T, C)
        c2 = ctx_ref[...].astype(f32).reshape(Bt * Tc, C)

        # Packed (8, C) constant rows: [g1, b1, g2, b2, bq(scaled), bk, bv, bp].
        vec = vec_ref[...]
        g1, b1 = vec[0:1, :], vec[1:2, :]
        g2, b2 = vec[2:3, :], vec[3:4, :]
        bq, bk = vec[4:5, :], vec[5:6, :]
        bv, bp = vec[6:7, :], vec[7:8, :]

        def layernorm(v, g, b):
            mu = jnp.mean(v, axis=-1, keepdims=True)
            var = jnp.mean((v - mu) ** 2, axis=-1, keepdims=True)
            return (v - mu) * jax.lax.rsqrt(var + 1e-5) * g + b

        # LayerNorm in f32 (VPU); cast to bf16 right away so all later
        # relayouts / matmul operands move half the bytes.
        xn = layernorm(x2, g1, b1).astype(cdt)     # (Bt*T,  C)
        cn = layernorm(c2, g2, b2).astype(cdt)     # (Bt*Tc, C)

        # Projections: weights pre-transposed to (in, out); 1/sqrt(HD) folded
        # into Wq/bq. Cast to compute dtype immediately after the bias add.
        q2 = (jnp.dot(xn, wq_ref[...], preferred_element_type=f32) + bq).astype(cdt)
        k2 = (jnp.dot(cn, wk_ref[...], preferred_element_type=f32) + bk).astype(cdt)
        v2 = (jnp.dot(cn, wv_ref[...], preferred_element_type=f32) + bv).astype(cdt)

        # Head split with no lane transposes: split the channel dim, permute
        # sublane/major axes only, and fold (batch, head) into one leading
        # batch dim so attention is a single-batch-dim dot_general.
        G = Bt * n_heads
        qh = q2.reshape(Bt, T, n_heads, HD).swapaxes(1, 2).reshape(G, T, HD)
        kh = k2.reshape(Bt, Tc, n_heads, HD).swapaxes(1, 2).reshape(G, Tc, HD)
        vh = v2.reshape(Bt, Tc, n_heads, HD).swapaxes(1, 2).reshape(G, Tc, HD)

        att = jnp.einsum('gtd,gsd->gts', qh, kh,
                         preferred_element_type=f32)            # (G, T, Tc)
        att = jnp.exp(att - jnp.max(att, axis=-1, keepdims=True))
        att = att * pl.reciprocal(jnp.sum(att, axis=-1, keepdims=True),
                                  approx=True)

        y = jnp.einsum('gts,gsd->gtd', att.astype(cdt), vh,
                       preferred_element_type=f32)              # (G, T, HD)
        # Merge heads back to channel layout [h*HD + d]; again sublane/major
        # moves only, landing directly in the fat projection's row layout.
        y2 = (y.astype(cdt).reshape(Bt, n_heads, T, HD)
               .swapaxes(1, 2).reshape(Bt * T, C))

        out2 = jnp.dot(y2, wp_ref[...],
                       preferred_element_type=f32) + bp          # (Bt*T, C)
        out3 = out2.reshape(Bt, T, C)

        if mask_ref is not None:
            m = mask_ref[...].reshape(Bt, T, 1)                  # from (Bt, 1, T)
            out3 = jnp.where(m == 0, 0.0, out3)                  # masked_fill(==0, 0)

        # NOTE: lane-dense store whenever C is a multiple of 128 (production
        # embed dims); the toy C=32 test only fills 32/128 lanes.
        o_ref[...] = out3.astype(o_ref.dtype)

    if has_mask:
        def kernel(x_ref, ctx_ref, mask_ref, vec_ref, wq, wk, wv, wp, o_ref):
            _body(x_ref, ctx_ref, mask_ref, vec_ref, wq, wk, wv, wp, o_ref)
    else:
        def kernel(x_ref, ctx_ref, vec_ref, wq, wk, wv, wp, o_ref):
            _body(x_ref, ctx_ref, None, vec_ref, wq, wk, wv, wp, o_ref)
    return kernel


def _vmem_capacity_bytes():
    """Per-core VMEM capacity; conservative 64 MiB fallback (v7x)."""
    try:
        info = pltpu.get_tpu_info()
        cap = int(getattr(info, "vmem_capacity_bytes", 0) or 0)
        if cap > 0:
            return cap
    except Exception:
        pass
    return 64 * 1024 * 1024


def _pick_block_b(B, T, Tc, C, n_heads, in_itemsize, out_itemsize, budget_bytes):
    """Largest batch-block that fits the VMEM budget, targeting >=256 MXU rows
    while keeping the 'parallel' grid axis at >=2 steps (v7x megacore)."""
    f32, bf16 = 4, 2

    def est(bt):
        rq, rkv = bt * T, bt * Tc
        # pipeline-managed activation blocks (double-buffered) + mask
        blk = 2 * ((rq + rkv) * C * in_itemsize + rq * C * out_itemsize + rq * f32)
        # constant operands (worst case: double-buffered fallback)
        const = 2 * (4 * C * C * bf16 + 8 * C * f32)
        # in-kernel live intermediates (LN outs, q/k/v, att probs, y), + slack
        inter = 2 * (rq + 2 * rkv) * C * (f32 + bf16)
        inter += bt * n_heads * T * Tc * (f32 + bf16)
        inter += rq * C * (f32 + bf16)
        return blk + const + int(1.5 * inter)

    best = 1
    for bt in sorted(d for d in range(1, B + 1) if B % d == 0):
        if est(bt) > budget_bytes:
            break
        if B > 1 and B // bt < 2:
            continue  # keep >=2 grid steps: v7x TC sharding + pipeline overlap
        best = bt
        if bt * T >= 256:
            break     # enough rows to fill a 256x256 MXU pass
    return best


def cross_attention_layer(x, context, params, n_heads, context_mask=None,
                          block_b=None, compute_dtype=jnp.bfloat16):
    """x: (B, T, C), context: (B, Tc, C) -> (B, T, C)."""
    B, T, C = x.shape
    _, Tc, _ = context.shape
    assert C % n_heads == 0
    HD = C // n_heads
    scale = 1.0 / math.sqrt(HD)
    f32 = jnp.float32

    (g1, b1, g2, b2, wq, bq, wk, bk, wv, bv, wp, bp) = params

    # torch weights are (out, in): pre-transpose to (in, out) so in-kernel
    # matmuls need no relayout. Fold the 1/sqrt(HD) scale into Wq/bq in f32
    # BEFORE the bf16 cast. Pack the eight (1, C) LN/bias vectors into one
    # (8, C) constant so a single DMA block carries them.
    wq_t = (wq.astype(f32) * scale).T.astype(compute_dtype)
    wk_t = wk.astype(f32).T.astype(compute_dtype)
    wv_t = wv.astype(f32).T.astype(compute_dtype)
    wp_t = wp.astype(f32).T.astype(compute_dtype)
    vec_pack = jnp.concatenate([
        g1.astype(f32).reshape(1, C), b1.astype(f32).reshape(1, C),
        g2.astype(f32).reshape(1, C), b2.astype(f32).reshape(1, C),
        (bq.astype(f32) * scale).reshape(1, C), bk.astype(f32).reshape(1, C),
        bv.astype(f32).reshape(1, C), bp.astype(f32).reshape(1, C),
    ], axis=0)

    # Per-generation VMEM budget (~96 MiB on v5e/v6e, ~48 MiB on v7x).
    vmem_budget = int(_vmem_capacity_bytes() * 3 // 4)

    if block_b is None:
        itemsize = jnp.dtype(x.dtype).itemsize
        block_b = _pick_block_b(B, T, Tc, C, n_heads, itemsize, itemsize,
                                vmem_budget)
    bt = block_b
    assert B % bt == 0
    nb = B // bt

    has_mask = context_mask is not None
    kernel = _make_kernel(bt, T, Tc, C, n_heads, has_mask)

    inputs = [x, context]
    if has_mask:
        m = context_mask
        if m.ndim == 3:
            assert m.shape[-1] == 1, "context_mask must be per-token"
            m = m[..., 0]
        inputs.append(m.astype(f32).reshape(B, 1, T))   # lane-dense mask layout
    inputs += [vec_pack, wq_t, wk_t, wv_t, wp_t]

    def build(single_buffer_consts):
        # Constant operands never change across the grid: single-buffer them
        # so they don't eat 2x VMEM (matters most on v7x's 64 MiB).
        kwargs = ({"pipeline_mode": pl.Buffered(1)} if single_buffer_consts
                  else {})

        def const(shape):
            return pl.BlockSpec(shape, lambda i: (0,) * len(shape), **kwargs)

        in_specs = [
            pl.BlockSpec((bt, T, C), lambda i: (i, 0, 0)),    # x
            pl.BlockSpec((bt, Tc, C), lambda i: (i, 0, 0)),   # context
        ]
        if has_mask:
            in_specs.append(pl.BlockSpec((bt, 1, T), lambda i: (i, 0, 0)))
        in_specs += [
            const((8, C)),                                    # packed LN/bias vectors
            const((C, C)), const((C, C)),                     # Wq (scaled), Wk
            const((C, C)), const((C, C)),                     # Wv, Wproj
        ]

        grid_spec = pltpu.PrefetchScalarGridSpec(
            num_scalar_prefetch=0,
            grid=(nb,),
            in_specs=in_specs,
            out_specs=pl.BlockSpec((bt, T, C), lambda i: (i, 0, 0)),
        )
        return pl.pallas_call(
            kernel,
            out_shape=jax.ShapeDtypeStruct((B, T, C), x.dtype),
            grid_spec=grid_spec,
            compiler_params=pltpu.CompilerParams(
                dimension_semantics=("parallel",),
                vmem_limit_bytes=vmem_budget,
            ),
        )

    try:
        return build(single_buffer_consts=True)(*inputs)
    except Exception:
        # pipeline_mode=pl.Buffered(1) unsupported on this jax version:
        # fall back to default double-buffered constants (correctness identical).
        return build(single_buffer_consts=False)(*inputs)


def reference(x, context, params, n_heads, context_mask=None):
    """Pure-JAX f32 reference mirroring the PyTorch forward (eval mode)."""
    (g1, b1, g2, b2, wq, bq, wk, bk, wv, bv, wp, bp) = params
    B, T, C = x.shape
    _, Tc, _ = context.shape
    HD = C // n_heads

    def ln(v, g, b):
        mu = jnp.mean(v, -1, keepdims=True)
        var = jnp.mean((v - mu) ** 2, -1, keepdims=True)
        return (v - mu) / jnp.sqrt(var + 1e-5) * g + b

    xn = ln(x, g1, b1)
    cn = ln(context, g2, b2)
    q = xn @ wq.T + bq
    k = cn @ wk.T + bk
    v = cn @ wv.T + bv
    q = q.reshape(B, T, n_heads, HD).transpose(0, 2, 1, 3)
    k = k.reshape(B, Tc, n_heads, HD).transpose(0, 2, 1, 3)
    v = v.reshape(B, Tc, n_heads, HD).transpose(0, 2, 1, 3)
    att = jnp.einsum("bhqd,bhkd->bhqk", q, k) / math.sqrt(HD)
    att = jax.nn.softmax(att, axis=-1)
    y = jnp.einsum("bhqk,bhkd->bhqd", att, v)
    y = y.transpose(0, 2, 1, 3).reshape(B, T, C)
    y = y @ wp.T + bp
    if context_mask is not None:
        y = jnp.where(context_mask == 0, 0.0, y)
    return y


if __name__ == "__main__":
    # Small shapes consistent with the module (embed_dim=32, n_heads=4).
    B, T, Tc, C, H = 2, 8, 16, 32, 4

    key = jax.random.PRNGKey(0)
    ks = jax.random.split(key, 12)

    g1 = jnp.ones((1, C), jnp.float32)
    b1 = jnp.zeros((1, C), jnp.float32)
    g2 = jnp.ones((1, C), jnp.float32)
    b2 = jnp.zeros((1, C), jnp.float32)
    wq = 0.05 * jax.random.normal(ks[0], (C, C), jnp.float32)
    bq = 0.05 * jax.random.normal(ks[1], (1, C), jnp.float32)
    wk = 0.05 * jax.random.normal(ks[2], (C, C), jnp.float32)
    bk = 0.05 * jax.random.normal(ks[3], (1, C), jnp.float32)
    wv = 0.05 * jax.random.normal(ks[4], (C, C), jnp.float32)
    bv = 0.05 * jax.random.normal(ks[5], (1, C), jnp.float32)
    wp = 0.05 * jax.random.normal(ks[6], (C, C), jnp.float32)
    bp = 0.05 * jax.random.normal(ks[7], (1, C), jnp.float32)
    params = (g1, b1, g2, b2, wq, bq, wk, bk, wv, bv, wp, bp)

    x = jax.random.normal(ks[8], (B, T, C), jnp.float32)
    context = jax.random.normal(ks[9], (B, Tc, C), jnp.float32)
    mask = (jax.random.uniform(ks[10], (B, T, 1)) > 0.3).astype(jnp.float32)

    # No-mask variant (separate kernel, no dummy mask DMA).
    out = jax.block_until_ready(
        cross_attention_layer(x, context, params, n_heads=H))
    ref = reference(x, context, params, n_heads=H)
    assert out.shape == (B, T, C)
    # bf16 matmul operands + approx reciprocal -> loosened tolerance.
    assert jnp.allclose(out, ref, atol=2e-2, rtol=2e-2), "mismatch (no mask)"

    # Masked variant.
    out_m = jax.block_until_ready(
        cross_attention_layer(x, context, params, n_heads=H, context_mask=mask))
    ref_m = reference(x, context, params, n_heads=H, context_mask=mask)
    assert jnp.allclose(out_m, ref_m, atol=2e-2, rtol=2e-2), "mismatch (masked)"

    print("KERNEL_OK")
</pallas_src>

<mosaic_0001>
module attributes {stable_mosaic.version = 11 : i64} {
  func.func @kernel(%arg0: i32, %arg1: memref<1x8x32xf32, #tpu.memory_space<vmem>>, %arg2: memref<1x16x32xf32, #tpu.memory_space<vmem>>, %arg3: memref<8x32xf32, #tpu.memory_space<vmem>>, %arg4: memref<32x32xbf16, #tpu.memory_space<vmem>>, %arg5: memref<32x32xbf16, #tpu.memory_space<vmem>>, %arg6: memref<32x32xbf16, #tpu.memory_space<vmem>>, %arg7: memref<32x32xbf16, #tpu.memory_space<vmem>>, %arg8: memref<1x8x32xf32, #tpu.memory_space<vmem>>) attributes {dimension_semantics = [#tpu.dimension_semantics<parallel>], iteration_bounds = array<i64: 2>, scalar_prefetch = 0 : i64, scratch_operands = 0 : i64, tpu.core_type = #tpu.core_type<tc>, window_params = [{transform_indices = @transform_0, window_bounds = array<i64: 1, 8, 32>}, {transform_indices = @transform_1, window_bounds = array<i64: 1, 16, 32>}, {pipeline_mode = #tpu.pipeline_mode<synchronous>, transform_indices = @transform_2, window_bounds = array<i64: 8, 32>}, {pipeline_mode = #tpu.pipeline_mode<synchronous>, transform_indices = @transform_3, window_bounds = array<i64: 32, 32>}, {pipeline_mode = #tpu.pipeline_mode<synchronous>, transform_indices = @transform_4, window_bounds = array<i64: 32, 32>}, {pipeline_mode = #tpu.pipeline_mode<synchronous>, transform_indices = @transform_5, window_bounds = array<i64: 32, 32>}, {pipeline_mode = #tpu.pipeline_mode<synchronous>, transform_indices = @transform_6, window_bounds = array<i64: 32, 32>}, {transform_indices = @transform_7, window_bounds = array<i64: 1, 8, 32>}]} {
    %c0 = arith.constant 0 : index
    %c0_0 = arith.constant 0 : index
    %c0_1 = arith.constant 0 : index
    %0 = vector.load %arg1[%c0, %c0_0, %c0_1] : memref<1x8x32xf32, #tpu.memory_space<vmem>>, vector<1x8x32xf32>
    %1 = vector.shape_cast %0 : vector<1x8x32xf32> to vector<8x32xf32>
    %c0_2 = arith.constant 0 : index
    %c0_3 = arith.constant 0 : index
    %c0_4 = arith.constant 0 : index
    %2 = vector.load %arg2[%c0_2, %c0_3, %c0_4] : memref<1x16x32xf32, #tpu.memory_space<vmem>>, vector<1x16x32xf32>
    %3 = vector.shape_cast %2 : vector<1x16x32xf32> to vector<16x32xf32>
    %c0_5 = arith.constant 0 : index
    %c0_6 = arith.constant 0 : index
    %4 = vector.load %arg3[%c0_5, %c0_6] : memref<8x32xf32, #tpu.memory_space<vmem>>, vector<8x32xf32>
    %5 = vector.extract_strided_slice %4 {offsets = [0, 0], sizes = [1, 32], strides = [1, 1]} : vector<8x32xf32> to vector<1x32xf32>
    %6 = vector.extract_strided_slice %4 {offsets = [1, 0], sizes = [1, 32], strides = [1, 1]} : vector<8x32xf32> to vector<1x32xf32>
    %7 = vector.extract_strided_slice %4 {offsets = [2, 0], sizes = [1, 32], strides = [1, 1]} : vector<8x32xf32> to vector<1x32xf32>
    %8 = vector.extract_strided_slice %4 {offsets = [3, 0], sizes = [1, 32], strides = [1, 1]} : vector<8x32xf32> to vector<1x32xf32>
    %9 = vector.extract_strided_slice %4 {offsets = [4, 0], sizes = [1, 32], strides = [1, 1]} : vector<8x32xf32> to vector<1x32xf32>
    %10 = vector.extract_strided_slice %4 {offsets = [5, 0], sizes = [1, 32], strides = [1, 1]} : vector<8x32xf32> to vector<1x32xf32>
    %11 = vector.extract_strided_slice %4 {offsets = [6, 0], sizes = [1, 32], strides = [1, 1]} : vector<8x32xf32> to vector<1x32xf32>
    %12 = vector.extract_strided_slice %4 {offsets = [7, 0], sizes = [1, 32], strides = [1, 1]} : vector<8x32xf32> to vector<1x32xf32>
    %cst = arith.constant dense<0.000000e+00> : vector<8xf32>
    %13 = vector.multi_reduction <add>, %1, %cst [1] : vector<8x32xf32> to vector<8xf32>
    %14 = vector.shape_cast %13 : vector<8xf32> to vector<8x1xf32>
    %cst_7 = arith.constant 3.200000e+01 : f32
    %15 = vector.broadcast %cst_7 : f32 to vector<8x1xf32>
    %16 = arith.divf %14, %15 : vector<8x1xf32>
    %17 = vector.broadcast %16 : vector<8x1xf32> to vector<8x32xf32>
    %18 = arith.subf %1, %17 : vector<8x32xf32>
    %19 = arith.mulf %18, %18 : vector<8x32xf32>
    %cst_8 = arith.constant dense<0.000000e+00> : vector<8xf32>
    %20 = vector.multi_reduction <add>, %19, %cst_8 [1] : vector<8x32xf32> to vector<8xf32>
    %21 = vector.shape_cast %20 : vector<8xf32> to vector<8x1xf32>
    %cst_9 = arith.constant 3.200000e+01 : f32
    %22 = vector.broadcast %cst_9 : f32 to vector<8x1xf32>
    %23 = arith.divf %21, %22 : vector<8x1xf32>
    %24 = vector.broadcast %16 : vector<8x1xf32> to vector<8x32xf32>
    %25 = arith.subf %1, %24 : vector<8x32xf32>
    %cst_10 = arith.constant 9.99999974E-6 : f32
    %26 = vector.broadcast %cst_10 : f32 to vector<8x1xf32>
    %27 = arith.addf %23, %26 : vector<8x1xf32>
    %28 = math.rsqrt %27 : vector<8x1xf32>
    %29 = vector.broadcast %28 : vector<8x1xf32> to vector<8x32xf32>
    %30 = arith.mulf %25, %29 : vector<8x32xf32>
    %31 = vector.broadcast %5 : vector<1x32xf32> to vector<8x32xf32>
    %32 = arith.mulf %30, %31 : vector<8x32xf32>
    %33 = vector.broadcast %6 : vector<1x32xf32> to vector<8x32xf32>
    %34 = arith.addf %32, %33 : vector<8x32xf32>
    %35 = arith.truncf %34 : vector<8x32xf32> to vector<8x32xbf16>
    %cst_11 = arith.constant dense<0.000000e+00> : vector<16xf32>
    %36 = vector.multi_reduction <add>, %3, %cst_11 [1] : vector<16x32xf32> to vector<16xf32>
    %37 = vector.shape_cast %36 : vector<16xf32> to vector<16x1xf32>
    %cst_12 = arith.constant 3.200000e+01 : f32
    %38 = vector.broadcast %cst_12 : f32 to vector<16x1xf32>
    %39 = arith.divf %37, %38 : vector<16x1xf32>
    %40 = vector.broadcast %39 : vector<16x1xf32> to vector<16x32xf32>
    %41 = arith.subf %3, %40 : vector<16x32xf32>
    %42 = arith.mulf %41, %41 : vector<16x32xf32>
    %cst_13 = arith.constant dense<0.000000e+00> : vector<16xf32>
    %43 = vector.multi_reduction <add>, %42, %cst_13 [1] : vector<16x32xf32> to vector<16xf32>
    %44 = vector.shape_cast %43 : vector<16xf32> to vector<16x1xf32>
    %cst_14 = arith.constant 3.200000e+01 : f32
    %45 = vector.broadcast %cst_14 : f32 to vector<16x1xf32>
    %46 = arith.divf %44, %45 : vector<16x1xf32>
    %47 = vector.broadcast %39 : vector<16x1xf32> to vector<16x32xf32>
    %48 = arith.subf %3, %47 : vector<16x32xf32>
    %cst_15 = arith.constant 9.99999974E-6 : f32
    %49 = vector.broadcast %cst_15 : f32 to vector<16x1xf32>
    %50 = arith.addf %46, %49 : vector<16x1xf32>
    %51 = math.rsqrt %50 : vector<16x1xf32>
    %52 = vector.broadcast %51 : vector<16x1xf32> to vector<16x32xf32>
    %53 = arith.mulf %48, %52 : vector<16x32xf32>
    %54 = vector.broadcast %7 : vector<1x32xf32> to vector<16x32xf32>
    %55 = arith.mulf %53, %54 : vector<16x32xf32>
    %56 = vector.broadcast %8 : vector<1x32xf32> to vector<16x32xf32>
    %57 = arith.addf %55, %56 : vector<16x32xf32>
    %58 = arith.truncf %57 : vector<16x32xf32> to vector<16x32xbf16>
    %c0_16 = arith.constant 0 : index
    %c0_17 = arith.constant 0 : index
    %59 = vector.load %arg4[%c0_16, %c0_17] : memref<32x32xbf16, #tpu.memory_space<vmem>>, vector<32x32xbf16>
    %cst_18 = arith.constant dense<0.000000e+00> : vector<8x32xf32>
    %60 = tpu.matmul %35, %59, %cst_18 {dimension_numbers = #tpu.dot_dimension_numbers<[1], [0], [0], [1], [0, 0, 1, 1], [], []>} : vector<8x32xbf16>, vector<32x32xbf16>, vector<8x32xf32> -> vector<8x32xf32>
    %61 = vector.broadcast %9 : vector<1x32xf32> to vector<8x32xf32>
    %62 = arith.addf %60, %61 : vector<8x32xf32>
    %63 = arith.truncf %62 : vector<8x32xf32> to vector<8x32xbf16>
    %c0_19 = arith.constant 0 : index
    %c0_20 = arith.constant 0 : index
    %64 = vector.load %arg5[%c0_19, %c0_20] : memref<32x32xbf16, #tpu.memory_space<vmem>>, vector<32x32xbf16>
    %cst_21 = arith.constant dense<0.000000e+00> : vector<16x32xf32>
    %65 = tpu.matmul %58, %64, %cst_21 {dimension_numbers = #tpu.dot_dimension_numbers<[1], [0], [0], [1], [0, 0, 1, 1], [], []>} : vector<16x32xbf16>, vector<32x32xbf16>, vector<16x32xf32> -> vector<16x32xf32>
    %66 = vector.broadcast %10 : vector<1x32xf32> to vector<16x32xf32>
    %67 = arith.addf %65, %66 : vector<16x32xf32>
    %68 = arith.truncf %67 : vector<16x32xf32> to vector<16x32xbf16>
    %c0_22 = arith.constant 0 : index
    %c0_23 = arith.constant 0 : index
    %69 = vector.load %arg6[%c0_22, %c0_23] : memref<32x32xbf16, #tpu.memory_space<vmem>>, vector<32x32xbf16>
    %cst_24 = arith.constant dense<0.000000e+00> : vector<16x32xf32>
    %70 = tpu.matmul %58, %69, %cst_24 {dimension_numbers = #tpu.dot_dimension_numbers<[1], [0], [0], [1], [0, 0, 1, 1], [], []>} : vector<16x32xbf16>, vector<32x32xbf16>, vector<16x32xf32> -> vector<16x32xf32>
    %71 = vector.broadcast %11 : vector<1x32xf32> to vector<16x32xf32>
    %72 = arith.addf %70, %71 : vector<16x32xf32>
    %73 = arith.truncf %72 : vector<16x32xf32> to vector<16x32xbf16>
    %74 = vector.shape_cast %63 : vector<8x32xbf16> to vector<1x8x4x8xbf16>
    %75 = tpu.transpose %74, [0, 2, 1, 3] : vector<1x8x4x8xbf16> -> vector<1x4x8x8xbf16>
    %76 = vector.shape_cast %75 : vector<1x4x8x8xbf16> to vector<4x8x8xbf16>
    %77 = vector.shape_cast %68 : vector<16x32xbf16> to vector<1x16x4x8xbf16>
    %78 = tpu.transpose %77, [0, 2, 1, 3] : vector<1x16x4x8xbf16> -> vector<1x4x16x8xbf16>
    %79 = vector.shape_cast %78 : vector<1x4x16x8xbf16> to vector<4x16x8xbf16>
    %80 = vector.shape_cast %73 : vector<16x32xbf16> to vector<1x16x4x8xbf16>
    %81 = tpu.transpose %80, [0, 2, 1, 3] : vector<1x16x4x8xbf16> -> vector<1x4x16x8xbf16>
    %82 = vector.shape_cast %81 : vector<1x4x16x8xbf16> to vector<4x16x8xbf16>
    "tpu.trace_start"() <{level = 10 : i32, message = "gtd,gsd->gts"}> : () -> ()
    %cst_25 = arith.constant dense<0.000000e+00> : vector<4x8x16xf32>
    %83 = tpu.matmul %76, %79, %cst_25 {dimension_numbers = #tpu.dot_dimension_numbers<[2], [2], [1], [1], [0, 0, 0, 1, 1, 1], [0], [0]>} : vector<4x8x8xbf16>, vector<4x16x8xbf16>, vector<4x8x16xf32> -> vector<4x8x16xf32>
    "tpu.trace_stop"() : () -> ()
    %cst_26 = arith.constant dense<0xFF800000> : vector<4x8xf32>
    %84 = vector.multi_reduction <maximumf>, %83, %cst_26 [2] : vector<4x8x16xf32> to vector<4x8xf32>
    %85 = vector.shape_cast %84 : vector<4x8xf32> to vector<4x8x1xf32>
    %86 = vector.broadcast %85 : vector<4x8x1xf32> to vector<4x8x16xf32>
    %87 = arith.subf %83, %86 : vector<4x8x16xf32>
    %88 = math.exp %87 : vector<4x8x16xf32>
    %cst_27 = arith.constant dense<0.000000e+00> : vector<4x8xf32>
    %89 = vector.multi_reduction <add>, %88, %cst_27 [2] : vector<4x8x16xf32> to vector<4x8xf32>
    %90 = vector.shape_cast %89 : vector<4x8xf32> to vector<4x8x1xf32>
    %91 = tpu.reciprocal %90 {approx = true} : vector<4x8x1xf32> -> vector<4x8x1xf32>
    %92 = vector.broadcast %91 : vector<4x8x1xf32> to vector<4x8x16xf32>
    %93 = arith.mulf %88, %92 : vector<4x8x16xf32>
    %94 = arith.truncf %93 : vector<4x8x16xf32> to vector<4x8x16xbf16>
    "tpu.trace_start"() <{level = 10 : i32, message = "gts,gsd->gtd"}> : () -> ()
    %cst_28 = arith.constant dense<0.000000e+00> : vector<4x8x8xf32>
    %95 = tpu.matmul %94, %82, %cst_28 {dimension_numbers = #tpu.dot_dimension_numbers<[2], [1], [1], [2], [0, 0, 0, 1, 1, 2], [0], [0]>} : vector<4x8x16xbf16>, vector<4x16x8xbf16>, vector<4x8x8xf32> -> vector<4x8x8xf32>
    "tpu.trace_stop"() : () -> ()
    %96 = arith.truncf %95 : vector<4x8x8xf32> to vector<4x8x8xbf16>
    %97 = vector.shape_cast %96 : vector<4x8x8xbf16> to vector<1x4x8x8xbf16>
    %98 = tpu.transpose %97, [0, 2, 1, 3] : vector<1x4x8x8xbf16> -> vector<1x8x4x8xbf16>
    %99 = vector.shape_cast %98 : vector<1x8x4x8xbf16> to vector<8x32xbf16>
    %c0_29 = arith.constant 0 : index
    %c0_30 = arith.constant 0 : index
    %100 = vector.load %arg7[%c0_29, %c0_30] : memref<32x32xbf16, #tpu.memory_space<vmem>>, vector<32x32xbf16>
    %cst_31 = arith.constant dense<0.000000e+00> : vector<8x32xf32>
    %101 = tpu.matmul %99, %100, %cst_31 {dimension_numbers = #tpu.dot_dimension_numbers<[1], [0], [0], [1], [0, 0, 1, 1], [], []>} : vector<8x32xbf16>, vector<32x32xbf16>, vector<8x32xf32> -> vector<8x32xf32>
    %102 = vector.broadcast %12 : vector<1x32xf32> to vector<8x32xf32>
    %103 = arith.addf %101, %102 : vector<8x32xf32>
    %104 = vector.shape_cast %103 : vector<8x32xf32> to vector<1x8x32xf32>
    %c0_32 = arith.constant 0 : index
    %c0_33 = arith.constant 0 : index
    %c0_34 = arith.constant 0 : index
    %105 = vector.load %arg8[%c0_32, %c0_33, %c0_34] : memref<1x8x32xf32, #tpu.memory_space<vmem>>, vector<1x8x32xf32>
    tpu.vector_store %arg8[%c0_32, %c0_33, %c0_34], %104 {strides = array<i32>} : memref<1x8x32xf32, #tpu.memory_space<vmem>>, vector<1x8x32xf32>,
    return
  }
  func.func @transform_0(%arg0: i32) -> (i32, i32, i32) {
    %c0_i32 = arith.constant 0 : i32
    %c0_i32_0 = arith.constant 0 : i32
    %c0_i32_1 = arith.constant 0 : i32
    return %arg0, %c0_i32, %c0_i32_0 : i32, i32, i32
  }
  func.func @transform_1(%arg0: i32) -> (i32, i32, i32) {
    %c0_i32 = arith.constant 0 : i32
    %c0_i32_0 = arith.constant 0 : i32
    %c0_i32_1 = arith.constant 0 : i32
    return %arg0, %c0_i32, %c0_i32_0 : i32, i32, i32
  }
  func.func @transform_2(%arg0: i32) -> (i32, i32) {
    %c0_i32 = arith.constant 0 : i32
    %c0_i32_0 = arith.constant 0 : i32
    %c0_i32_1 = arith.constant 0 : i32
    return %c0_i32, %c0_i32_0 : i32, i32
  }
  func.func @transform_3(%arg0: i32) -> (i32, i32) {
    %c0_i32 = arith.constant 0 : i32
    %c0_i32_0 = arith.constant 0 : i32
    %c0_i32_1 = arith.constant 0 : i32
    return %c0_i32, %c0_i32_0 : i32, i32
  }
  func.func @transform_4(%arg0: i32) -> (i32, i32) {
    %c0_i32 = arith.constant 0 : i32
    %c0_i32_0 = arith.constant 0 : i32
    %c0_i32_1 = arith.constant 0 : i32
    return %c0_i32, %c0_i32_0 : i32, i32
  }
  func.func @transform_5(%arg0: i32) -> (i32, i32) {
    %c0_i32 = arith.constant 0 : i32
    %c0_i32_0 = arith.constant 0 : i32
    %c0_i32_1 = arith.constant 0 : i32
    return %c0_i32, %c0_i32_0 : i32, i32
  }
  func.func @transform_6(%arg0: i32) -> (i32, i32) {
    %c0_i32 = arith.constant 0 : i32
    %c0_i32_0 = arith.constant 0 : i32
    %c0_i32_1 = arith.constant 0 : i32
    return %c0_i32, %c0_i32_0 : i32, i32
  }
  func.func @transform_7(%arg0: i32) -> (i32, i32, i32) {
    %c0_i32 = arith.constant 0 : i32
    %c0_i32_0 = arith.constant 0 : i32
    %c0_i32_1 = arith.constant 0 : i32
    return %arg0, %c0_i32, %c0_i32_0 : i32, i32, i32
  }
}

module attributes {stable_mosaic.version = 11 : i64} {
  func.func @kernel(%arg0: i32, %arg1: memref<1x8x32xf32, #tpu.memory_space<vmem>>, %arg2: memref<1x16x32xf32, #tpu.memory_space<vmem>>, %arg3: memref<8x32xf32, #tpu.memory_space<vmem>>, %arg4: memref<32x32xbf16, #tpu.memory_space<vmem>>, %arg5: memref<32x32xbf16, #tpu.memory_space<vmem>>, %arg6: memref<32x32xbf16, #tpu.memory_space<vmem>>, %arg7: memref<32x32xbf16, #tpu.memory_space<vmem>>, %arg8: memref<1x8x32xf32, #tpu.memory_space<vmem>>) attributes {dimension_semantics = [#tpu.dimension_semantics<parallel>], iteration_bounds = array<i64: 2>, scalar_prefetch = 0 : i64, scratch_operands = 0 : i64, tpu.core_type = #tpu.core_type<tc>, window_params = [{transform_indices = @transform_0, window_bounds = array<i64: 1, 8, 32>}, {transform_indices = @transform_1, window_bounds = array<i64: 1, 16, 32>}, {pipeline_mode = #tpu.pipeline_mode<synchronous>, transform_indices = @transform_2, window_bounds = array<i64: 8, 32>}, {pipeline_mode = #tpu.pipeline_mode<synchronous>, transform_indices = @transform_3, window_bounds = array<i64: 32, 32>}, {pipeline_mode = #tpu.pipeline_mode<synchronous>, transform_indices = @transform_4, window_bounds = array<i64: 32, 32>}, {pipeline_mode = #tpu.pipeline_mode<synchronous>, transform_indices = @transform_5, window_bounds = array<i64: 32, 32>}, {pipeline_mode = #tpu.pipeline_mode<synchronous>, transform_indices = @transform_6, window_bounds = array<i64: 32, 32>}, {transform_indices = @transform_7, window_bounds = array<i64: 1, 8, 32>}]} {
    %c0 = arith.constant 0 : index
    %c0_0 = arith.constant 0 : index
    %c0_1 = arith.constant 0 : index
    %0 = vector.load %arg1[%c0, %c0_0, %c0_1] : memref<1x8x32xf32, #tpu.memory_space<vmem>>, vector<1x8x32xf32>
    %1 = vector.shape_cast %0 : vector<1x8x32xf32> to vector<8x32xf32>
    %c0_2 = arith.constant 0 : index
    %c0_3 = arith.constant 0 : index
    %c0_4 = arith.constant 0 : index
    %2 = vector.load %arg2[%c0_2, %c0_3, %c0_4] : memref<1x16x32xf32, #tpu.memory_space<vmem>>, vector<1x16x32xf32>
    %3 = vector.shape_cast %2 : vector<1x16x32xf32> to vector<16x32xf32>
    %c0_5 = arith.constant 0 : index
    %c0_6 = arith.constant 0 : index
    %4 = vector.load %arg3[%c0_5, %c0_6] : memref<8x32xf32, #tpu.memory_space<vmem>>, vector<8x32xf32>
    %5 = vector.extract_strided_slice %4 {offsets = [0, 0], sizes = [1, 32], strides = [1, 1]} : vector<8x32xf32> to vector<1x32xf32>
    %6 = vector.extract_strided_slice %4 {offsets = [1, 0], sizes = [1, 32], strides = [1, 1]} : vector<8x32xf32> to vector<1x32xf32>
    %7 = vector.extract_strided_slice %4 {offsets = [2, 0], sizes = [1, 32], strides = [1, 1]} : vector<8x32xf32> to vector<1x32xf32>
    %8 = vector.extract_strided_slice %4 {offsets = [3, 0], sizes = [1, 32], strides = [1, 1]} : vector<8x32xf32> to vector<1x32xf32>
    %9 = vector.extract_strided_slice %4 {offsets = [4, 0], sizes = [1, 32], strides = [1, 1]} : vector<8x32xf32> to vector<1x32xf32>
    %10 = vector.extract_strided_slice %4 {offsets = [5, 0], sizes = [1, 32], strides = [1, 1]} : vector<8x32xf32> to vector<1x32xf32>
    %11 = vector.extract_strided_slice %4 {offsets = [6, 0], sizes = [1, 32], strides = [1, 1]} : vector<8x32xf32> to vector<1x32xf32>
    %12 = vector.extract_strided_slice %4 {offsets = [7, 0], sizes = [1, 32], strides = [1, 1]} : vector<8x32xf32> to vector<1x32xf32>
    %cst = arith.constant dense<0.000000e+00> : vector<8xf32>
    %13 = vector.multi_reduction <add>, %1, %cst [1] : vector<8x32xf32> to vector<8xf32>
    %14 = vector.shape_cast %13 : vector<8xf32> to vector<8x1xf32>
    %cst_7 = arith.constant 3.200000e+01 : f32
    %15 = vector.broadcast %cst_7 : f32 to vector<8x1xf32>
    %16 = arith.divf %14, %15 : vector<8x1xf32>
    %17 = vector.broadcast %16 : vector<8x1xf32> to vector<8x32xf32>
    %18 = arith.subf %1, %17 : vector<8x32xf32>
    %19 = arith.mulf %18, %18 : vector<8x32xf32>
    %cst_8 = arith.constant dense<0.000000e+00> : vector<8xf32>
    %20 = vector.multi_reduction <add>, %19, %cst_8 [1] : vector<8x32xf32> to vector<8xf32>
    %21 = vector.shape_cast %20 : vector<8xf32> to vector<8x1xf32>
    %cst_9 = arith.constant 3.200000e+01 : f32
    %22 = vector.broadcast %cst_9 : f32 to vector<8x1xf32>
    %23 = arith.divf %21, %22 : vector<8x1xf32>
    %24 = vector.broadcast %16 : vector<8x1xf32> to vector<8x32xf32>
    %25 = arith.subf %1, %24 : vector<8x32xf32>
    %cst_10 = arith.constant 9.99999974E-6 : f32
    %26 = vector.broadcast %cst_10 : f32 to vector<8x1xf32>
    %27 = arith.addf %23, %26 : vector<8x1xf32>
    %28 = math.rsqrt %27 : vector<8x1xf32>
    %29 = vector.broadcast %28 : vector<8x1xf32> to vector<8x32xf32>
    %30 = arith.mulf %25, %29 : vector<8x32xf32>
    %31 = vector.broadcast %5 : vector<1x32xf32> to vector<8x32xf32>
    %32 = arith.mulf %30, %31 : vector<8x32xf32>
    %33 = vector.broadcast %6 : vector<1x32xf32> to vector<8x32xf32>
    %34 = arith.addf %32, %33 : vector<8x32xf32>
    %35 = arith.truncf %34 : vector<8x32xf32> to vector<8x32xbf16>
    %cst_11 = arith.constant dense<0.000000e+00> : vector<16xf32>
    %36 = vector.multi_reduction <add>, %3, %cst_11 [1] : vector<16x32xf32> to vector<16xf32>
    %37 = vector.shape_cast %36 : vector<16xf32> to vector<16x1xf32>
    %cst_12 = arith.constant 3.200000e+01 : f32
    %38 = vector.broadcast %cst_12 : f32 to vector<16x1xf32>
    %39 = arith.divf %37, %38 : vector<16x1xf32>
    %40 = vector.broadcast %39 : vector<16x1xf32> to vector<16x32xf32>
    %41 = arith.subf %3, %40 : vector<16x32xf32>
    %42 = arith.mulf %41, %41 : vector<16x32xf32>
    %cst_13 = arith.constant dense<0.000000e+00> : vector<16xf32>
    %43 = vector.multi_reduction <add>, %42, %cst_13 [1] : vector<16x32xf32> to vector<16xf32>
    %44 = vector.shape_cast %43 : vector<16xf32> to vector<16x1xf32>
    %cst_14 = arith.constant 3.200000e+01 : f32
    %45 = vector.broadcast %cst_14 : f32 to vector<16x1xf32>
    %46 = arith.divf %44, %45 : vector<16x1xf32>
    %47 = vector.broadcast %39 : vector<16x1xf32> to vector<16x32xf32>
    %48 = arith.subf %3, %47 : vector<16x32xf32>
    %cst_15 = arith.constant 9.99999974E-6 : f32
    %49 = vector.broadcast %cst_15 : f32 to vector<16x1xf32>
    %50 = arith.addf %46, %49 : vector<16x1xf32>
    %51 = math.rsqrt %50 : vector<16x1xf32>
    %52 = vector.broadcast %51 : vector<16x1xf32> to vector<16x32xf32>
    %53 = arith.mulf %48, %52 : vector<16x32xf32>
    %54 = vector.broadcast %7 : vector<1x32xf32> to vector<16x32xf32>
    %55 = arith.mulf %53, %54 : vector<16x32xf32>
    %56 = vector.broadcast %8 : vector<1x32xf32> to vector<16x32xf32>
    %57 = arith.addf %55, %56 : vector<16x32xf32>
    %58 = arith.truncf %57 : vector<16x32xf32> to vector<16x32xbf16>
    %c0_16 = arith.constant 0 : index
    %c0_17 = arith.constant 0 : index
    %59 = vector.load %arg4[%c0_16, %c0_17] : memref<32x32xbf16, #tpu.memory_space<vmem>>, vector<32x32xbf16>
    %cst_18 = arith.constant dense<0.000000e+00> : vector<8x32xf32>
    %60 = tpu.matmul %35, %59, %cst_18 {dimension_numbers = #tpu.dot_dimension_numbers<[1], [0], [0], [1], [0, 0, 1, 1], [], []>} : vector<8x32xbf16>, vector<32x32xbf16>, vector<8x32xf32> -> vector<8x32xf32>
    %61 = vector.broadcast %9 : vector<1x32xf32> to vector<8x32xf32>
    %62 = arith.addf %60, %61 : vector<8x32xf32>
    %63 = arith.truncf %62 : vector<8x32xf32> to vector<8x32xbf16>
    %c0_19 = arith.constant 0 : index
    %c0_20 = arith.constant 0 : index
    %64 = vector.load %arg5[%c0_19, %c0_20] : memref<32x32xbf16, #tpu.memory_space<vmem>>, vector<32x32xbf16>
    %cst_21 = arith.constant dense<0.000000e+00> : vector<16x32xf32>
    %65 = tpu.matmul %58, %64, %cst_21 {dimension_numbers = #tpu.dot_dimension_numbers<[1], [0], [0], [1], [0, 0, 1, 1], [], []>} : vector<16x32xbf16>, vector<32x32xbf16>, vector<16x32xf32> -> vector<16x32xf32>
    %66 = vector.broadcast %10 : vector<1x32xf32> to vector<16x32xf32>
    %67 = arith.addf %65, %66 : vector<16x32xf32>
    %68 = arith.truncf %67 : vector<16x32xf32> to vector<16x32xbf16>
    %c0_22 = arith.constant 0 : index
    %c0_23 = arith.constant 0 : index
    %69 = vector.load %arg6[%c0_22, %c0_23] : memref<32x32xbf16, #tpu.memory_space<vmem>>, vector<32x32xbf16>
    %cst_24 = arith.constant dense<0.000000e+00> : vector<16x32xf32>
    %70 = tpu.matmul %58, %69, %cst_24 {dimension_numbers = #tpu.dot_dimension_numbers<[1], [0], [0], [1], [0, 0, 1, 1], [], []>} : vector<16x32xbf16>, vector<32x32xbf16>, vector<16x32xf32> -> vector<16x32xf32>
    %71 = vector.broadcast %11 : vector<1x32xf32> to vector<16x32xf32>
    %72 = arith.addf %70, %71 : vector<16x32xf32>
    %73 = arith.truncf %72 : vector<16x32xf32> to vector<16x32xbf16>
    %74 = vector.shape_cast %63 : vector<8x32xbf16> to vector<1x8x4x8xbf16>
    %75 = tpu.transpose %74, [0, 2, 1, 3] : vector<1x8x4x8xbf16> -> vector<1x4x8x8xbf16>
    %76 = vector.shape_cast %75 : vector<1x4x8x8xbf16> to vector<4x8x8xbf16>
    %77 = vector.shape_cast %68 : vector<16x32xbf16> to vector<1x16x4x8xbf16>
    %78 = tpu.transpose %77, [0, 2, 1, 3] : vector<1x16x4x8xbf16> -> vector<1x4x16x8xbf16>
    %79 = vector.shape_cast %78 : vector<1x4x16x8xbf16> to vector<4x16x8xbf16>
    %80 = vector.shape_cast %73 : vector<16x32xbf16> to vector<1x16x4x8xbf16>
    %81 = tpu.transpose %80, [0, 2, 1, 3] : vector<1x16x4x8xbf16> -> vector<1x4x16x8xbf16>
    %82 = vector.shape_cast %81 : vector<1x4x16x8xbf16> to vector<4x16x8xbf16>
    "tpu.trace_start"() <{level = 10 : i32, message = "gtd,gsd->gts"}> : () -> ()
    %cst_25 = arith.constant dense<0.000000e+00> : vector<4x8x16xf32>
    %83 = tpu.matmul %76, %79, %cst_25 {dimension_numbers = #tpu.dot_dimension_numbers<[2], [2], [1], [1], [0, 0, 0, 1, 1, 1], [0], [0]>} : vector<4x8x8xbf16>, vector<4x16x8xbf16>, vector<4x8x16xf32> -> vector<4x8x16xf32>
    "tpu.trace_stop"() : () -> ()
    %cst_26 = arith.constant dense<0xFF800000> : vector<4x8xf32>
    %84 = vector.multi_reduction <maximumf>, %83, %cst_26 [2] : vector<4x8x16xf32> to vector<4x8xf32>
    %85 = vector.shape_cast %84 : vector<4x8xf32> to vector<4x8x1xf32>
    %86 = vector.broadcast %85 : vector<4x8x1xf32> to vector<4x8x16xf32>
    %87 = arith.subf %83, %86 : vector<4x8x16xf32>
    %88 = math.exp %87 : vector<4x8x16xf32>
    %cst_27 = arith.constant dense<0.000000e+00> : vector<4x8xf32>
    %89 = vector.multi_reduction <add>, %88, %cst_27 [2] : vector<4x8x16xf32> to vector<4x8xf32>
    %90 = vector.shape_cast %89 : vector<4x8xf32> to vector<4x8x1xf32>
    %91 = tpu.reciprocal %90 {approx = true} : vector<4x8x1xf32> -> vector<4x8x1xf32>
    %92 = vector.broadcast %91 : vector<4x8x1xf32> to vector<4x8x16xf32>
    %93 = arith.mulf %88, %92 : vector<4x8x16xf32>
    %94 = arith.truncf %93 : vector<4x8x16xf32> to vector<4x8x16xbf16>
    "tpu.trace_start"() <{level = 10 : i32, message = "gts,gsd->gtd"}> : () -> ()
    %cst_28 = arith.constant dense<0.000000e+00> : vector<4x8x8xf32>
    %95 = tpu.matmul %94, %82, %cst_28 {dimension_numbers = #tpu.dot_dimension_numbers<[2], [1], [1], [2], [0, 0, 0, 1, 1, 2], [0], [0]>} : vector<4x8x16xbf16>, vector<4x16x8xbf16>, vector<4x8x8xf32> -> vector<4x8x8xf32>
    "tpu.trace_stop"() : () -> ()
    %96 = arith.truncf %95 : vector<4x8x8xf32> to vector<4x8x8xbf16>
    %97 = vector.shape_cast %96 : vector<4x8x8xbf16> to vector<1x4x8x8xbf16>
    %98 = tpu.transpose %97, [0, 2, 1, 3] : vector<1x4x8x8xbf16> -> vector<1x8x4x8xbf16>
    %99 = vector.shape_cast %98 : vector<1x8x4x8xbf16> to vector<8x32xbf16>
    %c0_29 = arith.constant 0 : index
    %c0_30 = arith.constant 0 : index
    %100 = vector.load %arg7[%c0_29, %c0_30] : memref<32x32xbf16, #tpu.memory_space<vmem>>, vector<32x32xbf16>
    %cst_31 = arith.constant dense<0.000000e+00> : vector<8x32xf32>
    %101 = tpu.matmul %99, %100, %cst_31 {dimension_numbers = #tpu.dot_dimension_numbers<[1], [0], [0], [1], [0, 0, 1, 1], [], []>} : vector<8x32xbf16>, vector<32x32xbf16>, vector<8x32xf32> -> vector<8x32xf32>
    %102 = vector.broadcast %12 : vector<1x32xf32> to vector<8x32xf32>
    %103 = arith.addf %101, %102 : vector<8x32xf32>
    %104 = vector.shape_cast %103 : vector<8x32xf32> to vector<1x8x32xf32>
    %c0_32 = arith.constant 0 : index
    %c0_33 = arith.constant 0 : index
    %c0_34 = arith.constant 0 : index
    %105 = vector.load %arg8[%c0_32, %c0_33, %c0_34] : memref<1x8x32xf32, #tpu.memory_space<vmem>>, vector<1x8x32xf32>
    tpu.vector_store %arg8[%c0_32, %c0_33, %c0_34], %104 {strides = array<i32>} : memref<1x8x32xf32, #tpu.memory_space<vmem>>, vector<1x8x32xf32>,
    return
  }
  func.func @transform_0(%arg0: i32) -> (i32, i32, i32) {
    %c0_i32 = arith.constant 0 : i32
    %c0_i32_0 = arith.constant 0 : i32
    %c0_i32_1 = arith.constant 0 : i32
    return %arg0, %c0_i32, %c0_i32_0 : i32, i32, i32
  }
  func.func @transform_1(%arg0: i32) -> (i32, i32, i32) {
    %c0_i32 = arith.constant 0 : i32
    %c0_i32_0 = arith.constant 0 : i32
    %c0_i32_1 = arith.constant 0 : i32
    return %arg0, %c0_i32, %c0_i32_0 : i32, i32, i32
  }
  func.func @transform_2(%arg0: i32) -> (i32, i32) {
    %c0_i32 = arith.constant 0 : i32
    %c0_i32_0 = arith.constant 0 : i32
    %c0_i32_1 = arith.constant 0 : i32
    return %c0_i32, %c0_i32_0 : i32, i32
  }
  func.func @transform_3(%arg0: i32) -> (i32, i32) {
    %c0_i32 = arith.constant 0 : i32
    %c0_i32_0 = arith.constant 0 : i32
    %c0_i32_1 = arith.constant 0 : i32
    return %c0_i32, %c0_i32_0 : i32, i32
  }
  func.func @transform_4(%arg0: i32) -> (i32, i32) {
    %c0_i32 = arith.constant 0 : i32
    %c0_i32_0 = arith.constant 0 : i32
    %c0_i32_1 = arith.constant 0 : i32
    return %c0_i32, %c0_i32_0 : i32, i32
  }
  func.func @transform_5(%arg0: i32) -> (i32, i32) {
    %c0_i32 = arith.constant 0 : i32
    %c0_i32_0 = arith.constant 0 : i32
    %c0_i32_1 = arith.constant 0 : i32
    return %c0_i32, %c0_i32_0 : i32, i32
  }
  func.func @transform_6(%arg0: i32) -> (i32, i32) {
    %c0_i32 = arith.constant 0 : i32
    %c0_i32_0 = arith.constant 0 : i32
    %c0_i32_1 = arith.constant 0 : i32
    return %c0_i32, %c0_i32_0 : i32, i32
  }
  func.func @transform_7(%arg0: i32) -> (i32, i32, i32) {
    %c0_i32 = arith.constant 0 : i32
    %c0_i32_0 = arith.constant 0 : i32
    %c0_i32_1 = arith.constant 0 : i32
    return %arg0, %c0_i32, %c0_i32_0 : i32, i32, i32
  }
}

</mosaic_0001>

<llo_original>
// kernel: tpu_custom_call.1
$region0: #{tpu_custom_call.1}
  #allocation0 [shape = 'u32[]', space=smem, size = 0x4, offset = 0x4, fixed_abs, tag = 'smem constant byte address 0x4 - core index']
  #allocation1 [shape = 'u32[72,128]{1,0:T(1,128)}', space=vmem, size = 0x9000, scoped, tag = 'internal scratch']
  %s0 = inlined_call_operand.hbm [shape: f32[2,8,32], index: 0, kind: input, shape index: {}]
  %s1 = inlined_call_operand.hbm [shape: f32[2,16,32], index: 1, kind: input, shape index: {}]
  %s2 = inlined_call_operand.hbm [shape: f32[8,32], index: 2, kind: input, shape index: {}]
  %s3 = inlined_call_operand.hbm [shape: bf16[32,32], index: 3, kind: input, shape index: {}]
  %s4 = inlined_call_operand.hbm [shape: bf16[32,32], index: 4, kind: input, shape index: {}]
  %s5 = inlined_call_operand.hbm [shape: bf16[32,32], index: 5, kind: input, shape index: {}]
  %s6 = inlined_call_operand.hbm [shape: bf16[32,32], index: 6, kind: input, shape index: {}]
  %s7 = inlined_call_operand.hbm [shape: f32[2,8,32], index: 7, kind: output, shape index: {}]
  %s8 = sld [smem:[#allocation0]]
  $region89: #{tpu_custom_call.1} parent=0
    _
  %s10 = ssub.s32 1, %s8
  %s11 = scalar_select 0, %s10, %s8
  $region1: #{tpu_custom_call.1} parent=0
    #allocation2 [shape = 'u8[8192]{0}', space=vmem, size = 0x2000, scoped, tag = 'input window, operand 0']
    #allocation3 [shape = 's32[2]{0}', space=sflag, size = 0x8, scoped, tag = 'scoped memory for tpu_custom_call.1']
    #allocation4 [shape = 's32[2]{0}', space=sflag, size = 0x8, scoped, tag = 'scoped memory for tpu_custom_call.1']
    #allocation5 [shape = 'u8[16384]{0}', space=vmem, size = 0x4000, scoped, tag = 'input window, operand 1']
    #allocation6 [shape = 's32[2]{0}', space=sflag, size = 0x8, scoped, tag = 'scoped memory for tpu_custom_call.1']
    #allocation7 [shape = 'u8[4096]{0}', space=vmem, size = 0x1000, scoped, tag = 'input window, operand 2, single buffered']
    #allocation8 [shape = 'u8[8192]{0}', space=vmem, size = 0x2000, scoped, tag = 'input window, operand 3, single buffered']
    #allocation9 [shape = 's32[1]{0}', space=sflag, size = 0x4, scoped, tag = 'scoped memory for tpu_custom_call.1']
    #allocation10 [shape = 'u8[8192]{0}', space=vmem, size = 0x2000, scoped, tag = 'input window, operand 4, single buffered']
    #allocation11 [shape = 'u8[8192]{0}', space=vmem, size = 0x2000, scoped, tag = 'input window, operand 5, single buffered']
    #allocation12 [shape = 's32[1]{0}', space=sflag, size = 0x4, scoped, tag = 'scoped memory for tpu_custom_call.1']
    #allocation13 [shape = 'u8[8192]{0}', space=vmem, size = 0x2000, scoped, tag = 'input window, operand 6, single buffered']
    #allocation14 [shape = 'u8[8192]{0}', space=vmem, size = 0x2000, scoped, tag = 'output window, operand 0']
    %12 = vsyncpa [#allocation3], 0
    %s13 = scalar_lea.sflag [#allocation3], 1
    %14 = vsyncpa %s13, 0
    %15 = vsyncpa [#allocation6], 0
    %s16 = scalar_lea.sflag [#allocation6], 1
    %17 = vsyncpa %s16, 0
    %18 = vsyncpa [#allocation9], 0
    %19 = vsyncpa [#allocation12], 0
    %20 = vsyncpa [#allocation4], 0
    %s21 = scalar_lea.sflag [#allocation4], 1
    %22 = vsyncpa %s21, 0
    loop: start=0, step=1, limit=4
    $region2: #{tpu_custom_call.1} parent=1 // loop_pre_header
      _
    $region3: #{tpu_custom_call.1} parent=1 // loop_header
      %s24 = sphi 0, %s28
      %p25 = scmp.ge.s32.totalorder %s24, 4
      %s34 = sphi 0, %s36
      %s37 = sphi 0, %s34
      %s38 = sphi 0, %s37
      %s54 = sphi 0, %s38
      %s60 = sphi 0, %s62
      %s63 = sphi 0, %s60
      %s64 = sphi 0, %s63
      %s80 = sphi 0, %s64
      %s84 = sphi 0, %s84
      %s86 = sphi 0, %s84
      %s87 = sphi 0, %s86
      %s101 = sphi 0, %s87
      %s105 = sphi 0, %s105
      %s107 = sphi 0, %s105
      %s108 = sphi 0, %s107
      %s122 = sphi 0, %s108
      %s126 = sphi 0, %s126
      %s128 = sphi 0, %s126
      %s129 = sphi 0, %s128
      %s143 = sphi 0, %s129
      %s147 = sphi 0, %s147
      %s149 = sphi 0, %s147
      %s150 = sphi 0, %s149
      %s164 = sphi 0, %s150
      %s168 = sphi 0, %s168
      %s170 = sphi 0, %s168
      %s171 = sphi 0, %s170
      %s185 = sphi 0, %s171
      %s191 = sphi 0, %s193
      %s194 = sphi 0, %s191
      %s195 = sphi 0, %s194
      %s211 = sphi 0, %s195
    $region4: #{tpu_custom_call.1} parent=1 // loop_header_branch
      %27 = sbr.rel (%p25) target = $region8
    $region5: #{tpu_custom_call.1} parent=1 // loop_body
      %s29 = ssub.s32 %s24, 1
      %s30 = ssub.s32 %s24, 2
      %s31 = sadd.s32 %s24, 1
      %s32 = ssub.s32 %s24, %s31
      %p33 = scmp.eq.s32.totalorder %s32, 0
      %s35 = sadd.s32 %s34, 1
      %s36 = scalar_select %p33, %s34, %s35
      %p39 = pneg %p33
      %p40 = scmp.eq.s32.totalorder %s24, 1
      %p41 = por %p39, %p40
      %p42 = scmp.ne.s32.totalorder %s34, %s37
      %p43 = scmp.eq.s32.totalorder %s24, 0
      %p44 = por %p42, %p43
      %p45 = scmp.ne.s32.totalorder %s34, %s37
      %p46 = scmp.eq.s32.totalorder %s29, 1
      %p47 = por %p45, %p46
      %p48 = scmp.ne.s32.totalorder %s37, %s38
      %p49 = scmp.eq.s32.totalorder %s29, 0
      %p50 = por %p48, %p49
      %p51 = scmp.ne.s32.totalorder %s37, %s38
      %p52 = scmp.eq.s32.totalorder %s30, 1
      %p53 = por %p51, %p52
      %p55 = scmp.ne.s32.totalorder %s38, %s54
      %p56 = scmp.eq.s32.totalorder %s30, 0
      %p57 = por %p55, %p56
      %s58 = ssub.s32 %s24, %s31
      %p59 = scmp.eq.s32.totalorder %s58, 0
      %s61 = sadd.s32 %s60, 1
      %s62 = scalar_select %p59, %s60, %s61
      %p65 = pneg %p59
      %p66 = scmp.eq.s32.totalorder %s24, 1
      %p67 = por %p65, %p66
      %p68 = scmp.ne.s32.totalorder %s60, %s63
      %p69 = scmp.eq.s32.totalorder %s24, 0
      %p70 = por %p68, %p69
      %p71 = scmp.ne.s32.totalorder %s60, %s63
      %p72 = scmp.eq.s32.totalorder %s29, 1
      %p73 = por %p71, %p72
      %p74 = scmp.ne.s32.totalorder %s63, %s64
      %p75 = scmp.eq.s32.totalorder %s29, 0
      %p76 = por %p74, %p75
      %p77 = scmp.ne.s32.totalorder %s63, %s64
      %p78 = scmp.eq.s32.totalorder %s30, 1
      %p79 = por %p77, %p78
      %p81 = scmp.ne.s32.totalorder %s64, %s80
      %p82 = scmp.eq.s32.totalorder %s30, 0
      %p83 = por %p81, %p82
      %s85 = sadd.s32 %s84, 1
      %p88 = scmp.eq.s32.totalorder %s24, 1
      %p89 = scmp.ne.s32.totalorder %s84, %s86
      %p90 = scmp.eq.s32.totalorder %s24, 0
      %p91 = por %p89, %p90
      %p92 = scmp.ne.s32.totalorder %s84, %s86
      %p93 = scmp.eq.s32.totalorder %s29, 1
      %p94 = por %p92, %p93
      %p95 = scmp.ne.s32.totalorder %s86, %s87
      %p96 = scmp.eq.s32.totalorder %s29, 0
      %p97 = por %p95, %p96
      %p98 = scmp.ne.s32.totalorder %s86, %s87
      %p99 = scmp.eq.s32.totalorder %s30, 1
      %p100 = por %p98, %p99
      %p102 = scmp.ne.s32.totalorder %s87, %s101
      %p103 = scmp.eq.s32.totalorder %s30, 0
      %p104 = por %p102, %p103
      %s106 = sadd.s32 %s105, 1
      %p109 = scmp.eq.s32.totalorder %s24, 1
      %p110 = scmp.ne.s32.totalorder %s105, %s107
      %p111 = scmp.eq.s32.totalorder %s24, 0
      %p112 = por %p110, %p111
      %p113 = scmp.ne.s32.totalorder %s105, %s107
      %p114 = scmp.eq.s32.totalorder %s29, 1
      %p115 = por %p113, %p114
      %p116 = scmp.ne.s32.totalorder %s107, %s108
      %p117 = scmp.eq.s32.totalorder %s29, 0
      %p118 = por %p116, %p117
      %p119 = scmp.ne.s32.totalorder %s107, %s108
      %p120 = scmp.eq.s32.totalorder %s30, 1
      %p121 = por %p119, %p120
      %p123 = scmp.ne.s32.totalorder %s108, %s122
      %p124 = scmp.eq.s32.totalorder %s30, 0
      %p125 = por %p123, %p124
      %s127 = sadd.s32 %s126, 1
      %p130 = scmp.eq.s32.totalorder %s24, 1
      %p131 = scmp.ne.s32.totalorder %s126, %s128
      %p132 = scmp.eq.s32.totalorder %s24, 0
      %p133 = por %p131, %p132
      %p134 = scmp.ne.s32.totalorder %s126, %s128
      %p135 = scmp.eq.s32.totalorder %s29, 1
      %p136 = por %p134, %p135
      %p137 = scmp.ne.s32.totalorder %s128, %s129
      %p138 = scmp.eq.s32.totalorder %s29, 0
      %p139 = por %p137, %p138
      %p140 = scmp.ne.s32.totalorder %s128, %s129
      %p141 = scmp.eq.s32.totalorder %s30, 1
      %p142 = por %p140, %p141
      %p144 = scmp.ne.s32.totalorder %s129, %s143
      %p145 = scmp.eq.s32.totalorder %s30, 0
      %p146 = por %p144, %p145
      %s148 = sadd.s32 %s147, 1
      %p151 = scmp.eq.s32.totalorder %s24, 1
      %p152 = scmp.ne.s32.totalorder %s147, %s149
      %p153 = scmp.eq.s32.totalorder %s24, 0
      %p154 = por %p152, %p153
      %p155 = scmp.ne.s32.totalorder %s147, %s149
      %p156 = scmp.eq.s32.totalorder %s29, 1
      %p157 = por %p155, %p156
      %p158 = scmp.ne.s32.totalorder %s149, %s150
      %p159 = scmp.eq.s32.totalorder %s29, 0
      %p160 = por %p158, %p159
      %p161 = scmp.ne.s32.totalorder %s149, %s150
      %p162 = scmp.eq.s32.totalorder %s30, 1
      %p163 = por %p161, %p162
      %p165 = scmp.ne.s32.totalorder %s150, %s164
      %p166 = scmp.eq.s32.totalorder %s30, 0
      %p167 = por %p165, %p166
      %s169 = sadd.s32 %s168, 1
      %p172 = scmp.eq.s32.totalorder %s24, 1
      %p173 = scmp.ne.s32.totalorder %s168, %s170
      %p174 = scmp.eq.s32.totalorder %s24, 0
      %p175 = por %p173, %p174
      %p176 = scmp.ne.s32.totalorder %s168, %s170
      %p177 = scmp.eq.s32.totalorder %s29, 1
      %p178 = por %p176, %p177
      %p179 = scmp.ne.s32.totalorder %s170, %s171
      %p180 = scmp.eq.s32.totalorder %s29, 0
      %p181 = por %p179, %p180
      %p182 = scmp.ne.s32.totalorder %s170, %s171
      %p183 = scmp.eq.s32.totalorder %s30, 1
      %p184 = por %p182, %p183
      %p186 = scmp.ne.s32.totalorder %s171, %s185
      %p187 = scmp.eq.s32.totalorder %s30, 0
      %p188 = por %p186, %p187
      %s189 = ssub.s32 %s24, %s31
      %p190 = scmp.eq.s32.totalorder %s189, 0
      %s192 = sadd.s32 %s191, 1
      %s193 = scalar_select %p190, %s191, %s192
      %p196 = pneg %p190
      %p197 = scmp.eq.s32.totalorder %s24, 1
      %p198 = por %p196, %p197
      %p199 = scmp.ne.s32.totalorder %s191, %s194
      %p200 = scmp.eq.s32.totalorder %s24, 0
      %p201 = por %p199, %p200
      %p202 = scmp.ne.s32.totalorder %s191, %s194
      %p203 = scmp.eq.s32.totalorder %s29, 1
      %p204 = por %p202, %p203
      %p205 = scmp.ne.s32.totalorder %s194, %s195
      %p206 = scmp.eq.s32.totalorder %s29, 0
      %p207 = por %p205, %p206
      %p208 = scmp.ne.s32.totalorder %s194, %s195
      %p209 = scmp.eq.s32.totalorder %s30, 1
      %p210 = por %p208, %p209
      %p212 = scmp.ne.s32.totalorder %s195, %s211
      %p213 = scmp.eq.s32.totalorder %s30, 0
      %p214 = por %p212, %p213
      %p215 = scmp.le.s32.totalorder 1, %s24
      %p216 = scmp.lt.s32.totalorder %s24, 3
      %p217 = pnand %p215, %p216
      %p218 = pneg %p217
      // Predicated region
      $region9: #{tpu_custom_call.1} parent=5 // pred_check
        _
      $region10: #{tpu_custom_call.1} parent=5 // pred_check_branch
        %220 = sbr.rel (%p217) target = $region12
      $region11: #{tpu_custom_call.1} parent=5 // pred_region
        %s221 = ssub.s32 %s24, 1
        // Predicated region
        $region13: #{tpu_custom_call.1} parent=11 // pred_check
          %p222 = pneg %p97
        $region14: #{tpu_custom_call.1} parent=11 // pred_check_branch
          %224 = sbr.rel (%p222) target = $region16
        $region15: #{tpu_custom_call.1} parent=11 // pred_region
          %226 = vsyncadd [#allocation6], 0
          %s228 = sshll.u32 %s2, 4
          %s229 = int_to_ptr.hbm [resolvable:$true] %s228
          %s230 = sshll.u32 [#allocation7], 4
          %s231 = int_to_ptr.vmem [resolvable:$true] %s230
          %233 = dma.hbm_to_vmem [thread:$0]  %s229, 128, %s231, [#allocation6]
        $region16: #{tpu_custom_call.1} parent=11 // pred_fallthru
          _
        // Predicated region
        $region17: #{tpu_custom_call.1} parent=11 // pred_check
          %p234 = pneg %p118
        $region18: #{tpu_custom_call.1} parent=11 // pred_check_branch
          %236 = sbr.rel (%p234) target = $region20
        $region19: #{tpu_custom_call.1} parent=11 // pred_region
          %238 = vsyncadd [#allocation9], 0
          %s239 = sshll.u32 %s3, 4
          %s240 = int_to_ptr.hbm [resolvable:$true] %s239
          %s241 = sshll.u32 [#allocation8], 4
          %s242 = int_to_ptr.vmem [resolvable:$true] %s241
          %247 = dma.hbm_to_vmem [thread:$0]  %s240, 256, %s242, [#allocation9], 64, 64, 4
        $region20: #{tpu_custom_call.1} parent=11 // pred_fallthru
          _
        // Predicated region
        $region21: #{tpu_custom_call.1} parent=11 // pred_check
          %p248 = pneg %p139
        $region22: #{tpu_custom_call.1} parent=11 // pred_check_branch
          %250 = sbr.rel (%p248) target = $region24
        $region23: #{tpu_custom_call.1} parent=11 // pred_region
          %252 = vsyncadd [#allocation9], 0
          %s253 = sshll.u32 %s4, 4
          %s254 = int_to_ptr.hbm [resolvable:$true] %s253
          %s255 = sshll.u32 [#allocation10], 4
          %s256 = int_to_ptr.vmem [resolvable:$true] %s255
          %261 = dma.hbm_to_vmem [thread:$0]  %s254, 256, %s256, [#allocation9], 64, 64, 4
        $region24: #{tpu_custom_call.1} parent=11 // pred_fallthru
          _
        // Predicated region
        $region25: #{tpu_custom_call.1} parent=11 // pred_check
          %p262 = pneg %p160
        $region26: #{tpu_custom_call.1} parent=11 // pred_check_branch
          %264 = sbr.rel (%p262) target = $region28
        $region27: #{tpu_custom_call.1} parent=11 // pred_region
          %266 = vsyncadd [#allocation12], 0
          %s267 = sshll.u32 %s5, 4
          %s268 = int_to_ptr.hbm [resolvable:$true] %s267
          %s269 = sshll.u32 [#allocation11], 4
          %s270 = int_to_ptr.vmem [resolvable:$true] %s269
          %275 = dma.hbm_to_vmem [thread:$0]  %s268, 256, %s270, [#allocation12], 64, 64, 4
        $region28: #{tpu_custom_call.1} parent=11 // pred_fallthru
          _
        // Predicated region
        $region29: #{tpu_custom_call.1} parent=11 // pred_check
          %p276 = pneg %p181
        $region30: #{tpu_custom_call.1} parent=11 // pred_check_branch
          %278 = sbr.rel (%p276) target = $region32
        $region31: #{tpu_custom_call.1} parent=11 // pred_region
          %280 = vsyncadd [#allocation12], 0
          %s281 = sshll.u32 %s6, 4
          %s282 = int_to_ptr.hbm [resolvable:$true] %s281
          %s283 = sshll.u32 [#allocation13], 4
          %s284 = int_to_ptr.vmem [resolvable:$true] %s283
          %289 = dma.hbm_to_vmem [thread:$0]  %s282, 256, %s284, [#allocation12], 64, 64, 4
        $region32: #{tpu_custom_call.1} parent=11 // pred_fallthru
          _
      $region12: #{tpu_custom_call.1} parent=5 // pred_fallthru
        _
      %p290 = scmp.lt.s32.totalorder %s24, 2
      // Predicated region
      $region33: #{tpu_custom_call.1} parent=5 // pred_check
        %p291 = pneg %p290
      $region34: #{tpu_custom_call.1} parent=5 // pred_check_branch
        %293 = sbr.rel (%p291) target = $region36
      $region35: #{tpu_custom_call.1} parent=5 // pred_region
        // Predicated region
        $region37: #{tpu_custom_call.1} parent=35 // pred_check
          %p294 = pneg %p44
        $region38: #{tpu_custom_call.1} parent=35 // pred_check_branch
          %296 = sbr.rel (%p294) target = $region40
        $region39: #{tpu_custom_call.1} parent=35 // pred_region
          %s297 = sand.u32 %s34, 1
          %s298 = scalar_lea.sflag [#allocation3], %s297
          %s299 = sand.u32 %s34, 1
          %s300 = smul.addr %s299, 8
          %s301 = scalar_lea.vmem [#allocation2], %s300
          %303 = vsyncadd %s298, 0
          %s304 = smul.addr %s24, 8
          %s305 = scalar_lea.hbm %s0, %s304
          %s307 = sshll.u32 %s305, 4
          %s308 = int_to_ptr.hbm [resolvable:$true] %s307
          %s309 = sshll.u32 %s301, 4
          %s310 = int_to_ptr.vmem [resolvable:$true] %s309
          %312 = dma.hbm_to_vmem [thread:$0]  %s308, 128, %s310, %s298
        $region40: #{tpu_custom_call.1} parent=35 // pred_fallthru
          _
        // Predicated region
        $region41: #{tpu_custom_call.1} parent=35 // pred_check
          %p313 = pneg %p70
        $region42: #{tpu_custom_call.1} parent=35 // pred_check_branch
          %315 = sbr.rel (%p313) target = $region44
        $region43: #{tpu_custom_call.1} parent=35 // pred_region
          %s316 = sand.u32 %s24, 1
          %s317 = scalar_lea.sflag [#allocation6], %s316
          %s318 = sand.u32 %s60, 1
          %s319 = smul.addr %s318, 16
          %s320 = scalar_lea.vmem [#allocation5], %s319
          %322 = vsyncadd %s317, 0
          %s323 = smul.addr %s24, 2
          %s324 = smul.addr %s323, 8
          %s325 = scalar_lea.hbm %s1, %s324
          %s326 = sshll.u32 %s325, 4
          %s327 = int_to_ptr.hbm [resolvable:$true] %s326
          %s328 = sshll.u32 %s320, 4
          %s329 = int_to_ptr.vmem [resolvable:$true] %s328
          %334 = dma.hbm_to_vmem [thread:$0]  %s327, 256, %s329, %s317, 128, 128, 8
        $region44: #{tpu_custom_call.1} parent=35 // pred_fallthru
          _
      $region36: #{tpu_custom_call.1} parent=5 // pred_fallthru
        _
      %p335 = scmp.le.s32.totalorder 1, %s24
      %p336 = scmp.lt.s32.totalorder %s24, 3
      %p337 = pnand %p335, %p336
      %p338 = pneg %p337
      // Predicated region
      $region45: #{tpu_custom_call.1} parent=5 // pred_check
        _
      $region46: #{tpu_custom_call.1} parent=5 // pred_check_branch
        %340 = sbr.rel (%p337) target = $region48
      $region47: #{tpu_custom_call.1} parent=5 // pred_region
        %s341 = ssub.s32 %s24, 1
        %s342 = sand.u32 %s37, 1
        %s343 = scalar_lea.sflag [#allocation3], %s342
        %s344 = sand.u32 %s37, 1
        %s345 = smul.addr %s344, 8
        %s346 = scalar_lea.vmem [#allocation2], %s345
        // Predicated region
        $region49: #{tpu_custom_call.1} parent=47 // pred_check
          %p347 = pneg %p50
        $region50: #{tpu_custom_call.1} parent=47 // pred_check_branch
          %349 = sbr.rel (%p347) target = $region52
        $region51: #{tpu_custom_call.1} parent=47 // pred_region
          %351 = dma.done %s343, 128
        $region52: #{tpu_custom_call.1} parent=47 // pred_fallthru
          _
        %s352 = sand.u32 %s29, 1
        %s353 = scalar_lea.sflag [#allocation6], %s352
        %s354 = sand.u32 %s63, 1
        %s355 = smul.addr %s354, 16
        %s356 = scalar_lea.vmem [#allocation5], %s355
        // Predicated region
        $region53: #{tpu_custom_call.1} parent=47 // pred_check
          %p357 = pneg %p76
        $region54: #{tpu_custom_call.1} parent=47 // pred_check_branch
          %359 = sbr.rel (%p357) target = $region56
        $region55: #{tpu_custom_call.1} parent=47 // pred_region
          %361 = dma.done %s353, 256
        $region56: #{tpu_custom_call.1} parent=47 // pred_fallthru
          _
        // Predicated region
        $region57: #{tpu_custom_call.1} parent=47 // pred_check
          %p362 = pneg %p97
        $region58: #{tpu_custom_call.1} parent=47 // pred_check_branch
          %364 = sbr.rel (%p362) target = $region60
        $region59: #{tpu_custom_call.1} parent=47 // pred_region
          %366 = dma.done [#allocation6], 128
        $region60: #{tpu_custom_call.1} parent=47 // pred_fallthru
          _
        // Predicated region
        $region61: #{tpu_custom_call.1} parent=47 // pred_check
          %p367 = pneg %p118
        $region62: #{tpu_custom_call.1} parent=47 // pred_check_branch
          %369 = sbr.rel (%p367) target = $region64
        $region63: #{tpu_custom_call.1} parent=47 // pred_region
          %371 = dma.done [#allocation9], 256
        $region64: #{tpu_custom_call.1} parent=47 // pred_fallthru
          _
        // Predicated region
        $region65: #{tpu_custom_call.1} parent=47 // pred_check
          %p372 = pneg %p139
        $region66: #{tpu_custom_call.1} parent=47 // pred_check_branch
          %374 = sbr.rel (%p372) target = $region68
        $region67: #{tpu_custom_call.1} parent=47 // pred_region
          %376 = dma.done [#allocation9], 256
        $region68: #{tpu_custom_call.1} parent=47 // pred_fallthru
          _
        // Predicated region
        $region69: #{tpu_custom_call.1} parent=47 // pred_check
          %p377 = pneg %p160
        $region70: #{tpu_custom_call.1} parent=47 // pred_check_branch
          %379 = sbr.rel (%p377) target = $region72
        $region71: #{tpu_custom_call.1} parent=47 // pred_region
          %381 = dma.done [#allocation12], 256
        $region72: #{tpu_custom_call.1} parent=47 // pred_fallthru
          _
        // Predicated region
        $region73: #{tpu_custom_call.1} parent=47 // pred_check
          %p382 = pneg %p181
        $region74: #{tpu_custom_call.1} parent=47 // pred_check_branch
          %384 = sbr.rel (%p382) target = $region76
        $region75: #{tpu_custom_call.1} parent=47 // pred_region
          %386 = dma.done [#allocation12], 256
        $region76: #{tpu_custom_call.1} parent=47 // pred_fallthru
          _
        %s387 = sand.u32 %s37, 1
        %s388 = scalar_lea.sflag [#allocation3], %s387
        %s389 = sand.u32 %s37, 1
        %s390 = smul.addr %s389, 8
        %s391 = scalar_lea.vmem [#allocation2], %s390
        %p392 = pneg %p50
        %p393 = pneg %p47
        %s394 = sand.u32 %s29, 1
        %s395 = scalar_lea.sflag [#allocation6], %s394
        %s396 = sand.u32 %s63, 1
        %s397 = smul.addr %s396, 16
        %s398 = scalar_lea.vmem [#allocation5], %s397
        %p399 = pneg %p76
        %p400 = pneg %p73
        %p401 = pneg %p97
        %p402 = pneg %p94
        %p403 = pneg %p118
        %p404 = pneg %p115
        %p405 = pneg %p139
        %p406 = pneg %p136
        %p407 = pneg %p160
        %p408 = pneg %p157
        %p409 = pneg %p181
        %p410 = pneg %p178
        %p411 = pneg %p207
        %p412 = pneg %p204
        %s413 = sand.u32 %s194, 1
        %s414 = scalar_lea.sflag [#allocation4], %s413
        %s415 = sand.u32 %s194, 1
        %s416 = smul.addr %s415, 8
        %s417 = scalar_lea.vmem [#allocation14], %s416
        %v419 = vld [vmem:[%s346] sm:$0xff]
        %v420 = vld [vmem:[%s356] sm:$0xff]
        %v421 = vld [vmem:[%s356 + $0x8] sm:$0xff]
        %v422 = vld [vmem:[#allocation7] sm:$0xff]
        %vm423 = vcmask 261120
        %v424 = vsel %vm423, %v419, 0.0
        %425 = vadd.xlane.f32.xlu0 %v424
        %v426 = vpop.xlane.xlu0 %425
        %v427 = vrcp.pop 32.0
        %v428 = vmul.f32 32.0, %v427
        %v429 = vsub.f32 1.0, %v428
        %v430 = vmul.f32 %v427, %v429
        %v431 = vadd.f32 %v427, %v430
        %vm432 = vweird.f32 %v427
        %v433 = vsel %vm432, %v427, %v431
        %v434 = vmul.f32 %v426, %v433
        %v435 = vsub.f32 %v419, %v434
        %v436 = vmul.f32 %v435, %v435
        %v437 = vsel %vm423, %v436, 0.0
        %438 = vadd.xlane.f32.xlu0 %v437
        %v439 = vpop.xlane.xlu0 %438
        %v440 = vmul.f32 %v439, %v433
        %v441 = vadd.f32 %v440, 1e-05
        %v442 = vrsqrt.pop %v441
        %v443 = vmul.f32 %v442, %v441
        %v444 = vmul.f32 %v443, %v442
        %v445 = vmul.f32 0.5, %v444
        %v446 = vsub.f32 1.5, %v445
        %v447 = vmul.f32 %v442, %v446
        %vm448 = vweird.f32 %v441
        %vm449 = vweird.f32 %v442
        %vm450 = vmor %vm448, %vm449
        %v451 = vsel %vm450, %v442, %v447
        %v452 = vmul.f32 %v435, %v451
        %v453 = vperm.slane %v422, 0
        %v454 = vmul.f32 %v452, %v453
        %v455 = vperm.slane %v422, 1
        %v456 = vadd.f32 %v454, %v455
        %v457 = vpack.c.bf16 %v456, %v456
        %v458 = vsel %vm423, %v420, 0.0
        %459 = vadd.xlane.f32.xlu0 %v458
        %v460 = vpop.xlane.xlu0 %459
        %v461 = vsel %vm423, %v421, 0.0
        %462 = vadd.xlane.f32.xlu0 %v461
        %v463 = vpop.xlane.xlu0 %462
        %v464 = vmul.f32 %v460, %v433
        %v465 = vmul.f32 %v463, %v433
        %v466 = vsub.f32 %v420, %v464
        %v467 = vsub.f32 %v421, %v465
        %v468 = vmul.f32 %v466, %v466
        %v469 = vmul.f32 %v467, %v467
        %v470 = vsel %vm423, %v468, 0.0
        %471 = vadd.xlane.f32.xlu0 %v470
        %v472 = vpop.xlane.xlu0 %471
        %v473 = vsel %vm423, %v469, 0.0
        %474 = vadd.xlane.f32.xlu0 %v473
        %v475 = vpop.xlane.xlu0 %474
        %v476 = vmul.f32 %v472, %v433
        %v477 = vmul.f32 %v475, %v433
        %v478 = vadd.f32 %v476, 1e-05
        %v479 = vadd.f32 %v477, 1e-05
        %v480 = vrsqrt.pop %v478
        %v481 = vmul.f32 %v480, %v478
        %v482 = vmul.f32 %v481, %v480
        %v483 = vmul.f32 0.5, %v482
        %v484 = vsub.f32 1.5, %v483
        %v485 = vmul.f32 %v480, %v484
        %vm486 = vweird.f32 %v478
        %vm487 = vweird.f32 %v480
        %vm488 = vmor %vm486, %vm487
        %v489 = vsel %vm488, %v480, %v485
        %v490 = vrsqrt.pop %v479
        %v491 = vmul.f32 %v490, %v479
        %v492 = vmul.f32 %v491, %v490
        %v493 = vmul.f32 0.5, %v492
        %v494 = vsub.f32 1.5, %v493
        %v495 = vmul.f32 %v490, %v494
        %vm496 = vweird.f32 %v479
        %vm497 = vweird.f32 %v490
        %vm498 = vmor %vm496, %vm497
        %v499 = vsel %vm498, %v490, %v495
        %v500 = vmul.f32 %v466, %v489
        %v501 = vmul.f32 %v467, %v499
        %v502 = vperm.slane %v422, 2
        %v503 = vmul.f32 %v500, %v502
        %v504 = vmul.f32 %v501, %v502
        %v505 = vperm.slane %v422, 3
        %v506 = vadd.f32 %v503, %v505
        %v507 = vadd.f32 %v504, %v505
        %v508 = vpack.c.bf16 %v507, %v506
        %v509 = vld [vmem:[#allocation8] sm:$0xf]
        %v510 = vld [vmem:[#allocation8 + $0x4] sm:$0xf]
        %v511 = vld [vmem:[#allocation8 + $0x8] sm:$0xf]
        %v512 = vld [vmem:[#allocation8 + $0xc] sm:$0xf]
        %v513 = vperm.slane %v422, 4
        %v518 = vunpack.c.l.b16 %v509
        %v519 = vunpack.c.l.b16 %v510
        %v520 = vunpack.c.l.b16 %v511
        %v521 = vunpack.c.l.b16 %v512
        %v522 = vpack.c.b16 %v519, %v518
        %v523 = vpack.c.b16 %v521, %v520
        %v527 = vsel %vm423, %v457, 0
        %529 = vmatpush.bf16.msra.mxu0 0
        %530 = vmatpush.bf16.msra.mxu0 0
        %531 = vmatpush.bf16.msra.mxu0 0
        %532 = vmatpush.bf16.msra.mxu0 0
        %533 = vmatpush.bf16.msra.mxu0 0
        %534 = vmatpush.bf16.msra.mxu0 0
        %535 = vmatpush.bf16.msra.mxu0 %v523
        %536 = vmatpush.bf16.msra.mxu0 %v522
        %537 = vmatmul.bf16.gmra.mxu0 %v527
        %v538 = vpop.f32.mrf.mxu0
        %v539 = vadd.f32 %v513, %v538
        %v540 = vpop.f32.mrf.mxu0
        %541 = vdwg.mxu0
        %v542 = vpack.c.bf16 %v539, %v539
        %v543 = vld [vmem:[#allocation10] sm:$0xf]
        %v544 = vld [vmem:[#allocation10 + $0x4] sm:$0xf]
        %v545 = vld [vmem:[#allocation10 + $0x8] sm:$0xf]
        %v546 = vld [vmem:[#allocation10 + $0xc] sm:$0xf]
        %v547 = vperm.slane %v422, 5
        %v552 = vunpack.c.l.b16 %v543
        %v553 = vunpack.c.l.b16 %v544
        %v554 = vunpack.c.l.b16 %v545
        %v555 = vunpack.c.l.b16 %v546
        %v556 = vpack.c.b16 %v553, %v552
        %v557 = vpack.c.b16 %v555, %v554
        %v561 = vsel %vm423, %v508, 0
        %563 = vmatpush.bf16.msra.mxu0 0
        %564 = vmatpush.bf16.msra.mxu0 0
        %565 = vmatpush.bf16.msra.mxu0 0
        %566 = vmatpush.bf16.msra.mxu0 0
        %567 = vmatpush.bf16.msra.mxu0 0
        %568 = vmatpush.bf16.msra.mxu0 0
        %569 = vmatpush.bf16.msra.mxu0 %v557
        %570 = vmatpush.bf16.msra.mxu0 %v556
        %571 = vmatmul.bf16.gmra.mxu0 %v561
        %v572 = vpop.f32.mrf.mxu0
        %v573 = vadd.f32 %v547, %v572
        %v574 = vpop.f32.mrf.mxu0
        %v575 = vadd.f32 %v547, %v574
        %576 = vdwg.mxu0
        %v577 = vpack.c.bf16 %v573, %v573
        %v578 = vpack.c.bf16 %v575, %v575
        %v579 = vld [vmem:[#allocation11] sm:$0xf]
        %v580 = vld [vmem:[#allocation11 + $0x4] sm:$0xf]
        %v581 = vld [vmem:[#allocation11 + $0x8] sm:$0xf]
        %v582 = vld [vmem:[#allocation11 + $0xc] sm:$0xf]
        %v583 = vperm.slane %v422, 6
        %v588 = vunpack.c.l.b16 %v579
        %v589 = vunpack.c.l.b16 %v580
        %v590 = vunpack.c.l.b16 %v581
        %v591 = vunpack.c.l.b16 %v582
        %v592 = vpack.c.b16 %v589, %v588
        %v593 = vpack.c.b16 %v591, %v590
        %596 = vmatpush.bf16.msra.mxu0 0
        %597 = vmatpush.bf16.msra.mxu0 0
        %598 = vmatpush.bf16.msra.mxu0 0
        %599 = vmatpush.bf16.msra.mxu0 0
        %600 = vmatpush.bf16.msra.mxu0 0
        %601 = vmatpush.bf16.msra.mxu0 0
        %602 = vmatpush.bf16.msra.mxu0 %v593
        %603 = vmatpush.bf16.msra.mxu0 %v592
        %604 = vmatmul.bf16.gmra.mxu0 %v561
        %v605 = vpop.f32.mrf.mxu0
        %v606 = vadd.f32 %v583, %v605
        %v607 = vpop.f32.mrf.mxu0
        %v608 = vadd.f32 %v583, %v607
        %609 = vdwg.mxu0
        %v610 = vpack.c.bf16 %v606, %v606
        %v611 = vpack.c.bf16 %v608, %v608
        %613 = vrot.lane.b32.xlu0 %v542, 120
        %v614 = vpop.permute.xlu0 %613
        %615 = vrot.lane.b32.xlu0 %v542, 112
        %v616 = vpop.permute.xlu0 %615
        %617 = vrot.lane.b32.xlu0 %v542, 104
        %v618 = vpop.permute.xlu0 %617
        %v621 = vpack.i.b16 %v614, %v542
        %v622 = vshrl.u32 %v542, 16
        %v623 = vshrl.u32 %v614, 16
        %v624 = vpack.i.b16 %v623, %v622
        %v627 = vpack.i.b16 %v618, %v616
        %v628 = vshrl.u32 %v616, 16
        %v629 = vshrl.u32 %v618, 16
        %v630 = vpack.i.b16 %v629, %v628
        %v633 = vunpack.c.l.s4 1983009808
        %v634 = vunpack.c.0.s8 %v633
        %v635 = vperm.slane %v621, %v634
        %v638 = vunpack.c.l.s4 1983009808
        %v639 = vunpack.c.0.s8 %v638
        %v640 = vperm.slane %v627, %v639
        %v641 = vrot.slane %v640, 4
        %vm642 = vcmask 1047556
        %v643 = vsel %vm642, %v641, %v635
        %v644 = vrot.slane %v635, 4
        %v645 = vsel %vm642, %v640, %v644
        %v647 = vunpack.c.l.s4 1934713408
        %v648 = vunpack.c.0.s8 %v647
        %v649 = vperm.slane %v643, %v648
        %v651 = vunpack.c.l.s4 1934713408
        %v652 = vunpack.c.0.s8 %v651
        %v653 = vperm.slane %v645, %v652
        %v654 = vrot.slane %v649, 4
        %v655 = vsel %vm642, 0, %v654
        %v656 = vrot.slane %v653, 4
        %v657 = vsel %vm642, 0, %v656
        %v660 = vunpack.c.l.s4 1983009808
        %v661 = vunpack.c.0.s8 %v660
        %v662 = vperm.slane %v624, %v661
        %v665 = vunpack.c.l.s4 1983009808
        %v666 = vunpack.c.0.s8 %v665
        %v667 = vperm.slane %v630, %v666
        %v668 = vrot.slane %v667, 4
        %v669 = vsel %vm642, %v668, %v662
        %v670 = vrot.slane %v662, 4
        %v671 = vsel %vm642, %v667, %v670
        %v673 = vunpack.c.l.s4 1934713408
        %v674 = vunpack.c.0.s8 %v673
        %v675 = vperm.slane %v669, %v674
        %v677 = vunpack.c.l.s4 1934713408
        %v678 = vunpack.c.0.s8 %v677
        %v679 = vperm.slane %v671, %v678
        %v680 = vrot.slane %v675, 4
        %v681 = vsel %vm642, 0, %v680
        %v682 = vrot.slane %v679, 4
        %v683 = vsel %vm642, 0, %v682
        %v684 = vsel %vm642, %v656, %v649
        %v686 = vunpack.c.l.s4 1983009808
        %v687 = vunpack.c.0.s8 %v686
        %v688 = vperm.slane %v684, %v687
        %v689 = vrot.slane %v657, 4
        %v690 = vsel %vm642, %v689, %v655
        %v692 = vunpack.c.l.s4 1983009808
        %v693 = vunpack.c.0.s8 %v692
        %v694 = vperm.slane %v690, %v693
        %v695 = vrot.slane %v694, 4
        %v696 = vsel %vm642, %v695, %v688
        %v698 = vunpack.c.l.s4 1934713408
        %v699 = vunpack.c.0.s8 %v698
        %v700 = vperm.slane %v696, %v699
        %v701 = vrot.slane %v700, 4
        %v702 = vsel %vm642, 0, %v701
        %v703 = vsel %vm642, %v682, %v675
        %v705 = vunpack.c.l.s4 1983009808
        %v706 = vunpack.c.0.s8 %v705
        %v707 = vperm.slane %v703, %v706
        %v708 = vrot.slane %v683, 4
        %v709 = vsel %vm642, %v708, %v681
        %v711 = vunpack.c.l.s4 1983009808
        %v712 = vunpack.c.0.s8 %v711
        %v713 = vperm.slane %v709, %v712
        %v714 = vrot.slane %v713, 4
        %v715 = vsel %vm642, %v714, %v707
        %v717 = vunpack.c.l.s4 1934713408
        %v718 = vunpack.c.0.s8 %v717
        %v719 = vperm.slane %v715, %v718
        %v720 = vrot.slane %v719, 4
        %v721 = vsel %vm642, 0, %v720
        %v724 = vpack.i.b16 %v719, %v700
        %v725 = vshrl.u32 %v700, 16
        %v726 = vshrl.u32 %v719, 16
        %v727 = vpack.i.b16 %v726, %v725
        %v730 = vpack.i.b16 %v721, %v702
        %v731 = vshrl.u32 %v702, 16
        %v732 = vshrl.u32 %v721, 16
        %v733 = vpack.i.b16 %v732, %v731
        %736 = vrot.lane.b32.xlu0 %v577, 120
        %v737 = vpop.permute.xlu0 %736
        %738 = vrot.lane.b32.xlu0 %v578, 120
        %v739 = vpop.permute.xlu0 %738
        %740 = vrot.lane.b32.xlu0 %v577, 112
        %v741 = vpop.permute.xlu0 %740
        %742 = vrot.lane.b32.xlu0 %v578, 112
        %v743 = vpop.permute.xlu0 %742
        %744 = vrot.lane.b32.xlu0 %v577, 104
        %v745 = vpop.permute.xlu0 %744
        %746 = vrot.lane.b32.xlu0 %v578, 104
        %v747 = vpop.permute.xlu0 %746
        %v750 = vpack.i.b16 %v737, %v577
        %v751 = vshrl.u32 %v577, 16
        %v752 = vshrl.u32 %v737, 16
        %v753 = vpack.i.b16 %v752, %v751
        %v756 = vpack.i.b16 %v745, %v741
        %v757 = vshrl.u32 %v741, 16
        %v758 = vshrl.u32 %v745, 16
        %v759 = vpack.i.b16 %v758, %v757
        %v762 = vpack.i.b16 %v739, %v578
        %v763 = vshrl.u32 %v578, 16
        %v764 = vshrl.u32 %v739, 16
        %v765 = vpack.i.b16 %v764, %v763
        %v768 = vpack.i.b16 %v747, %v743
        %v769 = vshrl.u32 %v743, 16
        %v770 = vshrl.u32 %v747, 16
        %v771 = vpack.i.b16 %v770, %v769
        %v774 = vunpack.c.l.s4 1983009808
        %v775 = vunpack.c.0.s8 %v774
        %v776 = vperm.slane %v750, %v775
        %v779 = vunpack.c.l.s4 1983009808
        %v780 = vunpack.c.0.s8 %v779
        %v781 = vperm.slane %v756, %v780
        %v782 = vrot.slane %v781, 4
        %v783 = vsel %vm642, %v782, %v776
        %v784 = vrot.slane %v776, 4
        %v785 = vsel %vm642, %v781, %v784
        %v787 = vunpack.c.l.s4 1934713408
        %v788 = vunpack.c.0.s8 %v787
        %v789 = vperm.slane %v783, %v788
        %v791 = vunpack.c.l.s4 1934713408
        %v792 = vunpack.c.0.s8 %v791
        %v793 = vperm.slane %v785, %v792
        %v794 = vrot.slane %v789, 4
        %v795 = vsel %vm642, 0, %v794
        %v796 = vrot.slane %v793, 4
        %v797 = vsel %vm642, 0, %v796
        %v800 = vunpack.c.l.s4 1983009808
        %v801 = vunpack.c.0.s8 %v800
        %v802 = vperm.slane %v753, %v801
        %v805 = vunpack.c.l.s4 1983009808
        %v806 = vunpack.c.0.s8 %v805
        %v807 = vperm.slane %v759, %v806
        %v808 = vrot.slane %v807, 4
        %v809 = vsel %vm642, %v808, %v802
        %v810 = vrot.slane %v802, 4
        %v811 = vsel %vm642, %v807, %v810
        %v813 = vunpack.c.l.s4 1934713408
        %v814 = vunpack.c.0.s8 %v813
        %v815 = vperm.slane %v809, %v814
        %v817 = vunpack.c.l.s4 1934713408
        %v818 = vunpack.c.0.s8 %v817
        %v819 = vperm.slane %v811, %v818
        %v820 = vrot.slane %v815, 4
        %v821 = vsel %vm642, 0, %v820
        %v822 = vrot.slane %v819, 4
        %v823 = vsel %vm642, 0, %v822
        %v826 = vunpack.c.l.s4 1983009808
        %v827 = vunpack.c.0.s8 %v826
        %v828 = vperm.slane %v762, %v827
        %v831 = vunpack.c.l.s4 1983009808
        %v832 = vunpack.c.0.s8 %v831
        %v833 = vperm.slane %v768, %v832
        %v834 = vrot.slane %v833, 4
        %v835 = vsel %vm642, %v834, %v828
        %v836 = vrot.slane %v828, 4
        %v837 = vsel %vm642, %v833, %v836
        %v839 = vunpack.c.l.s4 1934713408
        %v840 = vunpack.c.0.s8 %v839
        %v841 = vperm.slane %v835, %v840
        %v843 = vunpack.c.l.s4 1934713408
        %v844 = vunpack.c.0.s8 %v843
        %v845 = vperm.slane %v837, %v844
        %v846 = vrot.slane %v841, 4
        %v847 = vsel %vm642, 0, %v846
        %v848 = vrot.slane %v845, 4
        %v849 = vsel %vm642, 0, %v848
        %v852 = vunpack.c.l.s4 1983009808
        %v853 = vunpack.c.0.s8 %v852
        %v854 = vperm.slane %v765, %v853
        %v857 = vunpack.c.l.s4 1983009808
        %v858 = vunpack.c.0.s8 %v857
        %v859 = vperm.slane %v771, %v858
        %v860 = vrot.slane %v859, 4
        %v861 = vsel %vm642, %v860, %v854
        %v862 = vrot.slane %v854, 4
        %v863 = vsel %vm642, %v859, %v862
        %v865 = vunpack.c.l.s4 1934713408
        %v866 = vunpack.c.0.s8 %v865
        %v867 = vperm.slane %v861, %v866
        %v869 = vunpack.c.l.s4 1934713408
        %v870 = vunpack.c.0.s8 %v869
        %v871 = vperm.slane %v863, %v870
        %v872 = vrot.slane %v867, 4
        %v873 = vsel %vm642, 0, %v872
        %v874 = vrot.slane %v871, 4
        %v875 = vsel %vm642, 0, %v874
        %v876 = vsel %vm642, %v796, %v789
        %v878 = vunpack.c.l.s4 1983009808
        %v879 = vunpack.c.0.s8 %v878
        %v880 = vperm.slane %v876, %v879
        %v881 = vrot.slane %v797, 4
        %v882 = vsel %vm642, %v881, %v795
        %v884 = vunpack.c.l.s4 1983009808
        %v885 = vunpack.c.0.s8 %v884
        %v886 = vperm.slane %v882, %v885
        %v887 = vrot.slane %v886, 4
        %v888 = vsel %vm642, %v887, %v880
        %v890 = vunpack.c.l.s4 1934713408
        %v891 = vunpack.c.0.s8 %v890
        %v892 = vperm.slane %v888, %v891
        %v893 = vrot.slane %v892, 4
        %v894 = vsel %vm642, 0, %v893
        %v895 = vsel %vm642, %v822, %v815
        %v897 = vunpack.c.l.s4 1983009808
        %v898 = vunpack.c.0.s8 %v897
        %v899 = vperm.slane %v895, %v898
        %v900 = vrot.slane %v823, 4
        %v901 = vsel %vm642, %v900, %v821
        %v903 = vunpack.c.l.s4 1983009808
        %v904 = vunpack.c.0.s8 %v903
        %v905 = vperm.slane %v901, %v904
        %v906 = vrot.slane %v905, 4
        %v907 = vsel %vm642, %v906, %v899
        %v909 = vunpack.c.l.s4 1934713408
        %v910 = vunpack.c.0.s8 %v909
        %v911 = vperm.slane %v907, %v910
        %v912 = vrot.slane %v911, 4
        %v913 = vsel %vm642, 0, %v912
        %v914 = vsel %vm642, %v848, %v841
        %v916 = vunpack.c.l.s4 1983009808
        %v917 = vunpack.c.0.s8 %v916
        %v918 = vperm.slane %v914, %v917
        %v919 = vrot.slane %v849, 4
        %v920 = vsel %vm642, %v919, %v847
        %v922 = vunpack.c.l.s4 1983009808
        %v923 = vunpack.c.0.s8 %v922
        %v924 = vperm.slane %v920, %v923
        %v925 = vrot.slane %v924, 4
        %v926 = vsel %vm642, %v925, %v918
        %v928 = vunpack.c.l.s4 1934713408
        %v929 = vunpack.c.0.s8 %v928
        %v930 = vperm.slane %v926, %v929
        %v931 = vrot.slane %v930, 4
        %v932 = vsel %vm642, 0, %v931
        %v933 = vsel %vm642, %v874, %v867
        %v935 = vunpack.c.l.s4 1983009808
        %v936 = vunpack.c.0.s8 %v935
        %v937 = vperm.slane %v933, %v936
        %v938 = vrot.slane %v875, 4
        %v939 = vsel %vm642, %v938, %v873
        %v941 = vunpack.c.l.s4 1983009808
        %v942 = vunpack.c.0.s8 %v941
        %v943 = vperm.slane %v939, %v942
        %v944 = vrot.slane %v943, 4
        %v945 = vsel %vm642, %v944, %v937
        %v947 = vunpack.c.l.s4 1934713408
        %v948 = vunpack.c.0.s8 %v947
        %v949 = vperm.slane %v945, %v948
        %v950 = vrot.slane %v949, 4
        %v951 = vsel %vm642, 0, %v950
        %v954 = vpack.i.b16 %v911, %v892
        %v955 = vshrl.u32 %v892, 16
        %v956 = vshrl.u32 %v911, 16
        %v957 = vpack.i.b16 %v956, %v955
        %v960 = vpack.i.b16 %v913, %v894
        %v961 = vshrl.u32 %v894, 16
        %v962 = vshrl.u32 %v913, 16
        %v963 = vpack.i.b16 %v962, %v961
        %v966 = vpack.i.b16 %v949, %v930
        %v967 = vshrl.u32 %v930, 16
        %v968 = vshrl.u32 %v949, 16
        %v969 = vpack.i.b16 %v968, %v967
        %v972 = vpack.i.b16 %v951, %v932
        %v973 = vshrl.u32 %v932, 16
        %v974 = vshrl.u32 %v951, 16
        %v975 = vpack.i.b16 %v974, %v973
        %978 = vrot.lane.b32.xlu0 %v610, 120
        %v979 = vpop.permute.xlu0 %978
        %980 = vrot.lane.b32.xlu0 %v611, 120
        %v981 = vpop.permute.xlu0 %980
        %982 = vrot.lane.b32.xlu0 %v610, 112
        %v983 = vpop.permute.xlu0 %982
        %984 = vrot.lane.b32.xlu0 %v611, 112
        %v985 = vpop.permute.xlu0 %984
        %986 = vrot.lane.b32.xlu0 %v610, 104
        %v987 = vpop.permute.xlu0 %986
        %988 = vrot.lane.b32.xlu0 %v611, 104
        %v989 = vpop.permute.xlu0 %988
        %v992 = vpack.i.b16 %v979, %v610
        %v993 = vshrl.u32 %v610, 16
        %v994 = vshrl.u32 %v979, 16
        %v995 = vpack.i.b16 %v994, %v993
        %v998 = vpack.i.b16 %v987, %v983
        %v999 = vshrl.u32 %v983, 16
        %v1000 = vshrl.u32 %v987, 16
        %v1001 = vpack.i.b16 %v1000, %v999
        %v1004 = vpack.i.b16 %v981, %v611
        %v1005 = vshrl.u32 %v611, 16
        %v1006 = vshrl.u32 %v981, 16
        %v1007 = vpack.i.b16 %v1006, %v1005
        %v1010 = vpack.i.b16 %v989, %v985
        %v1011 = vshrl.u32 %v985, 16
        %v1012 = vshrl.u32 %v989, 16
        %v1013 = vpack.i.b16 %v1012, %v1011
        %v1016 = vunpack.c.l.s4 1983009808
        %v1017 = vunpack.c.0.s8 %v1016
        %v1018 = vperm.slane %v992, %v1017
        %v1021 = vunpack.c.l.s4 1983009808
        %v1022 = vunpack.c.0.s8 %v1021
        %v1023 = vperm.slane %v998, %v1022
        %v1024 = vrot.slane %v1023, 4
        %v1025 = vsel %vm642, %v1024, %v1018
        %v1026 = vrot.slane %v1018, 4
        %v1027 = vsel %vm642, %v1023, %v1026
        %v1029 = vunpack.c.l.s4 1934713408
        %v1030 = vunpack.c.0.s8 %v1029
        %v1031 = vperm.slane %v1025, %v1030
        %v1033 = vunpack.c.l.s4 1934713408
        %v1034 = vunpack.c.0.s8 %v1033
        %v1035 = vperm.slane %v1027, %v1034
        %v1036 = vrot.slane %v1031, 4
        %v1037 = vsel %vm642, 0, %v1036
        %v1038 = vrot.slane %v1035, 4
        %v1039 = vsel %vm642, 0, %v1038
        %v1042 = vunpack.c.l.s4 1983009808
        %v1043 = vunpack.c.0.s8 %v1042
        %v1044 = vperm.slane %v995, %v1043
        %v1047 = vunpack.c.l.s4 1983009808
        %v1048 = vunpack.c.0.s8 %v1047
        %v1049 = vperm.slane %v1001, %v1048
        %v1050 = vrot.slane %v1049, 4
        %v1051 = vsel %vm642, %v1050, %v1044
        %v1052 = vrot.slane %v1044, 4
        %v1053 = vsel %vm642, %v1049, %v1052
        %v1055 = vunpack.c.l.s4 1934713408
        %v1056 = vunpack.c.0.s8 %v1055
        %v1057 = vperm.slane %v1051, %v1056
        %v1059 = vunpack.c.l.s4 1934713408
        %v1060 = vunpack.c.0.s8 %v1059
        %v1061 = vperm.slane %v1053, %v1060
        %v1062 = vrot.slane %v1057, 4
        %v1063 = vsel %vm642, 0, %v1062
        %v1064 = vrot.slane %v1061, 4
        %v1065 = vsel %vm642, 0, %v1064
        %v1068 = vunpack.c.l.s4 1983009808
        %v1069 = vunpack.c.0.s8 %v1068
        %v1070 = vperm.slane %v1004, %v1069
        %v1073 = vunpack.c.l.s4 1983009808
        %v1074 = vunpack.c.0.s8 %v1073
        %v1075 = vperm.slane %v1010, %v1074
        %v1076 = vrot.slane %v1075, 4
        %v1077 = vsel %vm642, %v1076, %v1070
        %v1078 = vrot.slane %v1070, 4
        %v1079 = vsel %vm642, %v1075, %v1078
        %v1081 = vunpack.c.l.s4 1934713408
        %v1082 = vunpack.c.0.s8 %v1081
        %v1083 = vperm.slane %v1077, %v1082
        %v1085 = vunpack.c.l.s4 1934713408
        %v1086 = vunpack.c.0.s8 %v1085
        %v1087 = vperm.slane %v1079, %v1086
        %v1088 = vrot.slane %v1083, 4
        %v1089 = vsel %vm642, 0, %v1088
        %v1090 = vrot.slane %v1087, 4
        %v1091 = vsel %vm642, 0, %v1090
        %v1094 = vunpack.c.l.s4 1983009808
        %v1095 = vunpack.c.0.s8 %v1094
        %v1096 = vperm.slane %v1007, %v1095
        %v1099 = vunpack.c.l.s4 1983009808
        %v1100 = vunpack.c.0.s8 %v1099
        %v1101 = vperm.slane %v1013, %v1100
        %v1102 = vrot.slane %v1101, 4
        %v1103 = vsel %vm642, %v1102, %v1096
        %v1104 = vrot.slane %v1096, 4
        %v1105 = vsel %vm642, %v1101, %v1104
        %v1107 = vunpack.c.l.s4 1934713408
        %v1108 = vunpack.c.0.s8 %v1107
        %v1109 = vperm.slane %v1103, %v1108
        %v1111 = vunpack.c.l.s4 1934713408
        %v1112 = vunpack.c.0.s8 %v1111
        %v1113 = vperm.slane %v1105, %v1112
        %v1114 = vrot.slane %v1109, 4
        %v1115 = vsel %vm642, 0, %v1114
        %v1116 = vrot.slane %v1113, 4
        %v1117 = vsel %vm642, 0, %v1116
        %v1118 = vsel %vm642, %v1038, %v1031
        %v1120 = vunpack.c.l.s4 1983009808
        %v1121 = vunpack.c.0.s8 %v1120
        %v1122 = vperm.slane %v1118, %v1121
        %v1123 = vrot.slane %v1039, 4
        %v1124 = vsel %vm642, %v1123, %v1037
        %v1126 = vunpack.c.l.s4 1983009808
        %v1127 = vunpack.c.0.s8 %v1126
        %v1128 = vperm.slane %v1124, %v1127
        %v1129 = vrot.slane %v1128, 4
        %v1130 = vsel %vm642, %v1129, %v1122
        %v1132 = vunpack.c.l.s4 1934713408
        %v1133 = vunpack.c.0.s8 %v1132
        %v1134 = vperm.slane %v1130, %v1133
        %v1135 = vrot.slane %v1134, 4
        %v1136 = vsel %vm642, 0, %v1135
        %v1137 = vsel %vm642, %v1064, %v1057
        %v1139 = vunpack.c.l.s4 1983009808
        %v1140 = vunpack.c.0.s8 %v1139
        %v1141 = vperm.slane %v1137, %v1140
        %v1142 = vrot.slane %v1065, 4
        %v1143 = vsel %vm642, %v1142, %v1063
        %v1145 = vunpack.c.l.s4 1983009808
        %v1146 = vunpack.c.0.s8 %v1145
        %v1147 = vperm.slane %v1143, %v1146
        %v1148 = vrot.slane %v1147, 4
        %v1149 = vsel %vm642, %v1148, %v1141
        %v1151 = vunpack.c.l.s4 1934713408
        %v1152 = vunpack.c.0.s8 %v1151
        %v1153 = vperm.slane %v1149, %v1152
        %v1154 = vrot.slane %v1153, 4
        %v1155 = vsel %vm642, 0, %v1154
        %v1156 = vsel %vm642, %v1090, %v1083
        %v1158 = vunpack.c.l.s4 1983009808
        %v1159 = vunpack.c.0.s8 %v1158
        %v1160 = vperm.slane %v1156, %v1159
        %v1161 = vrot.slane %v1091, 4
        %v1162 = vsel %vm642, %v1161, %v1089
        %v1164 = vunpack.c.l.s4 1983009808
        %v1165 = vunpack.c.0.s8 %v1164
        %v1166 = vperm.slane %v1162, %v1165
        %v1167 = vrot.slane %v1166, 4
        %v1168 = vsel %vm642, %v1167, %v1160
        %v1170 = vunpack.c.l.s4 1934713408
        %v1171 = vunpack.c.0.s8 %v1170
        %v1172 = vperm.slane %v1168, %v1171
        %v1173 = vrot.slane %v1172, 4
        %v1174 = vsel %vm642, 0, %v1173
        %v1175 = vsel %vm642, %v1116, %v1109
        %v1177 = vunpack.c.l.s4 1983009808
        %v1178 = vunpack.c.0.s8 %v1177
        %v1179 = vperm.slane %v1175, %v1178
        %v1180 = vrot.slane %v1117, 4
        %v1181 = vsel %vm642, %v1180, %v1115
        %v1183 = vunpack.c.l.s4 1983009808
        %v1184 = vunpack.c.0.s8 %v1183
        %v1185 = vperm.slane %v1181, %v1184
        %v1186 = vrot.slane %v1185, 4
        %v1187 = vsel %vm642, %v1186, %v1179
        %v1189 = vunpack.c.l.s4 1934713408
        %v1190 = vunpack.c.0.s8 %v1189
        %v1191 = vperm.slane %v1187, %v1190
        %v1192 = vrot.slane %v1191, 4
        %v1193 = vsel %vm642, 0, %v1192
        %v1196 = vpack.i.b16 %v1153, %v1134
        %v1197 = vshrl.u32 %v1134, 16
        %v1198 = vshrl.u32 %v1153, 16
        %v1199 = vpack.i.b16 %v1198, %v1197
        %v1202 = vpack.i.b16 %v1155, %v1136
        %v1203 = vshrl.u32 %v1136, 16
        %v1204 = vshrl.u32 %v1155, 16
        %v1205 = vpack.i.b16 %v1204, %v1203
        %v1208 = vpack.i.b16 %v1191, %v1172
        %v1209 = vshrl.u32 %v1172, 16
        %v1210 = vshrl.u32 %v1191, 16
        %v1211 = vpack.i.b16 %v1210, %v1209
        %v1214 = vpack.i.b16 %v1193, %v1174
        %v1215 = vshrl.u32 %v1174, 16
        %v1216 = vshrl.u32 %v1193, 16
        %v1217 = vpack.i.b16 %v1216, %v1215
        %v1218 = vunpack.c.l.b16 %v954
        %v1219 = vunpack.c.l.b16 %v966
        %v1220 = vpack.c.b16 %v1219, %v1218
        %vm1221 = vcmask 64512
        %v1223 = vsel %vm1221, %v724, 0
        %v1226 = vsel %vm1221, %v1220, 0
        %1228 = vmatpush.bf16.xpose.msra.mxu0 0
        %1229 = vmatpush.bf16.xpose.msra.mxu0 0
        %1230 = vmatpush.bf16.xpose.msra.mxu0 0
        %1231 = vmatpush.bf16.xpose.msra.mxu0 0
        %1232 = vmatpush.bf16.xpose.msra.mxu0 0
        %1233 = vmatpush.bf16.xpose.msra.mxu0 0
        %1234 = vmatpush.bf16.xpose.msra.mxu0 0
        %1235 = vmatpush.bf16.xpose.msra.mxu0 %v1226
        %1236 = vmatmul.bf16.gmra.mxu0 %v1223
        %v1237 = vpop.f32.mrf.mxu0
        %v1238 = vadd.f32 0.0, %v1237
        %v1239 = vpop.f32.mrf.mxu0
        %1240 = vdwg.mxu0
        %v1241 = vunpack.c.l.b16 %v957
        %v1242 = vunpack.c.l.b16 %v969
        %v1243 = vpack.c.b16 %v1242, %v1241
        %v1245 = vsel %vm1221, %v727, 0
        %v1248 = vsel %vm1221, %v1243, 0
        %1250 = vmatpush.bf16.xpose.msra.mxu0 0
        %1251 = vmatpush.bf16.xpose.msra.mxu0 0
        %1252 = vmatpush.bf16.xpose.msra.mxu0 0
        %1253 = vmatpush.bf16.xpose.msra.mxu0 0
        %1254 = vmatpush.bf16.xpose.msra.mxu0 0
        %1255 = vmatpush.bf16.xpose.msra.mxu0 0
        %1256 = vmatpush.bf16.xpose.msra.mxu0 0
        %1257 = vmatpush.bf16.xpose.msra.mxu0 %v1248
        %1258 = vmatmul.bf16.gmra.mxu0 %v1245
        %v1259 = vpop.f32.mrf.mxu0
        %v1260 = vadd.f32 0.0, %v1259
        %v1261 = vpop.f32.mrf.mxu0
        %1262 = vdwg.mxu0
        %v1263 = vunpack.c.l.b16 %v960
        %v1264 = vunpack.c.l.b16 %v972
        %v1265 = vpack.c.b16 %v1264, %v1263
        %v1267 = vsel %vm1221, %v730, 0
        %v1270 = vsel %vm1221, %v1265, 0
        %1272 = vmatpush.bf16.xpose.msra.mxu0 0
        %1273 = vmatpush.bf16.xpose.msra.mxu0 0
        %1274 = vmatpush.bf16.xpose.msra.mxu0 0
        %1275 = vmatpush.bf16.xpose.msra.mxu0 0
        %1276 = vmatpush.bf16.xpose.msra.mxu0 0
        %1277 = vmatpush.bf16.xpose.msra.mxu0 0
        %1278 = vmatpush.bf16.xpose.msra.mxu0 0
        %1279 = vmatpush.bf16.xpose.msra.mxu0 %v1270
        %1280 = vmatmul.bf16.gmra.mxu0 %v1267
        %v1281 = vpop.f32.mrf.mxu0
        %v1282 = vadd.f32 0.0, %v1281
        %v1283 = vpop.f32.mrf.mxu0
        %1284 = vdwg.mxu0
        %v1285 = vunpack.c.l.b16 %v963
        %v1286 = vunpack.c.l.b16 %v975
        %v1287 = vpack.c.b16 %v1286, %v1285
        %v1289 = vsel %vm1221, %v733, 0
        %v1292 = vsel %vm1221, %v1287, 0
        %1294 = vmatpush.bf16.xpose.msra.mxu0 0
        %1295 = vmatpush.bf16.xpose.msra.mxu0 0
        %1296 = vmatpush.bf16.xpose.msra.mxu0 0
        %1297 = vmatpush.bf16.xpose.msra.mxu0 0
        %1298 = vmatpush.bf16.xpose.msra.mxu0 0
        %1299 = vmatpush.bf16.xpose.msra.mxu0 0
        %1300 = vmatpush.bf16.xpose.msra.mxu0 0
        %1301 = vmatpush.bf16.xpose.msra.mxu0 %v1292
        %1302 = vmatmul.bf16.gmra.mxu0 %v1289
        %v1303 = vpop.f32.mrf.mxu0
        %v1304 = vadd.f32 0.0, %v1303
        %v1305 = vpop.f32.mrf.mxu0
        %1306 = vdwg.mxu0
        %vm1307 = vcmask 130048
        %v1308 = vsel %vm1307, %v1238, -inf
        %1309 = vmax.xlane.f32.xlu0 %v1308
        %v1310 = vpop.xlane.xlu0 %1309
        %v1311 = vsel %vm1307, %v1260, -inf
        %1312 = vmax.xlane.f32.xlu0 %v1311
        %v1313 = vpop.xlane.xlu0 %1312
        %v1314 = vsel %vm1307, %v1282, -inf
        %1315 = vmax.xlane.f32.xlu0 %v1314
        %v1316 = vpop.xlane.xlu0 %1315
        %v1317 = vsel %vm1307, %v1304, -inf
        %1318 = vmax.xlane.f32.xlu0 %v1317
        %v1319 = vpop.xlane.xlu0 %1318
        %v1320 = vsub.f32 %v1238, %v1310
        %v1321 = vsub.f32 %v1260, %v1313
        %v1322 = vsub.f32 %v1282, %v1316
        %v1323 = vsub.f32 %v1304, %v1319
        %v1324 = vmul.f32 %v1320, 1.442695
        %v1325 = vpow.pop %v1324
        %v1326 = vmul.f32 %v1321, 1.442695
        %v1327 = vpow.pop %v1326
        %v1328 = vmul.f32 %v1322, 1.442695
        %v1329 = vpow.pop %v1328
        %v1330 = vmul.f32 %v1323, 1.442695
        %v1331 = vpow.pop %v1330
        %v1332 = vsel %vm1307, %v1325, 0.0
        %1333 = vadd.xlane.f32.xlu0 %v1332
        %v1334 = vpop.xlane.xlu0 %1333
        %v1335 = vsel %vm1307, %v1327, 0.0
        %1336 = vadd.xlane.f32.xlu0 %v1335
        %v1337 = vpop.xlane.xlu0 %1336
        %v1338 = vsel %vm1307, %v1329, 0.0
        %1339 = vadd.xlane.f32.xlu0 %v1338
        %v1340 = vpop.xlane.xlu0 %1339
        %v1341 = vsel %vm1307, %v1331, 0.0
        %1342 = vadd.xlane.f32.xlu0 %v1341
        %v1343 = vpop.xlane.xlu0 %1342
        %v1344 = vrcp.pop %v1334
        %v1345 = vrcp.pop %v1337
        %v1346 = vrcp.pop %v1340
        %v1347 = vrcp.pop %v1343
        %v1348 = vmul.f32 %v1325, %v1344
        %v1349 = vmul.f32 %v1327, %v1345
        %v1350 = vmul.f32 %v1329, %v1346
        %v1351 = vmul.f32 %v1331, %v1347
        %v1352 = vpack.c.bf16 %v1348, %v1348
        %v1353 = vpack.c.bf16 %v1349, %v1349
        %v1354 = vpack.c.bf16 %v1350, %v1350
        %v1355 = vpack.c.bf16 %v1351, %v1351
        %v1356 = vunpack.c.l.b16 %v1196
        %v1357 = vunpack.c.l.b16 %v1208
        %v1358 = vpack.c.b16 %v1357, %v1356
        %v1361 = vsel %vm1307, %v1352, 0
        %1363 = vmatpush.bf16.msra.mxu0 0
        %1364 = vmatpush.bf16.msra.mxu0 0
        %1365 = vmatpush.bf16.msra.mxu0 0
        %1366 = vmatpush.bf16.msra.mxu0 0
        %1367 = vmatpush.bf16.msra.mxu0 0
        %1368 = vmatpush.bf16.msra.mxu0 0
        %1369 = vmatpush.bf16.msra.mxu0 0
        %1370 = vmatpush.bf16.msra.mxu0 %v1358
        %1371 = vmatmul.bf16.gmra.mxu0 %v1361
        %v1372 = vpop.f32.mrf.mxu0
        %v1373 = vadd.f32 0.0, %v1372
        %v1374 = vpop.f32.mrf.mxu0
        %1375 = vdwg.mxu0
        %v1376 = vunpack.c.l.b16 %v1199
        %v1377 = vunpack.c.l.b16 %v1211
        %v1378 = vpack.c.b16 %v1377, %v1376
        %v1381 = vsel %vm1307, %v1353, 0
        %1383 = vmatpush.bf16.msra.mxu0 0
        %1384 = vmatpush.bf16.msra.mxu0 0
        %1385 = vmatpush.bf16.msra.mxu0 0
        %1386 = vmatpush.bf16.msra.mxu0 0
        %1387 = vmatpush.bf16.msra.mxu0 0
        %1388 = vmatpush.bf16.msra.mxu0 0
        %1389 = vmatpush.bf16.msra.mxu0 0
        %1390 = vmatpush.bf16.msra.mxu0 %v1378
        %1391 = vmatmul.bf16.gmra.mxu0 %v1381
        %v1392 = vpop.f32.mrf.mxu0
        %v1393 = vadd.f32 0.0, %v1392
        %v1394 = vpop.f32.mrf.mxu0
        %1395 = vdwg.mxu0
        %v1396 = vunpack.c.l.b16 %v1202
        %v1397 = vunpack.c.l.b16 %v1214
        %v1398 = vpack.c.b16 %v1397, %v1396
        %v1401 = vsel %vm1307, %v1354, 0
        %1403 = vmatpush.bf16.msra.mxu0 0
        %1404 = vmatpush.bf16.msra.mxu0 0
        %1405 = vmatpush.bf16.msra.mxu0 0
        %1406 = vmatpush.bf16.msra.mxu0 0
        %1407 = vmatpush.bf16.msra.mxu0 0
        %1408 = vmatpush.bf16.msra.mxu0 0
        %1409 = vmatpush.bf16.msra.mxu0 0
        %1410 = vmatpush.bf16.msra.mxu0 %v1398
        %1411 = vmatmul.bf16.gmra.mxu0 %v1401
        %v1412 = vpop.f32.mrf.mxu0
        %v1413 = vadd.f32 0.0, %v1412
        %v1414 = vpop.f32.mrf.mxu0
        %1415 = vdwg.mxu0
        %v1416 = vunpack.c.l.b16 %v1205
        %v1417 = vunpack.c.l.b16 %v1217
        %v1418 = vpack.c.b16 %v1417, %v1416
        %v1421 = vsel %vm1307, %v1355, 0
        %1423 = vmatpush.bf16.msra.mxu0 0
        %1424 = vmatpush.bf16.msra.mxu0 0
        %1425 = vmatpush.bf16.msra.mxu0 0
        %1426 = vmatpush.bf16.msra.mxu0 0
        %1427 = vmatpush.bf16.msra.mxu0 0
        %1428 = vmatpush.bf16.msra.mxu0 0
        %1429 = vmatpush.bf16.msra.mxu0 0
        %1430 = vmatpush.bf16.msra.mxu0 %v1418
        %1431 = vmatmul.bf16.gmra.mxu0 %v1421
        %v1432 = vpop.f32.mrf.mxu0
        %v1433 = vadd.f32 0.0, %v1432
        %v1434 = vpop.f32.mrf.mxu0
        %1435 = vdwg.mxu0
        %v1436 = vpack.c.bf16 %v1373, %v1373
        %v1437 = vpack.c.bf16 %v1393, %v1393
        %v1438 = vpack.c.bf16 %v1413, %v1413
        %v1439 = vpack.c.bf16 %v1433, %v1433
        %v1442 = vpack.i.b16 %v1437, %v1436
        %v1443 = vshrl.u32 %v1436, 16
        %v1444 = vshrl.u32 %v1437, 16
        %v1445 = vpack.i.b16 %v1444, %v1443
        %v1448 = vpack.i.b16 %v1439, %v1438
        %v1449 = vshrl.u32 %v1438, 16
        %v1450 = vshrl.u32 %v1439, 16
        %v1451 = vpack.i.b16 %v1450, %v1449
        %v1454 = vunpack.c.l.s4 1983009808
        %v1455 = vunpack.c.0.s8 %v1454
        %v1456 = vperm.slane %v1442, %v1455
        %v1459 = vunpack.c.l.s4 1983009808
        %v1460 = vunpack.c.0.s8 %v1459
        %v1461 = vperm.slane %v1448, %v1460
        %v1462 = vrot.slane %v1461, 4
        %v1463 = vsel %vm642, %v1462, %v1456
        %v1464 = vrot.slane %v1456, 4
        %v1465 = vsel %vm642, %v1461, %v1464
        %v1467 = vunpack.c.l.s4 1934713408
        %v1468 = vunpack.c.0.s8 %v1467
        %v1469 = vperm.slane %v1463, %v1468
        %v1471 = vunpack.c.l.s4 1934713408
        %v1472 = vunpack.c.0.s8 %v1471
        %v1473 = vperm.slane %v1465, %v1472
        %v1474 = vrot.slane %v1469, 4
        %v1475 = vsel %vm642, 0, %v1474
        %v1476 = vrot.slane %v1473, 4
        %v1477 = vsel %vm642, 0, %v1476
        %v1480 = vunpack.c.l.s4 1983009808
        %v1481 = vunpack.c.0.s8 %v1480
        %v1482 = vperm.slane %v1445, %v1481
        %v1485 = vunpack.c.l.s4 1983009808
        %v1486 = vunpack.c.0.s8 %v1485
        %v1487 = vperm.slane %v1451, %v1486
        %v1488 = vrot.slane %v1487, 4
        %v1489 = vsel %vm642, %v1488, %v1482
        %v1490 = vrot.slane %v1482, 4
        %v1491 = vsel %vm642, %v1487, %v1490
        %v1493 = vunpack.c.l.s4 1934713408
        %v1494 = vunpack.c.0.s8 %v1493
        %v1495 = vperm.slane %v1489, %v1494
        %v1497 = vunpack.c.l.s4 1934713408
        %v1498 = vunpack.c.0.s8 %v1497
        %v1499 = vperm.slane %v1491, %v1498
        %v1500 = vrot.slane %v1495, 4
        %v1501 = vsel %vm642, 0, %v1500
        %v1502 = vrot.slane %v1499, 4
        %v1503 = vsel %vm642, 0, %v1502
        %v1504 = vsel %vm642, %v1476, %v1469
        %v1506 = vunpack.c.l.s4 1983009808
        %v1507 = vunpack.c.0.s8 %v1506
        %v1508 = vperm.slane %v1504, %v1507
        %v1509 = vrot.slane %v1477, 4
        %v1510 = vsel %vm642, %v1509, %v1475
        %v1512 = vunpack.c.l.s4 1983009808
        %v1513 = vunpack.c.0.s8 %v1512
        %v1514 = vperm.slane %v1510, %v1513
        %v1515 = vrot.slane %v1514, 4
        %v1516 = vsel %vm642, %v1515, %v1508
        %v1518 = vunpack.c.l.s4 1934713408
        %v1519 = vunpack.c.0.s8 %v1518
        %v1520 = vperm.slane %v1516, %v1519
        %v1521 = vrot.slane %v1520, 4
        %v1522 = vsel %vm642, 0, %v1521
        %v1523 = vsel %vm642, %v1502, %v1495
        %v1525 = vunpack.c.l.s4 1983009808
        %v1526 = vunpack.c.0.s8 %v1525
        %v1527 = vperm.slane %v1523, %v1526
        %v1528 = vrot.slane %v1503, 4
        %v1529 = vsel %vm642, %v1528, %v1501
        %v1531 = vunpack.c.l.s4 1983009808
        %v1532 = vunpack.c.0.s8 %v1531
        %v1533 = vperm.slane %v1529, %v1532
        %v1534 = vrot.slane %v1533, 4
        %v1535 = vsel %vm642, %v1534, %v1527
        %v1537 = vunpack.c.l.s4 1934713408
        %v1538 = vunpack.c.0.s8 %v1537
        %v1539 = vperm.slane %v1535, %v1538
        %v1540 = vrot.slane %v1539, 4
        %v1541 = vsel %vm642, 0, %v1540
        %v1544 = vpack.i.b16 %v1539, %v1520
        %v1545 = vshrl.u32 %v1520, 16
        %v1546 = vshrl.u32 %v1539, 16
        %v1547 = vpack.i.b16 %v1546, %v1545
        %v1550 = vpack.i.b16 %v1541, %v1522
        %v1551 = vshrl.u32 %v1522, 16
        %v1552 = vshrl.u32 %v1541, 16
        %v1553 = vpack.i.b16 %v1552, %v1551
        %v1554 = vunpack.c.l.b16 %v1547
        %v1555 = vpack.c.b16 %v1554, %v1554
        %1556 = vrot.lane.b32.xlu0 %v1555, 8
        %v1557 = vpop.permute.xlu0 %1556
        %v1558 = vunpack.c.l.b16 %v1550
        %v1559 = vpack.c.b16 %v1558, %v1558
        %1560 = vrot.lane.b32.xlu0 %v1559, 16
        %v1561 = vpop.permute.xlu0 %1560
        %v1562 = vunpack.c.l.b16 %v1553
        %v1563 = vpack.c.b16 %v1562, %v1562
        %1564 = vrot.lane.b32.xlu0 %v1563, 24
        %v1565 = vpop.permute.xlu0 %1564
        %v1568 = vsel %vm1221, %v1544, %v1557
        %v1570 = vsel %vm1307, %v1568, %v1561
        %vm1571 = vcmask 195584
        %v1573 = vsel %vm1571, %v1570, %v1565
        %v1574 = vld [vmem:[#allocation13] sm:$0xf]
        %v1575 = vld [vmem:[#allocation13 + $0x4] sm:$0xf]
        %v1576 = vld [vmem:[#allocation13 + $0x8] sm:$0xf]
        %v1577 = vld [vmem:[#allocation13 + $0xc] sm:$0xf]
        %v1578 = vperm.slane %v422, 7
        %v1583 = vunpack.c.l.b16 %v1574
        %v1584 = vunpack.c.l.b16 %v1575
        %v1585 = vunpack.c.l.b16 %v1576
        %v1586 = vunpack.c.l.b16 %v1577
        %v1587 = vpack.c.b16 %v1584, %v1583
        %v1588 = vpack.c.b16 %v1586, %v1585
        %v1591 = vsel %vm423, %v1573, 0
        %1593 = vmatpush.bf16.msra.mxu0 0
        %1594 = vmatpush.bf16.msra.mxu0 0
        %1595 = vmatpush.bf16.msra.mxu0 0
        %1596 = vmatpush.bf16.msra.mxu0 0
        %1597 = vmatpush.bf16.msra.mxu0 0
        %1598 = vmatpush.bf16.msra.mxu0 0
        %1599 = vmatpush.bf16.msra.mxu0 %v1588
        %1600 = vmatpush.bf16.msra.mxu0 %v1587
        %1601 = vmatmul.bf16.gmra.mxu0 %v1591
        %v1602 = vpop.f32.mrf.mxu0
        %v1603 = vadd.f32 %v1578, %v1602
        %v1604 = vpop.f32.mrf.mxu0
        %1605 = vdwg.mxu0
        %1606 = vst.msk [vmem:[%s417] sm:$0xff] %vm423, %v1603
        %s1607 = sand.u32 %s194, 1
        %s1608 = scalar_lea.sflag [#allocation4], %s1607
        %s1609 = sand.u32 %s194, 1
        %s1610 = smul.addr %s1609, 8
        %s1611 = scalar_lea.vmem [#allocation14], %s1610
        // Predicated region
        $region77: #{tpu_custom_call.1} parent=47 // pred_check
          %p1612 = pneg %p204
        $region78: #{tpu_custom_call.1} parent=47 // pred_check_branch
          %1614 = sbr.rel (%p1612) target = $region80
        $region79: #{tpu_custom_call.1} parent=47 // pred_region
          %1616 = vsyncadd %s1608, 0
          %s1617 = smul.addr %s29, 8
          %s1618 = scalar_lea.hbm %s7, %s1617
          %s1620 = sshll.u32 %s1611, 4
          %s1621 = int_to_ptr.vmem [resolvable:$true] %s1620
          %s1622 = sshll.u32 %s1618, 4
          %s1623 = int_to_ptr.hbm [resolvable:$true] %s1622
          %1625 = dma.vmem_to_hbm [thread:$0]  %s1621, 128, %s1623, %s1608
        $region80: #{tpu_custom_call.1} parent=47 // pred_fallthru
          _
      $region48: #{tpu_custom_call.1} parent=5 // pred_fallthru
        _
      %p1626 = scmp.le.s32.totalorder 2, %s24
      // Predicated region
      $region81: #{tpu_custom_call.1} parent=5 // pred_check
        %p1627 = pneg %p1626
      $region82: #{tpu_custom_call.1} parent=5 // pred_check_branch
        %1629 = sbr.rel (%p1627) target = $region84
      $region83: #{tpu_custom_call.1} parent=5 // pred_region
        %s1630 = ssub.s32 %s24, 2
        // Predicated region
        $region85: #{tpu_custom_call.1} parent=83 // pred_check
          %p1631 = pneg %p210
        $region86: #{tpu_custom_call.1} parent=83 // pred_check_branch
          %1633 = sbr.rel (%p1631) target = $region88
        $region87: #{tpu_custom_call.1} parent=83 // pred_region
          %s1634 = sand.u32 %s195, 1
          %s1635 = scalar_lea.sflag [#allocation4], %s1634
          %s1636 = sand.u32 %s195, 1
          %s1637 = smul.addr %s1636, 8
          %s1638 = scalar_lea.vmem [#allocation14], %s1637
          %1640 = dma.done %s1635, 128
        $region88: #{tpu_custom_call.1} parent=83 // pred_fallthru
          _
      $region84: #{tpu_custom_call.1} parent=5 // pred_fallthru
        _
    $region6: #{tpu_custom_call.1} parent=1 // loop_footer
      %s28 = sadd.s32 1, %s24
    $region7: #{tpu_custom_call.1} parent=1 // loop_footer_branch
      %23 = sbr.rel target = $region3
    $region8: #{tpu_custom_call.1} parent=1 // loop_exit
      _
    %1641 = vsyncpa [#allocation3], 1
    %s1642 = scalar_lea.sflag [#allocation3], 1
    %1643 = vsyncpa %s1642, 1
    %1644 = vsyncpa [#allocation6], 1
    %s1645 = scalar_lea.sflag [#allocation6], 1
    %1646 = vsyncpa %s1645, 1
    %1647 = vsyncpa [#allocation9], 1
    %1648 = vsyncpa [#allocation12], 1
    %1649 = vsyncpa [#allocation4], 1
    %s1650 = scalar_lea.sflag [#allocation4], 1
    %1651 = vsyncpa %s1650, 1

// kernel: tpu_custom_call.1
$region0: #{tpu_custom_call.1}
  #allocation0 [shape = 'u32[]', space=smem, size = 0x4, offset = 0x4, fixed_abs, tag = 'smem constant byte address 0x4 - core index']
  #allocation1 [shape = 'u32[72,128]{1,0:T(1,128)}', space=vmem, size = 0x9000, scoped, tag = 'internal scratch']
  %s0 = inlined_call_operand.hbm [shape: f32[2,8,32], index: 0, kind: input, shape index: {}]
  %s1 = inlined_call_operand.hbm [shape: f32[2,16,32], index: 1, kind: input, shape index: {}]
  %s2 = inlined_call_operand.hbm [shape: f32[8,32], index: 2, kind: input, shape index: {}]
  %s3 = inlined_call_operand.hbm [shape: bf16[32,32], index: 3, kind: input, shape index: {}]
  %s4 = inlined_call_operand.hbm [shape: bf16[32,32], index: 4, kind: input, shape index: {}]
  %s5 = inlined_call_operand.hbm [shape: bf16[32,32], index: 5, kind: input, shape index: {}]
  %s6 = inlined_call_operand.hbm [shape: bf16[32,32], index: 6, kind: input, shape index: {}]
  %s7 = inlined_call_operand.hbm [shape: f32[2,8,32], index: 7, kind: output, shape index: {}]
  %s8 = sld [smem:[#allocation0]]
  $region89: #{tpu_custom_call.1} parent=0
    _
  %s10 = ssub.s32 1, %s8
  %s11 = scalar_select 0, %s10, %s8
  $region1: #{tpu_custom_call.1} parent=0
    #allocation2 [shape = 'u8[8192]{0}', space=vmem, size = 0x2000, scoped, tag = 'input window, operand 0']
    #allocation3 [shape = 's32[2]{0}', space=sflag, size = 0x8, scoped, tag = 'scoped memory for tpu_custom_call.1']
    #allocation4 [shape = 's32[2]{0}', space=sflag, size = 0x8, scoped, tag = 'scoped memory for tpu_custom_call.1']
    #allocation5 [shape = 'u8[16384]{0}', space=vmem, size = 0x4000, scoped, tag = 'input window, operand 1']
    #allocation6 [shape = 's32[2]{0}', space=sflag, size = 0x8, scoped, tag = 'scoped memory for tpu_custom_call.1']
    #allocation7 [shape = 'u8[4096]{0}', space=vmem, size = 0x1000, scoped, tag = 'input window, operand 2, single buffered']
    #allocation8 [shape = 'u8[8192]{0}', space=vmem, size = 0x2000, scoped, tag = 'input window, operand 3, single buffered']
    #allocation9 [shape = 's32[1]{0}', space=sflag, size = 0x4, scoped, tag = 'scoped memory for tpu_custom_call.1']
    #allocation10 [shape = 'u8[8192]{0}', space=vmem, size = 0x2000, scoped, tag = 'input window, operand 4, single buffered']
    #allocation11 [shape = 'u8[8192]{0}', space=vmem, size = 0x2000, scoped, tag = 'input window, operand 5, single buffered']
    #allocation12 [shape = 's32[1]{0}', space=sflag, size = 0x4, scoped, tag = 'scoped memory for tpu_custom_call.1']
    #allocation13 [shape = 'u8[8192]{0}', space=vmem, size = 0x2000, scoped, tag = 'input window, operand 6, single buffered']
    #allocation14 [shape = 'u8[8192]{0}', space=vmem, size = 0x2000, scoped, tag = 'output window, operand 0']
    %12 = vsyncpa [#allocation3], 0
    %s13 = scalar_lea.sflag [#allocation3], 1
    %14 = vsyncpa %s13, 0
    %15 = vsyncpa [#allocation6], 0
    %s16 = scalar_lea.sflag [#allocation6], 1
    %17 = vsyncpa %s16, 0
    %18 = vsyncpa [#allocation9], 0
    %19 = vsyncpa [#allocation12], 0
    %20 = vsyncpa [#allocation4], 0
    %s21 = scalar_lea.sflag [#allocation4], 1
    %22 = vsyncpa %s21, 0
    loop: start=0, step=1, limit=4
    $region2: #{tpu_custom_call.1} parent=1 // loop_pre_header
      _
    $region3: #{tpu_custom_call.1} parent=1 // loop_header
      %s24 = sphi 0, %s28
      %p25 = scmp.ge.s32.totalorder %s24, 4
      %s34 = sphi 0, %s36
      %s37 = sphi 0, %s34
      %s38 = sphi 0, %s37
      %s54 = sphi 0, %s38
      %s60 = sphi 0, %s62
      %s63 = sphi 0, %s60
      %s64 = sphi 0, %s63
      %s80 = sphi 0, %s64
      %s84 = sphi 0, %s84
      %s86 = sphi 0, %s84
      %s87 = sphi 0, %s86
      %s101 = sphi 0, %s87
      %s105 = sphi 0, %s105
      %s107 = sphi 0, %s105
      %s108 = sphi 0, %s107
      %s122 = sphi 0, %s108
      %s126 = sphi 0, %s126
      %s128 = sphi 0, %s126
      %s129 = sphi 0, %s128
      %s143 = sphi 0, %s129
      %s147 = sphi 0, %s147
      %s149 = sphi 0, %s147
      %s150 = sphi 0, %s149
      %s164 = sphi 0, %s150
      %s168 = sphi 0, %s168
      %s170 = sphi 0, %s168
      %s171 = sphi 0, %s170
      %s185 = sphi 0, %s171
      %s191 = sphi 0, %s193
      %s194 = sphi 0, %s191
      %s195 = sphi 0, %s194
      %s211 = sphi 0, %s195
    $region4: #{tpu_custom_call.1} parent=1 // loop_header_branch
      %27 = sbr.rel (%p25) target = $region8
    $region5: #{tpu_custom_call.1} parent=1 // loop_body
      %s29 = ssub.s32 %s24, 1
      %s30 = ssub.s32 %s24, 2
      %s31 = sadd.s32 %s24, 1
      %s32 = ssub.s32 %s24, %s31
      %p33 = scmp.eq.s32.totalorder %s32, 0
      %s35 = sadd.s32 %s34, 1
      %s36 = scalar_select %p33, %s34, %s35
      %p39 = pneg %p33
      %p40 = scmp.eq.s32.totalorder %s24, 1
      %p41 = por %p39, %p40
      %p42 = scmp.ne.s32.totalorder %s34, %s37
      %p43 = scmp.eq.s32.totalorder %s24, 0
      %p44 = por %p42, %p43
      %p45 = scmp.ne.s32.totalorder %s34, %s37
      %p46 = scmp.eq.s32.totalorder %s29, 1
      %p47 = por %p45, %p46
      %p48 = scmp.ne.s32.totalorder %s37, %s38
      %p49 = scmp.eq.s32.totalorder %s29, 0
      %p50 = por %p48, %p49
      %p51 = scmp.ne.s32.totalorder %s37, %s38
      %p52 = scmp.eq.s32.totalorder %s30, 1
      %p53 = por %p51, %p52
      %p55 = scmp.ne.s32.totalorder %s38, %s54
      %p56 = scmp.eq.s32.totalorder %s30, 0
      %p57 = por %p55, %p56
      %s58 = ssub.s32 %s24, %s31
      %p59 = scmp.eq.s32.totalorder %s58, 0
      %s61 = sadd.s32 %s60, 1
      %s62 = scalar_select %p59, %s60, %s61
      %p65 = pneg %p59
      %p66 = scmp.eq.s32.totalorder %s24, 1
      %p67 = por %p65, %p66
      %p68 = scmp.ne.s32.totalorder %s60, %s63
      %p69 = scmp.eq.s32.totalorder %s24, 0
      %p70 = por %p68, %p69
      %p71 = scmp.ne.s32.totalorder %s60, %s63
      %p72 = scmp.eq.s32.totalorder %s29, 1
      %p73 = por %p71, %p72
      %p74 = scmp.ne.s32.totalorder %s63, %s64
      %p75 = scmp.eq.s32.totalorder %s29, 0
      %p76 = por %p74, %p75
      %p77 = scmp.ne.s32.totalorder %s63, %s64
      %p78 = scmp.eq.s32.totalorder %s30, 1
      %p79 = por %p77, %p78
      %p81 = scmp.ne.s32.totalorder %s64, %s80
      %p82 = scmp.eq.s32.totalorder %s30, 0
      %p83 = por %p81, %p82
      %s85 = sadd.s32 %s84, 1
      %p88 = scmp.eq.s32.totalorder %s24, 1
      %p89 = scmp.ne.s32.totalorder %s84, %s86
      %p90 = scmp.eq.s32.totalorder %s24, 0
      %p91 = por %p89, %p90
      %p92 = scmp.ne.s32.totalorder %s84, %s86
      %p93 = scmp.eq.s32.totalorder %s29, 1
      %p94 = por %p92, %p93
      %p95 = scmp.ne.s32.totalorder %s86, %s87
      %p96 = scmp.eq.s32.totalorder %s29, 0
      %p97 = por %p95, %p96
      %p98 = scmp.ne.s32.totalorder %s86, %s87
      %p99 = scmp.eq.s32.totalorder %s30, 1
      %p100 = por %p98, %p99
      %p102 = scmp.ne.s32.totalorder %s87, %s101
      %p103 = scmp.eq.s32.totalorder %s30, 0
      %p104 = por %p102, %p103
      %s106 = sadd.s32 %s105, 1
      %p109 = scmp.eq.s32.totalorder %s24, 1
      %p110 = scmp.ne.s32.totalorder %s105, %s107
      %p111 = scmp.eq.s32.totalorder %s24, 0
      %p112 = por %p110, %p111
      %p113 = scmp.ne.s32.totalorder %s105, %s107
      %p114 = scmp.eq.s32.totalorder %s29, 1
      %p115 = por %p113, %p114
      %p116 = scmp.ne.s32.totalorder %s107, %s108
      %p117 = scmp.eq.s32.totalorder %s29, 0
      %p118 = por %p116, %p117
      %p119 = scmp.ne.s32.totalorder %s107, %s108
      %p120 = scmp.eq.s32.totalorder %s30, 1
      %p121 = por %p119, %p120
      %p123 = scmp.ne.s32.totalorder %s108, %s122
      %p124 = scmp.eq.s32.totalorder %s30, 0
      %p125 = por %p123, %p124
      %s127 = sadd.s32 %s126, 1
      %p130 = scmp.eq.s32.totalorder %s24, 1
      %p131 = scmp.ne.s32.totalorder %s126, %s128
      %p132 = scmp.eq.s32.totalorder %s24, 0
      %p133 = por %p131, %p132
      %p134 = scmp.ne.s32.totalorder %s126, %s128
      %p135 = scmp.eq.s32.totalorder %s29, 1
      %p136 = por %p134, %p135
      %p137 = scmp.ne.s32.totalorder %s128, %s129
      %p138 = scmp.eq.s32.totalorder %s29, 0
      %p139 = por %p137, %p138
      %p140 = scmp.ne.s32.totalorder %s128, %s129
      %p141 = scmp.eq.s32.totalorder %s30, 1
      %p142 = por %p140, %p141
      %p144 = scmp.ne.s32.totalorder %s129, %s143
      %p145 = scmp.eq.s32.totalorder %s30, 0
      %p146 = por %p144, %p145
      %s148 = sadd.s32 %s147, 1
      %p151 = scmp.eq.s32.totalorder %s24, 1
      %p152 = scmp.ne.s32.totalorder %s147, %s149
      %p153 = scmp.eq.s32.totalorder %s24, 0
      %p154 = por %p152, %p153
      %p155 = scmp.ne.s32.totalorder %s147, %s149
      %p156 = scmp.eq.s32.totalorder %s29, 1
      %p157 = por %p155, %p156
      %p158 = scmp.ne.s32.totalorder %s149, %s150
      %p159 = scmp.eq.s32.totalorder %s29, 0
      %p160 = por %p158, %p159
      %p161 = scmp.ne.s32.totalorder %s149, %s150
      %p162 = scmp.eq.s32.totalorder %s30, 1
      %p163 = por %p161, %p162
      %p165 = scmp.ne.s32.totalorder %s150, %s164
      %p166 = scmp.eq.s32.totalorder %s30, 0
      %p167 = por %p165, %p166
      %s169 = sadd.s32 %s168, 1
      %p172 = scmp.eq.s32.totalorder %s24, 1
      %p173 = scmp.ne.s32.totalorder %s168, %s170
      %p174 = scmp.eq.s32.totalorder %s24, 0
      %p175 = por %p173, %p174
      %p176 = scmp.ne.s32.totalorder %s168, %s170
      %p177 = scmp.eq.s32.totalorder %s29, 1
      %p178 = por %p176, %p177
      %p179 = scmp.ne.s32.totalorder %s170, %s171
      %p180 = scmp.eq.s32.totalorder %s29, 0
      %p181 = por %p179, %p180
      %p182 = scmp.ne.s32.totalorder %s170, %s171
      %p183 = scmp.eq.s32.totalorder %s30, 1
      %p184 = por %p182, %p183
      %p186 = scmp.ne.s32.totalorder %s171, %s185
      %p187 = scmp.eq.s32.totalorder %s30, 0
      %p188 = por %p186, %p187
      %s189 = ssub.s32 %s24, %s31
      %p190 = scmp.eq.s32.totalorder %s189, 0
      %s192 = sadd.s32 %s191, 1
      %s193 = scalar_select %p190, %s191, %s192
      %p196 = pneg %p190
      %p197 = scmp.eq.s32.totalorder %s24, 1
      %p198 = por %p196, %p197
      %p199 = scmp.ne.s32.totalorder %s191, %s194
      %p200 = scmp.eq.s32.totalorder %s24, 0
      %p201 = por %p199, %p200
      %p202 = scmp.ne.s32.totalorder %s191, %s194
      %p203 = scmp.eq.s32.totalorder %s29, 1
      %p204 = por %p202, %p203
      %p205 = scmp.ne.s32.totalorder %s194, %s195
      %p206 = scmp.eq.s32.totalorder %s29, 0
      %p207 = por %p205, %p206
      %p208 = scmp.ne.s32.totalorder %s194, %s195
      %p209 = scmp.eq.s32.totalorder %s30, 1
      %p210 = por %p208, %p209
      %p212 = scmp.ne.s32.totalorder %s195, %s211
      %p213 = scmp.eq.s32.totalorder %s30, 0
      %p214 = por %p212, %p213
      %p215 = scmp.le.s32.totalorder 1, %s24
      %p216 = scmp.lt.s32.totalorder %s24, 3
      %p217 = pnand %p215, %p216
      %p218 = pneg %p217
      // Predicated region
      $region9: #{tpu_custom_call.1} parent=5 // pred_check
        _
      $region10: #{tpu_custom_call.1} parent=5 // pred_check_branch
        %220 = sbr.rel (%p217) target = $region12
      $region11: #{tpu_custom_call.1} parent=5 // pred_region
        %s221 = ssub.s32 %s24, 1
        // Predicated region
        $region13: #{tpu_custom_call.1} parent=11 // pred_check
          %p222 = pneg %p97
        $region14: #{tpu_custom_call.1} parent=11 // pred_check_branch
          %224 = sbr.rel (%p222) target = $region16
        $region15: #{tpu_custom_call.1} parent=11 // pred_region
          %226 = vsyncadd [#allocation6], 0
          %s228 = sshll.u32 %s2, 4
          %s229 = int_to_ptr.hbm [resolvable:$true] %s228
          %s230 = sshll.u32 [#allocation7], 4
          %s231 = int_to_ptr.vmem [resolvable:$true] %s230
          %233 = dma.hbm_to_vmem [thread:$0]  %s229, 128, %s231, [#allocation6]
        $region16: #{tpu_custom_call.1} parent=11 // pred_fallthru
          _
        // Predicated region
        $region17: #{tpu_custom_call.1} parent=11 // pred_check
          %p234 = pneg %p118
        $region18: #{tpu_custom_call.1} parent=11 // pred_check_branch
          %236 = sbr.rel (%p234) target = $region20
        $region19: #{tpu_custom_call.1} parent=11 // pred_region
          %238 = vsyncadd [#allocation9], 0
          %s239 = sshll.u32 %s3, 4
          %s240 = int_to_ptr.hbm [resolvable:$true] %s239
          %s241 = sshll.u32 [#allocation8], 4
          %s242 = int_to_ptr.vmem [resolvable:$true] %s241
          %247 = dma.hbm_to_vmem [thread:$0]  %s240, 256, %s242, [#allocation9], 64, 64, 4
        $region20: #{tpu_custom_call.1} parent=11 // pred_fallthru
          _
        // Predicated region
        $region21: #{tpu_custom_call.1} parent=11 // pred_check
          %p248 = pneg %p139
        $region22: #{tpu_custom_call.1} parent=11 // pred_check_branch
          %250 = sbr.rel (%p248) target = $region24
        $region23: #{tpu_custom_call.1} parent=11 // pred_region
          %252 = vsyncadd [#allocation9], 0
          %s253 = sshll.u32 %s4, 4
          %s254 = int_to_ptr.hbm [resolvable:$true] %s253
          %s255 = sshll.u32 [#allocation10], 4
          %s256 = int_to_ptr.vmem [resolvable:$true] %s255
          %261 = dma.hbm_to_vmem [thread:$0]  %s254, 256, %s256, [#allocation9], 64, 64, 4
        $region24: #{tpu_custom_call.1} parent=11 // pred_fallthru
          _
        // Predicated region
        $region25: #{tpu_custom_call.1} parent=11 // pred_check
          %p262 = pneg %p160
        $region26: #{tpu_custom_call.1} parent=11 // pred_check_branch
          %264 = sbr.rel (%p262) target = $region28
        $region27: #{tpu_custom_call.1} parent=11 // pred_region
          %266 = vsyncadd [#allocation12], 0
          %s267 = sshll.u32 %s5, 4
          %s268 = int_to_ptr.hbm [resolvable:$true] %s267
          %s269 = sshll.u32 [#allocation11], 4
          %s270 = int_to_ptr.vmem [resolvable:$true] %s269
          %275 = dma.hbm_to_vmem [thread:$0]  %s268, 256, %s270, [#allocation12], 64, 64, 4
        $region28: #{tpu_custom_call.1} parent=11 // pred_fallthru
          _
        // Predicated region
        $region29: #{tpu_custom_call.1} parent=11 // pred_check
          %p276 = pneg %p181
        $region30: #{tpu_custom_call.1} parent=11 // pred_check_branch
          %278 = sbr.rel (%p276) target = $region32
        $region31: #{tpu_custom_call.1} parent=11 // pred_region
          %280 = vsyncadd [#allocation12], 0
          %s281 = sshll.u32 %s6, 4
          %s282 = int_to_ptr.hbm [resolvable:$true] %s281
          %s283 = sshll.u32 [#allocation13], 4
          %s284 = int_to_ptr.vmem [resolvable:$true] %s283
          %289 = dma.hbm_to_vmem [thread:$0]  %s282, 256, %s284, [#allocation12], 64, 64, 4
        $region32: #{tpu_custom_call.1} parent=11 // pred_fallthru
          _
      $region12: #{tpu_custom_call.1} parent=5 // pred_fallthru
        _
      %p290 = scmp.lt.s32.totalorder %s24, 2
      // Predicated region
      $region33: #{tpu_custom_call.1} parent=5 // pred_check
        %p291 = pneg %p290
      $region34: #{tpu_custom_call.1} parent=5 // pred_check_branch
        %293 = sbr.rel (%p291) target = $region36
      $region35: #{tpu_custom_call.1} parent=5 // pred_region
        // Predicated region
        $region37: #{tpu_custom_call.1} parent=35 // pred_check
          %p294 = pneg %p44
        $region38: #{tpu_custom_call.1} parent=35 // pred_check_branch
          %296 = sbr.rel (%p294) target = $region40
        $region39: #{tpu_custom_call.1} parent=35 // pred_region
          %s297 = sand.u32 %s34, 1
          %s298 = scalar_lea.sflag [#allocation3], %s297
          %s299 = sand.u32 %s34, 1
          %s300 = smul.addr %s299, 8
          %s301 = scalar_lea.vmem [#allocation2], %s300
          %303 = vsyncadd %s298, 0
          %s304 = smul.addr %s24, 8
          %s305 = scalar_lea.hbm %s0, %s304
          %s307 = sshll.u32 %s305, 4
          %s308 = int_to_ptr.hbm [resolvable:$true] %s307
          %s309 = sshll.u32 %s301, 4
          %s310 = int_to_ptr.vmem [resolvable:$true] %s309
          %312 = dma.hbm_to_vmem [thread:$0]  %s308, 128, %s310, %s298
        $region40: #{tpu_custom_call.1} parent=35 // pred_fallthru
          _
        // Predicated region
        $region41: #{tpu_custom_call.1} parent=35 // pred_check
          %p313 = pneg %p70
        $region42: #{tpu_custom_call.1} parent=35 // pred_check_branch
          %315 = sbr.rel (%p313) target = $region44
        $region43: #{tpu_custom_call.1} parent=35 // pred_region
          %s316 = sand.u32 %s24, 1
          %s317 = scalar_lea.sflag [#allocation6], %s316
          %s318 = sand.u32 %s60, 1
          %s319 = smul.addr %s318, 16
          %s320 = scalar_lea.vmem [#allocation5], %s319
          %322 = vsyncadd %s317, 0
          %s323 = smul.addr %s24, 2
          %s324 = smul.addr %s323, 8
          %s325 = scalar_lea.hbm %s1, %s324
          %s326 = sshll.u32 %s325, 4
          %s327 = int_to_ptr.hbm [resolvable:$true] %s326
          %s328 = sshll.u32 %s320, 4
          %s329 = int_to_ptr.vmem [resolvable:$true] %s328
          %334 = dma.hbm_to_vmem [thread:$0]  %s327, 256, %s329, %s317, 128, 128, 8
        $region44: #{tpu_custom_call.1} parent=35 // pred_fallthru
          _
      $region36: #{tpu_custom_call.1} parent=5 // pred_fallthru
        _
      %p335 = scmp.le.s32.totalorder 1, %s24
      %p336 = scmp.lt.s32.totalorder %s24, 3
      %p337 = pnand %p335, %p336
      %p338 = pneg %p337
      // Predicated region
      $region45: #{tpu_custom_call.1} parent=5 // pred_check
        _
      $region46: #{tpu_custom_call.1} parent=5 // pred_check_branch
        %340 = sbr.rel (%p337) target = $region48
      $region47: #{tpu_custom_call.1} parent=5 // pred_region
        %s341 = ssub.s32 %s24, 1
        %s342 = sand.u32 %s37, 1
        %s343 = scalar_lea.sflag [#allocation3], %s342
        %s344 = sand.u32 %s37, 1
        %s345 = smul.addr %s344, 8
        %s346 = scalar_lea.vmem [#allocation2], %s345
        // Predicated region
        $region49: #{tpu_custom_call.1} parent=47 // pred_check
          %p347 = pneg %p50
        $region50: #{tpu_custom_call.1} parent=47 // pred_check_branch
          %349 = sbr.rel (%p347) target = $region52
        $region51: #{tpu_custom_call.1} parent=47 // pred_region
          %351 = dma.done %s343, 128
        $region52: #{tpu_custom_call.1} parent=47 // pred_fallthru
          _
        %s352 = sand.u32 %s29, 1
        %s353 = scalar_lea.sflag [#allocation6], %s352
        %s354 = sand.u32 %s63, 1
        %s355 = smul.addr %s354, 16
        %s356 = scalar_lea.vmem [#allocation5], %s355
        // Predicated region
        $region53: #{tpu_custom_call.1} parent=47 // pred_check
          %p357 = pneg %p76
        $region54: #{tpu_custom_call.1} parent=47 // pred_check_branch
          %359 = sbr.rel (%p357) target = $region56
        $region55: #{tpu_custom_call.1} parent=47 // pred_region
          %361 = dma.done %s353, 256
        $region56: #{tpu_custom_call.1} parent=47 // pred_fallthru
          _
        // Predicated region
        $region57: #{tpu_custom_call.1} parent=47 // pred_check
          %p362 = pneg %p97
        $region58: #{tpu_custom_call.1} parent=47 // pred_check_branch
          %364 = sbr.rel (%p362) target = $region60
        $region59: #{tpu_custom_call.1} parent=47 // pred_region
          %366 = dma.done [#allocation6], 128
        $region60: #{tpu_custom_call.1} parent=47 // pred_fallthru
          _
        // Predicated region
        $region61: #{tpu_custom_call.1} parent=47 // pred_check
          %p367 = pneg %p118
        $region62: #{tpu_custom_call.1} parent=47 // pred_check_branch
          %369 = sbr.rel (%p367) target = $region64
        $region63: #{tpu_custom_call.1} parent=47 // pred_region
          %371 = dma.done [#allocation9], 256
        $region64: #{tpu_custom_call.1} parent=47 // pred_fallthru
          _
        // Predicated region
        $region65: #{tpu_custom_call.1} parent=47 // pred_check
          %p372 = pneg %p139
        $region66: #{tpu_custom_call.1} parent=47 // pred_check_branch
          %374 = sbr.rel (%p372) target = $region68
        $region67: #{tpu_custom_call.1} parent=47 // pred_region
          %376 = dma.done [#allocation9], 256
        $region68: #{tpu_custom_call.1} parent=47 // pred_fallthru
          _
        // Predicated region
        $region69: #{tpu_custom_call.1} parent=47 // pred_check
          %p377 = pneg %p160
        $region70: #{tpu_custom_call.1} parent=47 // pred_check_branch
          %379 = sbr.rel (%p377) target = $region72
        $region71: #{tpu_custom_call.1} parent=47 // pred_region
          %381 = dma.done [#allocation12], 256
        $region72: #{tpu_custom_call.1} parent=47 // pred_fallthru
          _
        // Predicated region
        $region73: #{tpu_custom_call.1} parent=47 // pred_check
          %p382 = pneg %p181
        $region74: #{tpu_custom_call.1} parent=47 // pred_check_branch
          %384 = sbr.rel (%p382) target = $region76
        $region75: #{tpu_custom_call.1} parent=47 // pred_region
          %386 = dma.done [#allocation12], 256
        $region76: #{tpu_custom_call.1} parent=47 // pred_fallthru
          _
        %s387 = sand.u32 %s37, 1
        %s388 = scalar_lea.sflag [#allocation3], %s387
        %s389 = sand.u32 %s37, 1
        %s390 = smul.addr %s389, 8
        %s391 = scalar_lea.vmem [#allocation2], %s390
        %p392 = pneg %p50
        %p393 = pneg %p47
        %s394 = sand.u32 %s29, 1
        %s395 = scalar_lea.sflag [#allocation6], %s394
        %s396 = sand.u32 %s63, 1
        %s397 = smul.addr %s396, 16
        %s398 = scalar_lea.vmem [#allocation5], %s397
        %p399 = pneg %p76
        %p400 = pneg %p73
        %p401 = pneg %p97
        %p402 = pneg %p94
        %p403 = pneg %p118
        %p404 = pneg %p115
        %p405 = pneg %p139
        %p406 = pneg %p136
        %p407 = pneg %p160
        %p408 = pneg %p157
        %p409 = pneg %p181
        %p410 = pneg %p178
        %p411 = pneg %p207
        %p412 = pneg %p204
        %s413 = sand.u32 %s194, 1
        %s414 = scalar_lea.sflag [#allocation4], %s413
        %s415 = sand.u32 %s194, 1
        %s416 = smul.addr %s415, 8
        %s417 = scalar_lea.vmem [#allocation14], %s416
        %v419 = vld [vmem:[%s346] sm:$0xff]
        %v420 = vld [vmem:[%s356] sm:$0xff]
        %v421 = vld [vmem:[%s356 + $0x8] sm:$0xff]
        %v422 = vld [vmem:[#allocation7] sm:$0xff]
        %vm423 = vcmask 261120
        %v424 = vsel %vm423, %v419, 0.0
        %425 = vadd.xlane.f32.xlu0 %v424
        %v426 = vpop.xlane.xlu0 %425
        %v427 = vrcp.pop 32.0
        %v428 = vmul.f32 32.0, %v427
        %v429 = vsub.f32 1.0, %v428
        %v430 = vmul.f32 %v427, %v429
        %v431 = vadd.f32 %v427, %v430
        %vm432 = vweird.f32 %v427
        %v433 = vsel %vm432, %v427, %v431
        %v434 = vmul.f32 %v426, %v433
        %v435 = vsub.f32 %v419, %v434
        %v436 = vmul.f32 %v435, %v435
        %v437 = vsel %vm423, %v436, 0.0
        %438 = vadd.xlane.f32.xlu0 %v437
        %v439 = vpop.xlane.xlu0 %438
        %v440 = vmul.f32 %v439, %v433
        %v441 = vadd.f32 %v440, 1e-05
        %v442 = vrsqrt.pop %v441
        %v443 = vmul.f32 %v442, %v441
        %v444 = vmul.f32 %v443, %v442
        %v445 = vmul.f32 0.5, %v444
        %v446 = vsub.f32 1.5, %v445
        %v447 = vmul.f32 %v442, %v446
        %vm448 = vweird.f32 %v441
        %vm449 = vweird.f32 %v442
        %vm450 = vmor %vm448, %vm449
        %v451 = vsel %vm450, %v442, %v447
        %v452 = vmul.f32 %v435, %v451
        %v453 = vperm.slane %v422, 0
        %v454 = vmul.f32 %v452, %v453
        %v455 = vperm.slane %v422, 1
        %v456 = vadd.f32 %v454, %v455
        %v457 = vpack.c.bf16 %v456, %v456
        %v458 = vsel %vm423, %v420, 0.0
        %459 = vadd.xlane.f32.xlu0 %v458
        %v460 = vpop.xlane.xlu0 %459
        %v461 = vsel %vm423, %v421, 0.0
        %462 = vadd.xlane.f32.xlu0 %v461
        %v463 = vpop.xlane.xlu0 %462
        %v464 = vmul.f32 %v460, %v433
        %v465 = vmul.f32 %v463, %v433
        %v466 = vsub.f32 %v420, %v464
        %v467 = vsub.f32 %v421, %v465
        %v468 = vmul.f32 %v466, %v466
        %v469 = vmul.f32 %v467, %v467
        %v470 = vsel %vm423, %v468, 0.0
        %471 = vadd.xlane.f32.xlu0 %v470
        %v472 = vpop.xlane.xlu0 %471
        %v473 = vsel %vm423, %v469, 0.0
        %474 = vadd.xlane.f32.xlu0 %v473
        %v475 = vpop.xlane.xlu0 %474
        %v476 = vmul.f32 %v472, %v433
        %v477 = vmul.f32 %v475, %v433
        %v478 = vadd.f32 %v476, 1e-05
        %v479 = vadd.f32 %v477, 1e-05
        %v480 = vrsqrt.pop %v478
        %v481 = vmul.f32 %v480, %v478
        %v482 = vmul.f32 %v481, %v480
        %v483 = vmul.f32 0.5, %v482
        %v484 = vsub.f32 1.5, %v483
        %v485 = vmul.f32 %v480, %v484
        %vm486 = vweird.f32 %v478
        %vm487 = vweird.f32 %v480
        %vm488 = vmor %vm486, %vm487
        %v489 = vsel %vm488, %v480, %v485
        %v490 = vrsqrt.pop %v479
        %v491 = vmul.f32 %v490, %v479
        %v492 = vmul.f32 %v491, %v490
        %v493 = vmul.f32 0.5, %v492
        %v494 = vsub.f32 1.5, %v493
        %v495 = vmul.f32 %v490, %v494
        %vm496 = vweird.f32 %v479
        %vm497 = vweird.f32 %v490
        %vm498 = vmor %vm496, %vm497
        %v499 = vsel %vm498, %v490, %v495
        %v500 = vmul.f32 %v466, %v489
        %v501 = vmul.f32 %v467, %v499
        %v502 = vperm.slane %v422, 2
        %v503 = vmul.f32 %v500, %v502
        %v504 = vmul.f32 %v501, %v502
        %v505 = vperm.slane %v422, 3
        %v506 = vadd.f32 %v503, %v505
        %v507 = vadd.f32 %v504, %v505
        %v508 = vpack.c.bf16 %v507, %v506
        %v509 = vld [vmem:[#allocation8] sm:$0xf]
        %v510 = vld [vmem:[#allocation8 + $0x4] sm:$0xf]
        %v511 = vld [vmem:[#allocation8 + $0x8] sm:$0xf]
        %v512 = vld [vmem:[#allocation8 + $0xc] sm:$0xf]
        %v513 = vperm.slane %v422, 4
        %v518 = vunpack.c.l.b16 %v509
        %v519 = vunpack.c.l.b16 %v510
        %v520 = vunpack.c.l.b16 %v511
        %v521 = vunpack.c.l.b16 %v512
        %v522 = vpack.c.b16 %v519, %v518
        %v523 = vpack.c.b16 %v521, %v520
        %v527 = vsel %vm423, %v457, 0
        %529 = vmatpush.bf16.msra.mxu0 0
        %530 = vmatpush.bf16.msra.mxu0 0
        %531 = vmatpush.bf16.msra.mxu0 0
        %532 = vmatpush.bf16.msra.mxu0 0
        %533 = vmatpush.bf16.msra.mxu0 0
        %534 = vmatpush.bf16.msra.mxu0 0
        %535 = vmatpush.bf16.msra.mxu0 %v523
        %536 = vmatpush.bf16.msra.mxu0 %v522
        %537 = vmatmul.bf16.gmra.mxu0 %v527
        %v538 = vpop.f32.mrf.mxu0
        %v539 = vadd.f32 %v513, %v538
        %v540 = vpop.f32.mrf.mxu0
        %541 = vdwg.mxu0
        %v542 = vpack.c.bf16 %v539, %v539
        %v543 = vld [vmem:[#allocation10] sm:$0xf]
        %v544 = vld [vmem:[#allocation10 + $0x4] sm:$0xf]
        %v545 = vld [vmem:[#allocation10 + $0x8] sm:$0xf]
        %v546 = vld [vmem:[#allocation10 + $0xc] sm:$0xf]
        %v547 = vperm.slane %v422, 5
        %v552 = vunpack.c.l.b16 %v543
        %v553 = vunpack.c.l.b16 %v544
        %v554 = vunpack.c.l.b16 %v545
        %v555 = vunpack.c.l.b16 %v546
        %v556 = vpack.c.b16 %v553, %v552
        %v557 = vpack.c.b16 %v555, %v554
        %v561 = vsel %vm423, %v508, 0
        %563 = vmatpush.bf16.msra.mxu0 0
        %564 = vmatpush.bf16.msra.mxu0 0
        %565 = vmatpush.bf16.msra.mxu0 0
        %566 = vmatpush.bf16.msra.mxu0 0
        %567 = vmatpush.bf16.msra.mxu0 0
        %568 = vmatpush.bf16.msra.mxu0 0
        %569 = vmatpush.bf16.msra.mxu0 %v557
        %570 = vmatpush.bf16.msra.mxu0 %v556
        %571 = vmatmul.bf16.gmra.mxu0 %v561
        %v572 = vpop.f32.mrf.mxu0
        %v573 = vadd.f32 %v547, %v572
        %v574 = vpop.f32.mrf.mxu0
        %v575 = vadd.f32 %v547, %v574
        %576 = vdwg.mxu0
        %v577 = vpack.c.bf16 %v573, %v573
        %v578 = vpack.c.bf16 %v575, %v575
        %v579 = vld [vmem:[#allocation11] sm:$0xf]
        %v580 = vld [vmem:[#allocation11 + $0x4] sm:$0xf]
        %v581 = vld [vmem:[#allocation11 + $0x8] sm:$0xf]
        %v582 = vld [vmem:[#allocation11 + $0xc] sm:$0xf]
        %v583 = vperm.slane %v422, 6
        %v588 = vunpack.c.l.b16 %v579
        %v589 = vunpack.c.l.b16 %v580
        %v590 = vunpack.c.l.b16 %v581
        %v591 = vunpack.c.l.b16 %v582
        %v592 = vpack.c.b16 %v589, %v588
        %v593 = vpack.c.b16 %v591, %v590
        %596 = vmatpush.bf16.msra.mxu0 0
        %597 = vmatpush.bf16.msra.mxu0 0
        %598 = vmatpush.bf16.msra.mxu0 0
        %599 = vmatpush.bf16.msra.mxu0 0
        %600 = vmatpush.bf16.msra.mxu0 0
        %601 = vmatpush.bf16.msra.mxu0 0
        %602 = vmatpush.bf16.msra.mxu0 %v593
        %603 = vmatpush.bf16.msra.mxu0 %v592
        %604 = vmatmul.bf16.gmra.mxu0 %v561
        %v605 = vpop.f32.mrf.mxu0
        %v606 = vadd.f32 %v583, %v605
        %v607 = vpop.f32.mrf.mxu0
        %v608 = vadd.f32 %v583, %v607
        %609 = vdwg.mxu0
        %v610 = vpack.c.bf16 %v606, %v606
        %v611 = vpack.c.bf16 %v608, %v608
        %613 = vrot.lane.b32.xlu0 %v542, 120
        %v614 = vpop.permute.xlu0 %613
        %615 = vrot.lane.b32.xlu0 %v542, 112
        %v616 = vpop.permute.xlu0 %615
        %617 = vrot.lane.b32.xlu0 %v542, 104
        %v618 = vpop.permute.xlu0 %617
        %v621 = vpack.i.b16 %v614, %v542
        %v622 = vshrl.u32 %v542, 16
        %v623 = vshrl.u32 %v614, 16
        %v624 = vpack.i.b16 %v623, %v622
        %v627 = vpack.i.b16 %v618, %v616
        %v628 = vshrl.u32 %v616, 16
        %v629 = vshrl.u32 %v618, 16
        %v630 = vpack.i.b16 %v629, %v628
        %v633 = vunpack.c.l.s4 1983009808
        %v634 = vunpack.c.0.s8 %v633
        %v635 = vperm.slane %v621, %v634
        %v638 = vunpack.c.l.s4 1983009808
        %v639 = vunpack.c.0.s8 %v638
        %v640 = vperm.slane %v627, %v639
        %v641 = vrot.slane %v640, 4
        %vm642 = vcmask 1047556
        %v643 = vsel %vm642, %v641, %v635
        %v644 = vrot.slane %v635, 4
        %v645 = vsel %vm642, %v640, %v644
        %v647 = vunpack.c.l.s4 1934713408
        %v648 = vunpack.c.0.s8 %v647
        %v649 = vperm.slane %v643, %v648
        %v651 = vunpack.c.l.s4 1934713408
        %v652 = vunpack.c.0.s8 %v651
        %v653 = vperm.slane %v645, %v652
        %v654 = vrot.slane %v649, 4
        %v655 = vsel %vm642, 0, %v654
        %v656 = vrot.slane %v653, 4
        %v657 = vsel %vm642, 0, %v656
        %v660 = vunpack.c.l.s4 1983009808
        %v661 = vunpack.c.0.s8 %v660
        %v662 = vperm.slane %v624, %v661
        %v665 = vunpack.c.l.s4 1983009808
        %v666 = vunpack.c.0.s8 %v665
        %v667 = vperm.slane %v630, %v666
        %v668 = vrot.slane %v667, 4
        %v669 = vsel %vm642, %v668, %v662
        %v670 = vrot.slane %v662, 4
        %v671 = vsel %vm642, %v667, %v670
        %v673 = vunpack.c.l.s4 1934713408
        %v674 = vunpack.c.0.s8 %v673
        %v675 = vperm.slane %v669, %v674
        %v677 = vunpack.c.l.s4 1934713408
        %v678 = vunpack.c.0.s8 %v677
        %v679 = vperm.slane %v671, %v678
        %v680 = vrot.slane %v675, 4
        %v681 = vsel %vm642, 0, %v680
        %v682 = vrot.slane %v679, 4
        %v683 = vsel %vm642, 0, %v682
        %v684 = vsel %vm642, %v656, %v649
        %v686 = vunpack.c.l.s4 1983009808
        %v687 = vunpack.c.0.s8 %v686
        %v688 = vperm.slane %v684, %v687
        %v689 = vrot.slane %v657, 4
        %v690 = vsel %vm642, %v689, %v655
        %v692 = vunpack.c.l.s4 1983009808
        %v693 = vunpack.c.0.s8 %v692
        %v694 = vperm.slane %v690, %v693
        %v695 = vrot.slane %v694, 4
        %v696 = vsel %vm642, %v695, %v688
        %v698 = vunpack.c.l.s4 1934713408
        %v699 = vunpack.c.0.s8 %v698
        %v700 = vperm.slane %v696, %v699
        %v701 = vrot.slane %v700, 4
        %v702 = vsel %vm642, 0, %v701
        %v703 = vsel %vm642, %v682, %v675
        %v705 = vunpack.c.l.s4 1983009808
        %v706 = vunpack.c.0.s8 %v705
        %v707 = vperm.slane %v703, %v706
        %v708 = vrot.slane %v683, 4
        %v709 = vsel %vm642, %v708, %v681
        %v711 = vunpack.c.l.s4 1983009808
        %v712 = vunpack.c.0.s8 %v711
        %v713 = vperm.slane %v709, %v712
        %v714 = vrot.slane %v713, 4
        %v715 = vsel %vm642, %v714, %v707
        %v717 = vunpack.c.l.s4 1934713408
        %v718 = vunpack.c.0.s8 %v717
        %v719 = vperm.slane %v715, %v718
        %v720 = vrot.slane %v719, 4
        %v721 = vsel %vm642, 0, %v720
        %v724 = vpack.i.b16 %v719, %v700
        %v725 = vshrl.u32 %v700, 16
        %v726 = vshrl.u32 %v719, 16
        %v727 = vpack.i.b16 %v726, %v725
        %v730 = vpack.i.b16 %v721, %v702
        %v731 = vshrl.u32 %v702, 16
        %v732 = vshrl.u32 %v721, 16
        %v733 = vpack.i.b16 %v732, %v731
        %736 = vrot.lane.b32.xlu0 %v577, 120
        %v737 = vpop.permute.xlu0 %736
        %738 = vrot.lane.b32.xlu0 %v578, 120
        %v739 = vpop.permute.xlu0 %738
        %740 = vrot.lane.b32.xlu0 %v577, 112
        %v741 = vpop.permute.xlu0 %740
        %742 = vrot.lane.b32.xlu0 %v578, 112
        %v743 = vpop.permute.xlu0 %742
        %744 = vrot.lane.b32.xlu0 %v577, 104
        %v745 = vpop.permute.xlu0 %744
        %746 = vrot.lane.b32.xlu0 %v578, 104
        %v747 = vpop.permute.xlu0 %746
        %v750 = vpack.i.b16 %v737, %v577
        %v751 = vshrl.u32 %v577, 16
        %v752 = vshrl.u32 %v737, 16
        %v753 = vpack.i.b16 %v752, %v751
        %v756 = vpack.i.b16 %v745, %v741
        %v757 = vshrl.u32 %v741, 16
        %v758 = vshrl.u32 %v745, 16
        %v759 = vpack.i.b16 %v758, %v757
        %v762 = vpack.i.b16 %v739, %v578
        %v763 = vshrl.u32 %v578, 16
        %v764 = vshrl.u32 %v739, 16
        %v765 = vpack.i.b16 %v764, %v763
        %v768 = vpack.i.b16 %v747, %v743
        %v769 = vshrl.u32 %v743, 16
        %v770 = vshrl.u32 %v747, 16
        %v771 = vpack.i.b16 %v770, %v769
        %v774 = vunpack.c.l.s4 1983009808
        %v775 = vunpack.c.0.s8 %v774
        %v776 = vperm.slane %v750, %v775
        %v779 = vunpack.c.l.s4 1983009808
        %v780 = vunpack.c.0.s8 %v779
        %v781 = vperm.slane %v756, %v780
        %v782 = vrot.slane %v781, 4
        %v783 = vsel %vm642, %v782, %v776
        %v784 = vrot.slane %v776, 4
        %v785 = vsel %vm642, %v781, %v784
        %v787 = vunpack.c.l.s4 1934713408
        %v788 = vunpack.c.0.s8 %v787
        %v789 = vperm.slane %v783, %v788
        %v791 = vunpack.c.l.s4 1934713408
        %v792 = vunpack.c.0.s8 %v791
        %v793 = vperm.slane %v785, %v792
        %v794 = vrot.slane %v789, 4
        %v795 = vsel %vm642, 0, %v794
        %v796 = vrot.slane %v793, 4
        %v797 = vsel %vm642, 0, %v796
        %v800 = vunpack.c.l.s4 1983009808
        %v801 = vunpack.c.0.s8 %v800
        %v802 = vperm.slane %v753, %v801
        %v805 = vunpack.c.l.s4 1983009808
        %v806 = vunpack.c.0.s8 %v805
        %v807 = vperm.slane %v759, %v806
        %v808 = vrot.slane %v807, 4
        %v809 = vsel %vm642, %v808, %v802
        %v810 = vrot.slane %v802, 4
        %v811 = vsel %vm642, %v807, %v810
        %v813 = vunpack.c.l.s4 1934713408
        %v814 = vunpack.c.0.s8 %v813
        %v815 = vperm.slane %v809, %v814
        %v817 = vunpack.c.l.s4 1934713408
        %v818 = vunpack.c.0.s8 %v817
        %v819 = vperm.slane %v811, %v818
        %v820 = vrot.slane %v815, 4
        %v821 = vsel %vm642, 0, %v820
        %v822 = vrot.slane %v819, 4
        %v823 = vsel %vm642, 0, %v822
        %v826 = vunpack.c.l.s4 1983009808
        %v827 = vunpack.c.0.s8 %v826
        %v828 = vperm.slane %v762, %v827
        %v831 = vunpack.c.l.s4 1983009808
        %v832 = vunpack.c.0.s8 %v831
        %v833 = vperm.slane %v768, %v832
        %v834 = vrot.slane %v833, 4
        %v835 = vsel %vm642, %v834, %v828
        %v836 = vrot.slane %v828, 4
        %v837 = vsel %vm642, %v833, %v836
        %v839 = vunpack.c.l.s4 1934713408
        %v840 = vunpack.c.0.s8 %v839
        %v841 = vperm.slane %v835, %v840
        %v843 = vunpack.c.l.s4 1934713408
        %v844 = vunpack.c.0.s8 %v843
        %v845 = vperm.slane %v837, %v844
        %v846 = vrot.slane %v841, 4
        %v847 = vsel %vm642, 0, %v846
        %v848 = vrot.slane %v845, 4
        %v849 = vsel %vm642, 0, %v848
        %v852 = vunpack.c.l.s4 1983009808
        %v853 = vunpack.c.0.s8 %v852
        %v854 = vperm.slane %v765, %v853
        %v857 = vunpack.c.l.s4 1983009808
        %v858 = vunpack.c.0.s8 %v857
        %v859 = vperm.slane %v771, %v858
        %v860 = vrot.slane %v859, 4
        %v861 = vsel %vm642, %v860, %v854
        %v862 = vrot.slane %v854, 4
        %v863 = vsel %vm642, %v859, %v862
        %v865 = vunpack.c.l.s4 1934713408
        %v866 = vunpack.c.0.s8 %v865
        %v867 = vperm.slane %v861, %v866
        %v869 = vunpack.c.l.s4 1934713408
        %v870 = vunpack.c.0.s8 %v869
        %v871 = vperm.slane %v863, %v870
        %v872 = vrot.slane %v867, 4
        %v873 = vsel %vm642, 0, %v872
        %v874 = vrot.slane %v871, 4
        %v875 = vsel %vm642, 0, %v874
        %v876 = vsel %vm642, %v796, %v789
        %v878 = vunpack.c.l.s4 1983009808
        %v879 = vunpack.c.0.s8 %v878
        %v880 = vperm.slane %v876, %v879
        %v881 = vrot.slane %v797, 4
        %v882 = vsel %vm642, %v881, %v795
        %v884 = vunpack.c.l.s4 1983009808
        %v885 = vunpack.c.0.s8 %v884
        %v886 = vperm.slane %v882, %v885
        %v887 = vrot.slane %v886, 4
        %v888 = vsel %vm642, %v887, %v880
        %v890 = vunpack.c.l.s4 1934713408
        %v891 = vunpack.c.0.s8 %v890
        %v892 = vperm.slane %v888, %v891
        %v893 = vrot.slane %v892, 4
        %v894 = vsel %vm642, 0, %v893
        %v895 = vsel %vm642, %v822, %v815
        %v897 = vunpack.c.l.s4 1983009808
        %v898 = vunpack.c.0.s8 %v897
        %v899 = vperm.slane %v895, %v898
        %v900 = vrot.slane %v823, 4
        %v901 = vsel %vm642, %v900, %v821
        %v903 = vunpack.c.l.s4 1983009808
        %v904 = vunpack.c.0.s8 %v903
        %v905 = vperm.slane %v901, %v904
        %v906 = vrot.slane %v905, 4
        %v907 = vsel %vm642, %v906, %v899
        %v909 = vunpack.c.l.s4 1934713408
        %v910 = vunpack.c.0.s8 %v909
        %v911 = vperm.slane %v907, %v910
        %v912 = vrot.slane %v911, 4
        %v913 = vsel %vm642, 0, %v912
        %v914 = vsel %vm642, %v848, %v841
        %v916 = vunpack.c.l.s4 1983009808
        %v917 = vunpack.c.0.s8 %v916
        %v918 = vperm.slane %v914, %v917
        %v919 = vrot.slane %v849, 4
        %v920 = vsel %vm642, %v919, %v847
        %v922 = vunpack.c.l.s4 1983009808
        %v923 = vunpack.c.0.s8 %v922
        %v924 = vperm.slane %v920, %v923
        %v925 = vrot.slane %v924, 4
        %v926 = vsel %vm642, %v925, %v918
        %v928 = vunpack.c.l.s4 1934713408
        %v929 = vunpack.c.0.s8 %v928
        %v930 = vperm.slane %v926, %v929
        %v931 = vrot.slane %v930, 4
        %v932 = vsel %vm642, 0, %v931
        %v933 = vsel %vm642, %v874, %v867
        %v935 = vunpack.c.l.s4 1983009808
        %v936 = vunpack.c.0.s8 %v935
        %v937 = vperm.slane %v933, %v936
        %v938 = vrot.slane %v875, 4
        %v939 = vsel %vm642, %v938, %v873
        %v941 = vunpack.c.l.s4 1983009808
        %v942 = vunpack.c.0.s8 %v941
        %v943 = vperm.slane %v939, %v942
        %v944 = vrot.slane %v943, 4
        %v945 = vsel %vm642, %v944, %v937
        %v947 = vunpack.c.l.s4 1934713408
        %v948 = vunpack.c.0.s8 %v947
        %v949 = vperm.slane %v945, %v948
        %v950 = vrot.slane %v949, 4
        %v951 = vsel %vm642, 0, %v950
        %v954 = vpack.i.b16 %v911, %v892
        %v955 = vshrl.u32 %v892, 16
        %v956 = vshrl.u32 %v911, 16
        %v957 = vpack.i.b16 %v956, %v955
        %v960 = vpack.i.b16 %v913, %v894
        %v961 = vshrl.u32 %v894, 16
        %v962 = vshrl.u32 %v913, 16
        %v963 = vpack.i.b16 %v962, %v961
        %v966 = vpack.i.b16 %v949, %v930
        %v967 = vshrl.u32 %v930, 16
        %v968 = vshrl.u32 %v949, 16
        %v969 = vpack.i.b16 %v968, %v967
        %v972 = vpack.i.b16 %v951, %v932
        %v973 = vshrl.u32 %v932, 16
        %v974 = vshrl.u32 %v951, 16
        %v975 = vpack.i.b16 %v974, %v973
        %978 = vrot.lane.b32.xlu0 %v610, 120
        %v979 = vpop.permute.xlu0 %978
        %980 = vrot.lane.b32.xlu0 %v611, 120
        %v981 = vpop.permute.xlu0 %980
        %982 = vrot.lane.b32.xlu0 %v610, 112
        %v983 = vpop.permute.xlu0 %982
        %984 = vrot.lane.b32.xlu0 %v611, 112
        %v985 = vpop.permute.xlu0 %984
        %986 = vrot.lane.b32.xlu0 %v610, 104
        %v987 = vpop.permute.xlu0 %986
        %988 = vrot.lane.b32.xlu0 %v611, 104
        %v989 = vpop.permute.xlu0 %988
        %v992 = vpack.i.b16 %v979, %v610
        %v993 = vshrl.u32 %v610, 16
        %v994 = vshrl.u32 %v979, 16
        %v995 = vpack.i.b16 %v994, %v993
        %v998 = vpack.i.b16 %v987, %v983
        %v999 = vshrl.u32 %v983, 16
        %v1000 = vshrl.u32 %v987, 16
        %v1001 = vpack.i.b16 %v1000, %v999
        %v1004 = vpack.i.b16 %v981, %v611
        %v1005 = vshrl.u32 %v611, 16
        %v1006 = vshrl.u32 %v981, 16
        %v1007 = vpack.i.b16 %v1006, %v1005
        %v1010 = vpack.i.b16 %v989, %v985
        %v1011 = vshrl.u32 %v985, 16
        %v1012 = vshrl.u32 %v989, 16
        %v1013 = vpack.i.b16 %v1012, %v1011
        %v1016 = vunpack.c.l.s4 1983009808
        %v1017 = vunpack.c.0.s8 %v1016
        %v1018 = vperm.slane %v992, %v1017
        %v1021 = vunpack.c.l.s4 1983009808
        %v1022 = vunpack.c.0.s8 %v1021
        %v1023 = vperm.slane %v998, %v1022
        %v1024 = vrot.slane %v1023, 4
        %v1025 = vsel %vm642, %v1024, %v1018
        %v1026 = vrot.slane %v1018, 4
        %v1027 = vsel %vm642, %v1023, %v1026
        %v1029 = vunpack.c.l.s4 1934713408
        %v1030 = vunpack.c.0.s8 %v1029
        %v1031 = vperm.slane %v1025, %v1030
        %v1033 = vunpack.c.l.s4 1934713408
        %v1034 = vunpack.c.0.s8 %v1033
        %v1035 = vperm.slane %v1027, %v1034
        %v1036 = vrot.slane %v1031, 4
        %v1037 = vsel %vm642, 0, %v1036
        %v1038 = vrot.slane %v1035, 4
        %v1039 = vsel %vm642, 0, %v1038
        %v1042 = vunpack.c.l.s4 1983009808
        %v1043 = vunpack.c.0.s8 %v1042
        %v1044 = vperm.slane %v995, %v1043
        %v1047 = vunpack.c.l.s4 1983009808
        %v1048 = vunpack.c.0.s8 %v1047
        %v1049 = vperm.slane %v1001, %v1048
        %v1050 = vrot.slane %v1049, 4
        %v1051 = vsel %vm642, %v1050, %v1044
        %v1052 = vrot.slane %v1044, 4
        %v1053 = vsel %vm642, %v1049, %v1052
        %v1055 = vunpack.c.l.s4 1934713408
        %v1056 = vunpack.c.0.s8 %v1055
        %v1057 = vperm.slane %v1051, %v1056
        %v1059 = vunpack.c.l.s4 1934713408
        %v1060 = vunpack.c.0.s8 %v1059
        %v1061 = vperm.slane %v1053, %v1060
        %v1062 = vrot.slane %v1057, 4
        %v1063 = vsel %vm642, 0, %v1062
        %v1064 = vrot.slane %v1061, 4
        %v1065 = vsel %vm642, 0, %v1064
        %v1068 = vunpack.c.l.s4 1983009808
        %v1069 = vunpack.c.0.s8 %v1068
        %v1070 = vperm.slane %v1004, %v1069
        %v1073 = vunpack.c.l.s4 1983009808
        %v1074 = vunpack.c.0.s8 %v1073
        %v1075 = vperm.slane %v1010, %v1074
        %v1076 = vrot.slane %v1075, 4
        %v1077 = vsel %vm642, %v1076, %v1070
        %v1078 = vrot.slane %v1070, 4
        %v1079 = vsel %vm642, %v1075, %v1078
        %v1081 = vunpack.c.l.s4 1934713408
        %v1082 = vunpack.c.0.s8 %v1081
        %v1083 = vperm.slane %v1077, %v1082
        %v1085 = vunpack.c.l.s4 1934713408
        %v1086 = vunpack.c.0.s8 %v1085
        %v1087 = vperm.slane %v1079, %v1086
        %v1088 = vrot.slane %v1083, 4
        %v1089 = vsel %vm642, 0, %v1088
        %v1090 = vrot.slane %v1087, 4
        %v1091 = vsel %vm642, 0, %v1090
        %v1094 = vunpack.c.l.s4 1983009808
        %v1095 = vunpack.c.0.s8 %v1094
        %v1096 = vperm.slane %v1007, %v1095
        %v1099 = vunpack.c.l.s4 1983009808
        %v1100 = vunpack.c.0.s8 %v1099
        %v1101 = vperm.slane %v1013, %v1100
        %v1102 = vrot.slane %v1101, 4
        %v1103 = vsel %vm642, %v1102, %v1096
        %v1104 = vrot.slane %v1096, 4
        %v1105 = vsel %vm642, %v1101, %v1104
        %v1107 = vunpack.c.l.s4 1934713408
        %v1108 = vunpack.c.0.s8 %v1107
        %v1109 = vperm.slane %v1103, %v1108
        %v1111 = vunpack.c.l.s4 1934713408
        %v1112 = vunpack.c.0.s8 %v1111
        %v1113 = vperm.slane %v1105, %v1112
        %v1114 = vrot.slane %v1109, 4
        %v1115 = vsel %vm642, 0, %v1114
        %v1116 = vrot.slane %v1113, 4
        %v1117 = vsel %vm642, 0, %v1116
        %v1118 = vsel %vm642, %v1038, %v1031
        %v1120 = vunpack.c.l.s4 1983009808
        %v1121 = vunpack.c.0.s8 %v1120
        %v1122 = vperm.slane %v1118, %v1121
        %v1123 = vrot.slane %v1039, 4
        %v1124 = vsel %vm642, %v1123, %v1037
        %v1126 = vunpack.c.l.s4 1983009808
        %v1127 = vunpack.c.0.s8 %v1126
        %v1128 = vperm.slane %v1124, %v1127
        %v1129 = vrot.slane %v1128, 4
        %v1130 = vsel %vm642, %v1129, %v1122
        %v1132 = vunpack.c.l.s4 1934713408
        %v1133 = vunpack.c.0.s8 %v1132
        %v1134 = vperm.slane %v1130, %v1133
        %v1135 = vrot.slane %v1134, 4
        %v1136 = vsel %vm642, 0, %v1135
        %v1137 = vsel %vm642, %v1064, %v1057
        %v1139 = vunpack.c.l.s4 1983009808
        %v1140 = vunpack.c.0.s8 %v1139
        %v1141 = vperm.slane %v1137, %v1140
        %v1142 = vrot.slane %v1065, 4
        %v1143 = vsel %vm642, %v1142, %v1063
        %v1145 = vunpack.c.l.s4 1983009808
        %v1146 = vunpack.c.0.s8 %v1145
        %v1147 = vperm.slane %v1143, %v1146
        %v1148 = vrot.slane %v1147, 4
        %v1149 = vsel %vm642, %v1148, %v1141
        %v1151 = vunpack.c.l.s4 1934713408
        %v1152 = vunpack.c.0.s8 %v1151
        %v1153 = vperm.slane %v1149, %v1152
        %v1154 = vrot.slane %v1153, 4
        %v1155 = vsel %vm642, 0, %v1154
        %v1156 = vsel %vm642, %v1090, %v1083
        %v1158 = vunpack.c.l.s4 1983009808
        %v1159 = vunpack.c.0.s8 %v1158
        %v1160 = vperm.slane %v1156, %v1159
        %v1161 = vrot.slane %v1091, 4
        %v1162 = vsel %vm642, %v1161, %v1089
        %v1164 = vunpack.c.l.s4 1983009808
        %v1165 = vunpack.c.0.s8 %v1164
        %v1166 = vperm.slane %v1162, %v1165
        %v1167 = vrot.slane %v1166, 4
        %v1168 = vsel %vm642, %v1167, %v1160
        %v1170 = vunpack.c.l.s4 1934713408
        %v1171 = vunpack.c.0.s8 %v1170
        %v1172 = vperm.slane %v1168, %v1171
        %v1173 = vrot.slane %v1172, 4
        %v1174 = vsel %vm642, 0, %v1173
        %v1175 = vsel %vm642, %v1116, %v1109
        %v1177 = vunpack.c.l.s4 1983009808
        %v1178 = vunpack.c.0.s8 %v1177
        %v1179 = vperm.slane %v1175, %v1178
        %v1180 = vrot.slane %v1117, 4
        %v1181 = vsel %vm642, %v1180, %v1115
        %v1183 = vunpack.c.l.s4 1983009808
        %v1184 = vunpack.c.0.s8 %v1183
        %v1185 = vperm.slane %v1181, %v1184
        %v1186 = vrot.slane %v1185, 4
        %v1187 = vsel %vm642, %v1186, %v1179
        %v1189 = vunpack.c.l.s4 1934713408
        %v1190 = vunpack.c.0.s8 %v1189
        %v1191 = vperm.slane %v1187, %v1190
        %v1192 = vrot.slane %v1191, 4
        %v1193 = vsel %vm642, 0, %v1192
        %v1196 = vpack.i.b16 %v1153, %v1134
        %v1197 = vshrl.u32 %v1134, 16
        %v1198 = vshrl.u32 %v1153, 16
        %v1199 = vpack.i.b16 %v1198, %v1197
        %v1202 = vpack.i.b16 %v1155, %v1136
        %v1203 = vshrl.u32 %v1136, 16
        %v1204 = vshrl.u32 %v1155, 16
        %v1205 = vpack.i.b16 %v1204, %v1203
        %v1208 = vpack.i.b16 %v1191, %v1172
        %v1209 = vshrl.u32 %v1172, 16
        %v1210 = vshrl.u32 %v1191, 16
        %v1211 = vpack.i.b16 %v1210, %v1209
        %v1214 = vpack.i.b16 %v1193, %v1174
        %v1215 = vshrl.u32 %v1174, 16
        %v1216 = vshrl.u32 %v1193, 16
        %v1217 = vpack.i.b16 %v1216, %v1215
        %v1218 = vunpack.c.l.b16 %v954
        %v1219 = vunpack.c.l.b16 %v966
        %v1220 = vpack.c.b16 %v1219, %v1218
        %vm1221 = vcmask 64512
        %v1223 = vsel %vm1221, %v724, 0
        %v1226 = vsel %vm1221, %v1220, 0
        %1228 = vmatpush.bf16.xpose.msra.mxu0 0
        %1229 = vmatpush.bf16.xpose.msra.mxu0 0
        %1230 = vmatpush.bf16.xpose.msra.mxu0 0
        %1231 = vmatpush.bf16.xpose.msra.mxu0 0
        %1232 = vmatpush.bf16.xpose.msra.mxu0 0
        %1233 = vmatpush.bf16.xpose.msra.mxu0 0
        %1234 = vmatpush.bf16.xpose.msra.mxu0 0
        %1235 = vmatpush.bf16.xpose.msra.mxu0 %v1226
        %1236 = vmatmul.bf16.gmra.mxu0 %v1223
        %v1237 = vpop.f32.mrf.mxu0
        %v1238 = vadd.f32 0.0, %v1237
        %v1239 = vpop.f32.mrf.mxu0
        %1240 = vdwg.mxu0
        %v1241 = vunpack.c.l.b16 %v957
        %v1242 = vunpack.c.l.b16 %v969
        %v1243 = vpack.c.b16 %v1242, %v1241
        %v1245 = vsel %vm1221, %v727, 0
        %v1248 = vsel %vm1221, %v1243, 0
        %1250 = vmatpush.bf16.xpose.msra.mxu0 0
        %1251 = vmatpush.bf16.xpose.msra.mxu0 0
        %1252 = vmatpush.bf16.xpose.msra.mxu0 0
        %1253 = vmatpush.bf16.xpose.msra.mxu0 0
        %1254 = vmatpush.bf16.xpose.msra.mxu0 0
        %1255 = vmatpush.bf16.xpose.msra.mxu0 0
        %1256 = vmatpush.bf16.xpose.msra.mxu0 0
        %1257 = vmatpush.bf16.xpose.msra.mxu0 %v1248
        %1258 = vmatmul.bf16.gmra.mxu0 %v1245
        %v1259 = vpop.f32.mrf.mxu0
        %v1260 = vadd.f32 0.0, %v1259
        %v1261 = vpop.f32.mrf.mxu0
        %1262 = vdwg.mxu0
        %v1263 = vunpack.c.l.b16 %v960
        %v1264 = vunpack.c.l.b16 %v972
        %v1265 = vpack.c.b16 %v1264, %v1263
        %v1267 = vsel %vm1221, %v730, 0
        %v1270 = vsel %vm1221, %v1265, 0
        %1272 = vmatpush.bf16.xpose.msra.mxu0 0
        %1273 = vmatpush.bf16.xpose.msra.mxu0 0
        %1274 = vmatpush.bf16.xpose.msra.mxu0 0
        %1275 = vmatpush.bf16.xpose.msra.mxu0 0
        %1276 = vmatpush.bf16.xpose.msra.mxu0 0
        %1277 = vmatpush.bf16.xpose.msra.mxu0 0
        %1278 = vmatpush.bf16.xpose.msra.mxu0 0
        %1279 = vmatpush.bf16.xpose.msra.mxu0 %v1270
        %1280 = vmatmul.bf16.gmra.mxu0 %v1267
        %v1281 = vpop.f32.mrf.mxu0
        %v1282 = vadd.f32 0.0, %v1281
        %v1283 = vpop.f32.mrf.mxu0
        %1284 = vdwg.mxu0
        %v1285 = vunpack.c.l.b16 %v963
        %v1286 = vunpack.c.l.b16 %v975
        %v1287 = vpack.c.b16 %v1286, %v1285
        %v1289 = vsel %vm1221, %v733, 0
        %v1292 = vsel %vm1221, %v1287, 0
        %1294 = vmatpush.bf16.xpose.msra.mxu0 0
        %1295 = vmatpush.bf16.xpose.msra.mxu0 0
        %1296 = vmatpush.bf16.xpose.msra.mxu0 0
        %1297 = vmatpush.bf16.xpose.msra.mxu0 0
        %1298 = vmatpush.bf16.xpose.msra.mxu0 0
        %1299 = vmatpush.bf16.xpose.msra.mxu0 0
        %1300 = vmatpush.bf16.xpose.msra.mxu0 0
        %1301 = vmatpush.bf16.xpose.msra.mxu0 %v1292
        %1302 = vmatmul.bf16.gmra.mxu0 %v1289
        %v1303 = vpop.f32.mrf.mxu0
        %v1304 = vadd.f32 0.0, %v1303
        %v1305 = vpop.f32.mrf.mxu0
        %1306 = vdwg.mxu0
        %vm1307 = vcmask 130048
        %v1308 = vsel %vm1307, %v1238, -inf
        %1309 = vmax.xlane.f32.xlu0 %v1308
        %v1310 = vpop.xlane.xlu0 %1309
        %v1311 = vsel %vm1307, %v1260, -inf
        %1312 = vmax.xlane.f32.xlu0 %v1311
        %v1313 = vpop.xlane.xlu0 %1312
        %v1314 = vsel %vm1307, %v1282, -inf
        %1315 = vmax.xlane.f32.xlu0 %v1314
        %v1316 = vpop.xlane.xlu0 %1315
        %v1317 = vsel %vm1307, %v1304, -inf
        %1318 = vmax.xlane.f32.xlu0 %v1317
        %v1319 = vpop.xlane.xlu0 %1318
        %v1320 = vsub.f32 %v1238, %v1310
        %v1321 = vsub.f32 %v1260, %v1313
        %v1322 = vsub.f32 %v1282, %v1316
        %v1323 = vsub.f32 %v1304, %v1319
        %v1324 = vmul.f32 %v1320, 1.442695
        %v1325 = vpow.pop %v1324
        %v1326 = vmul.f32 %v1321, 1.442695
        %v1327 = vpow.pop %v1326
        %v1328 = vmul.f32 %v1322, 1.442695
        %v1329 = vpow.pop %v1328
        %v1330 = vmul.f32 %v1323, 1.442695
        %v1331 = vpow.pop %v1330
        %v1332 = vsel %vm1307, %v1325, 0.0
        %1333 = vadd.xlane.f32.xlu0 %v1332
        %v1334 = vpop.xlane.xlu0 %1333
        %v1335 = vsel %vm1307, %v1327, 0.0
        %1336 = vadd.xlane.f32.xlu0 %v1335
        %v1337 = vpop.xlane.xlu0 %1336
        %v1338 = vsel %vm1307, %v1329, 0.0
        %1339 = vadd.xlane.f32.xlu0 %v1338
        %v1340 = vpop.xlane.xlu0 %1339
        %v1341 = vsel %vm1307, %v1331, 0.0
        %1342 = vadd.xlane.f32.xlu0 %v1341
        %v1343 = vpop.xlane.xlu0 %1342
        %v1344 = vrcp.pop %v1334
        %v1345 = vrcp.pop %v1337
        %v1346 = vrcp.pop %v1340
        %v1347 = vrcp.pop %v1343
        %v1348 = vmul.f32 %v1325, %v1344
        %v1349 = vmul.f32 %v1327, %v1345
        %v1350 = vmul.f32 %v1329, %v1346
        %v1351 = vmul.f32 %v1331, %v1347
        %v1352 = vpack.c.bf16 %v1348, %v1348
        %v1353 = vpack.c.bf16 %v1349, %v1349
        %v1354 = vpack.c.bf16 %v1350, %v1350
        %v1355 = vpack.c.bf16 %v1351, %v1351
        %v1356 = vunpack.c.l.b16 %v1196
        %v1357 = vunpack.c.l.b16 %v1208
        %v1358 = vpack.c.b16 %v1357, %v1356
        %v1361 = vsel %vm1307, %v1352, 0
        %1363 = vmatpush.bf16.msra.mxu0 0
        %1364 = vmatpush.bf16.msra.mxu0 0
        %1365 = vmatpush.bf16.msra.mxu0 0
        %1366 = vmatpush.bf16.msra.mxu0 0
        %1367 = vmatpush.bf16.msra.mxu0 0
        %1368 = vmatpush.bf16.msra.mxu0 0
        %1369 = vmatpush.bf16.msra.mxu0 0
        %1370 = vmatpush.bf16.msra.mxu0 %v1358
        %1371 = vmatmul.bf16.gmra.mxu0 %v1361
        %v1372 = vpop.f32.mrf.mxu0
        %v1373 = vadd.f32 0.0, %v1372
        %v1374 = vpop.f32.mrf.mxu0
        %1375 = vdwg.mxu0
        %v1376 = vunpack.c.l.b16 %v1199
        %v1377 = vunpack.c.l.b16 %v1211
        %v1378 = vpack.c.b16 %v1377, %v1376
        %v1381 = vsel %vm1307, %v1353, 0
        %1383 = vmatpush.bf16.msra.mxu0 0
        %1384 = vmatpush.bf16.msra.mxu0 0
        %1385 = vmatpush.bf16.msra.mxu0 0
        %1386 = vmatpush.bf16.msra.mxu0 0
        %1387 = vmatpush.bf16.msra.mxu0 0
        %1388 = vmatpush.bf16.msra.mxu0 0
        %1389 = vmatpush.bf16.msra.mxu0 0
        %1390 = vmatpush.bf16.msra.mxu0 %v1378
        %1391 = vmatmul.bf16.gmra.mxu0 %v1381
        %v1392 = vpop.f32.mrf.mxu0
        %v1393 = vadd.f32 0.0, %v1392
        %v1394 = vpop.f32.mrf.mxu0
        %1395 = vdwg.mxu0
        %v1396 = vunpack.c.l.b16 %v1202
        %v1397 = vunpack.c.l.b16 %v1214
        %v1398 = vpack.c.b16 %v1397, %v1396
        %v1401 = vsel %vm1307, %v1354, 0
        %1403 = vmatpush.bf16.msra.mxu0 0
        %1404 = vmatpush.bf16.msra.mxu0 0
        %1405 = vmatpush.bf16.msra.mxu0 0
        %1406 = vmatpush.bf16.msra.mxu0 0
        %1407 = vmatpush.bf16.msra.mxu0 0
        %1408 = vmatpush.bf16.msra.mxu0 0
        %1409 = vmatpush.bf16.msra.mxu0 0
        %1410 = vmatpush.bf16.msra.mxu0 %v1398
        %1411 = vmatmul.bf16.gmra.mxu0 %v1401
        %v1412 = vpop.f32.mrf.mxu0
        %v1413 = vadd.f32 0.0, %v1412
        %v1414 = vpop.f32.mrf.mxu0
        %1415 = vdwg.mxu0
        %v1416 = vunpack.c.l.b16 %v1205
        %v1417 = vunpack.c.l.b16 %v1217
        %v1418 = vpack.c.b16 %v1417, %v1416
        %v1421 = vsel %vm1307, %v1355, 0
        %1423 = vmatpush.bf16.msra.mxu0 0
        %1424 = vmatpush.bf16.msra.mxu0 0
        %1425 = vmatpush.bf16.msra.mxu0 0
        %1426 = vmatpush.bf16.msra.mxu0 0
        %1427 = vmatpush.bf16.msra.mxu0 0
        %1428 = vmatpush.bf16.msra.mxu0 0
        %1429 = vmatpush.bf16.msra.mxu0 0
        %1430 = vmatpush.bf16.msra.mxu0 %v1418
        %1431 = vmatmul.bf16.gmra.mxu0 %v1421
        %v1432 = vpop.f32.mrf.mxu0
        %v1433 = vadd.f32 0.0, %v1432
        %v1434 = vpop.f32.mrf.mxu0
        %1435 = vdwg.mxu0
        %v1436 = vpack.c.bf16 %v1373, %v1373
        %v1437 = vpack.c.bf16 %v1393, %v1393
        %v1438 = vpack.c.bf16 %v1413, %v1413
        %v1439 = vpack.c.bf16 %v1433, %v1433
        %v1442 = vpack.i.b16 %v1437, %v1436
        %v1443 = vshrl.u32 %v1436, 16
        %v1444 = vshrl.u32 %v1437, 16
        %v1445 = vpack.i.b16 %v1444, %v1443
        %v1448 = vpack.i.b16 %v1439, %v1438
        %v1449 = vshrl.u32 %v1438, 16
        %v1450 = vshrl.u32 %v1439, 16
        %v1451 = vpack.i.b16 %v1450, %v1449
        %v1454 = vunpack.c.l.s4 1983009808
        %v1455 = vunpack.c.0.s8 %v1454
        %v1456 = vperm.slane %v1442, %v1455
        %v1459 = vunpack.c.l.s4 1983009808
        %v1460 = vunpack.c.0.s8 %v1459
        %v1461 = vperm.slane %v1448, %v1460
        %v1462 = vrot.slane %v1461, 4
        %v1463 = vsel %vm642, %v1462, %v1456
        %v1464 = vrot.slane %v1456, 4
        %v1465 = vsel %vm642, %v1461, %v1464
        %v1467 = vunpack.c.l.s4 1934713408
        %v1468 = vunpack.c.0.s8 %v1467
        %v1469 = vperm.slane %v1463, %v1468
        %v1471 = vunpack.c.l.s4 1934713408
        %v1472 = vunpack.c.0.s8 %v1471
        %v1473 = vperm.slane %v1465, %v1472
        %v1474 = vrot.slane %v1469, 4
        %v1475 = vsel %vm642, 0, %v1474
        %v1476 = vrot.slane %v1473, 4
        %v1477 = vsel %vm642, 0, %v1476
        %v1480 = vunpack.c.l.s4 1983009808
        %v1481 = vunpack.c.0.s8 %v1480
        %v1482 = vperm.slane %v1445, %v1481
        %v1485 = vunpack.c.l.s4 1983009808
        %v1486 = vunpack.c.0.s8 %v1485
        %v1487 = vperm.slane %v1451, %v1486
        %v1488 = vrot.slane %v1487, 4
        %v1489 = vsel %vm642, %v1488, %v1482
        %v1490 = vrot.slane %v1482, 4
        %v1491 = vsel %vm642, %v1487, %v1490
        %v1493 = vunpack.c.l.s4 1934713408
        %v1494 = vunpack.c.0.s8 %v1493
        %v1495 = vperm.slane %v1489, %v1494
        %v1497 = vunpack.c.l.s4 1934713408
        %v1498 = vunpack.c.0.s8 %v1497
        %v1499 = vperm.slane %v1491, %v1498
        %v1500 = vrot.slane %v1495, 4
        %v1501 = vsel %vm642, 0, %v1500
        %v1502 = vrot.slane %v1499, 4
        %v1503 = vsel %vm642, 0, %v1502
        %v1504 = vsel %vm642, %v1476, %v1469
        %v1506 = vunpack.c.l.s4 1983009808
        %v1507 = vunpack.c.0.s8 %v1506
        %v1508 = vperm.slane %v1504, %v1507
        %v1509 = vrot.slane %v1477, 4
        %v1510 = vsel %vm642, %v1509, %v1475
        %v1512 = vunpack.c.l.s4 1983009808
        %v1513 = vunpack.c.0.s8 %v1512
        %v1514 = vperm.slane %v1510, %v1513
        %v1515 = vrot.slane %v1514, 4
        %v1516 = vsel %vm642, %v1515, %v1508
        %v1518 = vunpack.c.l.s4 1934713408
        %v1519 = vunpack.c.0.s8 %v1518
        %v1520 = vperm.slane %v1516, %v1519
        %v1521 = vrot.slane %v1520, 4
        %v1522 = vsel %vm642, 0, %v1521
        %v1523 = vsel %vm642, %v1502, %v1495
        %v1525 = vunpack.c.l.s4 1983009808
        %v1526 = vunpack.c.0.s8 %v1525
        %v1527 = vperm.slane %v1523, %v1526
        %v1528 = vrot.slane %v1503, 4
        %v1529 = vsel %vm642, %v1528, %v1501
        %v1531 = vunpack.c.l.s4 1983009808
        %v1532 = vunpack.c.0.s8 %v1531
        %v1533 = vperm.slane %v1529, %v1532
        %v1534 = vrot.slane %v1533, 4
        %v1535 = vsel %vm642, %v1534, %v1527
        %v1537 = vunpack.c.l.s4 1934713408
        %v1538 = vunpack.c.0.s8 %v1537
        %v1539 = vperm.slane %v1535, %v1538
        %v1540 = vrot.slane %v1539, 4
        %v1541 = vsel %vm642, 0, %v1540
        %v1544 = vpack.i.b16 %v1539, %v1520
        %v1545 = vshrl.u32 %v1520, 16
        %v1546 = vshrl.u32 %v1539, 16
        %v1547 = vpack.i.b16 %v1546, %v1545
        %v1550 = vpack.i.b16 %v1541, %v1522
        %v1551 = vshrl.u32 %v1522, 16
        %v1552 = vshrl.u32 %v1541, 16
        %v1553 = vpack.i.b16 %v1552, %v1551
        %v1554 = vunpack.c.l.b16 %v1547
        %v1555 = vpack.c.b16 %v1554, %v1554
        %1556 = vrot.lane.b32.xlu0 %v1555, 8
        %v1557 = vpop.permute.xlu0 %1556
        %v1558 = vunpack.c.l.b16 %v1550
        %v1559 = vpack.c.b16 %v1558, %v1558
        %1560 = vrot.lane.b32.xlu0 %v1559, 16
        %v1561 = vpop.permute.xlu0 %1560
        %v1562 = vunpack.c.l.b16 %v1553
        %v1563 = vpack.c.b16 %v1562, %v1562
        %1564 = vrot.lane.b32.xlu0 %v1563, 24
        %v1565 = vpop.permute.xlu0 %1564
        %v1568 = vsel %vm1221, %v1544, %v1557
        %v1570 = vsel %vm1307, %v1568, %v1561
        %vm1571 = vcmask 195584
        %v1573 = vsel %vm1571, %v1570, %v1565
        %v1574 = vld [vmem:[#allocation13] sm:$0xf]
        %v1575 = vld [vmem:[#allocation13 + $0x4] sm:$0xf]
        %v1576 = vld [vmem:[#allocation13 + $0x8] sm:$0xf]
        %v1577 = vld [vmem:[#allocation13 + $0xc] sm:$0xf]
        %v1578 = vperm.slane %v422, 7
        %v1583 = vunpack.c.l.b16 %v1574
        %v1584 = vunpack.c.l.b16 %v1575
        %v1585 = vunpack.c.l.b16 %v1576
        %v1586 = vunpack.c.l.b16 %v1577
        %v1587 = vpack.c.b16 %v1584, %v1583
        %v1588 = vpack.c.b16 %v1586, %v1585
        %v1591 = vsel %vm423, %v1573, 0
        %1593 = vmatpush.bf16.msra.mxu0 0
        %1594 = vmatpush.bf16.msra.mxu0 0
        %1595 = vmatpush.bf16.msra.mxu0 0
        %1596 = vmatpush.bf16.msra.mxu0 0
        %1597 = vmatpush.bf16.msra.mxu0 0
        %1598 = vmatpush.bf16.msra.mxu0 0
        %1599 = vmatpush.bf16.msra.mxu0 %v1588
        %1600 = vmatpush.bf16.msra.mxu0 %v1587
        %1601 = vmatmul.bf16.gmra.mxu0 %v1591
        %v1602 = vpop.f32.mrf.mxu0
        %v1603 = vadd.f32 %v1578, %v1602
        %v1604 = vpop.f32.mrf.mxu0
        %1605 = vdwg.mxu0
        %1606 = vst.msk [vmem:[%s417] sm:$0xff] %vm423, %v1603
        %s1607 = sand.u32 %s194, 1
        %s1608 = scalar_lea.sflag [#allocation4], %s1607
        %s1609 = sand.u32 %s194, 1
        %s1610 = smul.addr %s1609, 8
        %s1611 = scalar_lea.vmem [#allocation14], %s1610
        // Predicated region
        $region77: #{tpu_custom_call.1} parent=47 // pred_check
          %p1612 = pneg %p204
        $region78: #{tpu_custom_call.1} parent=47 // pred_check_branch
          %1614 = sbr.rel (%p1612) target = $region80
        $region79: #{tpu_custom_call.1} parent=47 // pred_region
          %1616 = vsyncadd %s1608, 0
          %s1617 = smul.addr %s29, 8
          %s1618 = scalar_lea.hbm %s7, %s1617
          %s1620 = sshll.u32 %s1611, 4
          %s1621 = int_to_ptr.vmem [resolvable:$true] %s1620
          %s1622 = sshll.u32 %s1618, 4
          %s1623 = int_to_ptr.hbm [resolvable:$true] %s1622
          %1625 = dma.vmem_to_hbm [thread:$0]  %s1621, 128, %s1623, %s1608
        $region80: #{tpu_custom_call.1} parent=47 // pred_fallthru
          _
      $region48: #{tpu_custom_call.1} parent=5 // pred_fallthru
        _
      %p1626 = scmp.le.s32.totalorder 2, %s24
      // Predicated region
      $region81: #{tpu_custom_call.1} parent=5 // pred_check
        %p1627 = pneg %p1626
      $region82: #{tpu_custom_call.1} parent=5 // pred_check_branch
        %1629 = sbr.rel (%p1627) target = $region84
      $region83: #{tpu_custom_call.1} parent=5 // pred_region
        %s1630 = ssub.s32 %s24, 2
        // Predicated region
        $region85: #{tpu_custom_call.1} parent=83 // pred_check
          %p1631 = pneg %p210
        $region86: #{tpu_custom_call.1} parent=83 // pred_check_branch
          %1633 = sbr.rel (%p1631) target = $region88
        $region87: #{tpu_custom_call.1} parent=83 // pred_region
          %s1634 = sand.u32 %s195, 1
          %s1635 = scalar_lea.sflag [#allocation4], %s1634
          %s1636 = sand.u32 %s195, 1
          %s1637 = smul.addr %s1636, 8
          %s1638 = scalar_lea.vmem [#allocation14], %s1637
          %1640 = dma.done %s1635, 128
        $region88: #{tpu_custom_call.1} parent=83 // pred_fallthru
          _
      $region84: #{tpu_custom_call.1} parent=5 // pred_fallthru
        _
    $region6: #{tpu_custom_call.1} parent=1 // loop_footer
      %s28 = sadd.s32 1, %s24
    $region7: #{tpu_custom_call.1} parent=1 // loop_footer_branch
      %23 = sbr.rel target = $region3
    $region8: #{tpu_custom_call.1} parent=1 // loop_exit
      _
    %1641 = vsyncpa [#allocation3], 1
    %s1642 = scalar_lea.sflag [#allocation3], 1
    %1643 = vsyncpa %s1642, 1
    %1644 = vsyncpa [#allocation6], 1
    %s1645 = scalar_lea.sflag [#allocation6], 1
    %1646 = vsyncpa %s1645, 1
    %1647 = vsyncpa [#allocation9], 1
    %1648 = vsyncpa [#allocation12], 1
    %1649 = vsyncpa [#allocation4], 1
    %s1650 = scalar_lea.sflag [#allocation4], 1
    %1651 = vsyncpa %s1650, 1

</llo_original>
